<compile_context>
chip_gen: v5e
topology: v5e:2x2
jax: 0.10.0
libtpu: 0.0.40
codegen_flags: <defaults>
</compile_context>

<pallas_src>
import functools

import numpy as np

import jax
import jax.numpy as jnp
from jax.experimental import pallas as pl
from jax.experimental.pallas import tpu as pltpu


_VMEM_LIMIT = 32 * 1024 * 1024   # explicit scoped-VMEM limit (v5e default is only 16 MiB)


# ----------------------------------------------------------------------------
# helpers (trace-time, tiny)
# ----------------------------------------------------------------------------
def _pick_row_tile(rows, target=512):
    """Largest 8-aligned row tile <= target that divides `rows`
    (falls back to a single full block)."""
    if rows <= target:
        return rows
    for t in range(target, 0, -8):
        if rows % t == 0:
            return t
    return rows


def _dft_matrices(length, modes):
    """Truncated real-DFT bases that replace rfft / irfft exactly.

    forward (2K, L): rows [0:K] -> Re(rfft), rows [K:2K] -> Im(rfft)
    inverse (L, 2K): x[l] = sum_k c_k/L * (Re_k cos(2*pi*k*l/L) - Im_k sin(...))
    with c_0 = 1, c_k = 2, c_{L/2} = 1 (Nyquist, if present), which reproduces
    irfft of the zero-padded truncated spectrum with n = L.
    """
    assert modes <= length // 2 + 1, "modes must fit the rfft spectrum"
    k = np.arange(modes, dtype=np.float64)[:, None]
    l = np.arange(length, dtype=np.float64)[None, :]
    ang = 2.0 * np.pi * k * l / length                       # (K, L)
    cos, sin = np.cos(ang), np.sin(ang)
    fwd = np.concatenate([cos, -sin], axis=0)                # (2K, L)
    coef = np.full((modes, 1), 2.0)
    coef[0, 0] = 1.0
    if length % 2 == 0 and modes - 1 == length // 2:
        coef[-1, 0] = 1.0
    inv = np.concatenate([cos * coef, -sin * coef], axis=0).T / length   # (L, 2K)
    return (jnp.asarray(fwd, dtype=jnp.float32),
            jnp.asarray(inv, dtype=jnp.float32))


def _mix_weight(w_re, w_im):
    """(K, Cin, Cout) re/im -> (2Cin, K, 2Cout) stacked-real weight, laid out so
    the kernel can walk input channels on the leading axis:
        w[i]       = [  Wr[:, i, :] | Wi[:, i, :] ]   (multiplies Re spectrum)
        w[Cin + i] = [ -Wi[:, i, :] | Wr[:, i, :] ]   (multiplies Im spectrum)
    so that  sum_i Re_i*w[i] + Im_i*w[Cin+i] = [Re' | Im']  (pure VPU FMAs)."""
    top = jnp.concatenate([w_re, w_im], axis=-1)              # (K, Cin, 2Cout)
    bot = jnp.concatenate([-w_im, w_re], axis=-1)             # (K, Cin, 2Cout)
    w = jnp.concatenate([top, bot], axis=1)                   # (K, 2Cin, 2Cout)
    return jnp.transpose(w, (1, 0, 2))                        # (2Cin, K, 2Cout)


# ----------------------------------------------------------------------------
# Pallas kernels
# ----------------------------------------------------------------------------
def _fc0_kernel(x_ref, w_ref, b_ref, o_ref, *, in_dim):
    # Lifting linear over a tile of rows.  in_dim is tiny (2), so an MXU matmul
    # would use 2/256 of the systolic array rows; do VPU broadcast FMAs instead.
    y = x_ref[:, 0:1] * w_ref[0:1, :] + b_ref[...]
    for i in range(1, in_dim):
        y = y + x_ref[:, i:i + 1] * w_ref[i:i + 1, :]
    o_ref[...] = y


def _fourier_layer_kernel(x_ref, dft_ref, wri_ref, idft_ref, wconv_ref,
                          bconv_ref, o_ref, *, modes, cin, cout,
                          apply_act, compute_dtype):
    """One fused Fourier block for one batch element:
       truncated DFT -> per-mode complex channel mix -> truncated iDFT
       -> 1x1 conv + bias + residual (-> ReLU).  All intermediates stay in VMEM."""
    K = modes
    xb = x_ref[0]                                              # (L, Cin) f32
    xm = xb.astype(compute_dtype)

    # (1) truncated real DFT over the spatial axis (replaces jnp.fft.rfft +
    #     truncation): a single MXU matmul.
    spec = jnp.dot(dft_ref[...].astype(compute_dtype), xm,
                   preferred_element_type=jnp.float32)         # (2K, Cin) f32
    spec_re = spec[:K, :]                                      # (K, Cin)
    spec_im = spec[K:, :]                                      # (K, Cin)

    # (2) per-mode complex channel mix on the VPU: broadcast-FMA chain over the
    #     input channels with the stacked-real weight (2Cin, K, 2Cout).  This
    #     keeps the MXU free for the big matmuls (no K tiny 1-row matmuls) and
    #     needs no sublane<->lane re-layout of the spectrum.  Two independent
    #     accumulator chains (Re / Im weights) for ILP; `cin` is static so the
    #     loop unrolls.
    acc_a = spec_re[:, 0:1] * wri_ref[0]                       # (K, 2Cout)
    acc_b = spec_im[:, 0:1] * wri_ref[cin]                     # (K, 2Cout)
    for i in range(1, cin):
        acc_a = acc_a + spec_re[:, i:i + 1] * wri_ref[i]
        acc_b = acc_b + spec_im[:, i:i + 1] * wri_ref[cin + i]
    acc = acc_a + acc_b                                        # (K, 2Cout) = [Re'|Im']

    # (3) truncated inverse real DFT (replaces zero-pad + irfft): one matmul.
    mixed = jnp.concatenate([acc[:, :cout], acc[:, cout:]], axis=0)   # (2K, Cout)
    x1 = jnp.dot(idft_ref[...].astype(compute_dtype),
                 mixed.astype(compute_dtype),
                 preferred_element_type=jnp.float32)           # (L, Cout)

    # (4) 1x1 conv + bias + spectral residual (+ ReLU), fused.
    y = (jnp.dot(xm, wconv_ref[...].astype(compute_dtype),
                 preferred_element_type=jnp.float32)
         + bconv_ref[...] + x1)
    if apply_act:
        y = jnp.maximum(y, 0.0)
    o_ref[0] = y


def _proj_kernel(x_ref, w1_ref, b1_ref, w2_ref, b2_ref, o_ref, *, compute_dtype):
    # fused fc1 -> ReLU -> fc2 over a tile of rows
    x = x_ref[...].astype(compute_dtype)
    h = jnp.dot(x, w1_ref[...].astype(compute_dtype),
                preferred_element_type=jnp.float32) + b1_ref[...]
    h = jnp.maximum(h, 0.0)
    o_ref[...] = (jnp.dot(h.astype(compute_dtype), w2_ref[...].astype(compute_dtype),
                          preferred_element_type=jnp.float32) + b2_ref[...])


# ----------------------------------------------------------------------------
# pallas_call wrappers
# ----------------------------------------------------------------------------
def fc0(x_rows, w, b, *, row_tile=512):
    rows, in_dim = x_rows.shape
    c = w.shape[1]
    tile = _pick_row_tile(rows, row_tile)
    kernel = functools.partial(_fc0_kernel, in_dim=in_dim)
    return pl.pallas_call(
        kernel,
        out_shape=jax.ShapeDtypeStruct((rows, c), jnp.float32),
        grid=(rows // tile,),
        in_specs=[
            pl.BlockSpec((tile, in_dim), lambda i: (i, 0)),
            pl.BlockSpec((in_dim, c), lambda i: (0, 0)),
            pl.BlockSpec((1, c), lambda i: (0, 0)),
        ],
        out_specs=pl.BlockSpec((tile, c), lambda i: (i, 0)),
        compiler_params=pltpu.CompilerParams(
            dimension_semantics=("parallel",),
            vmem_limit_bytes=_VMEM_LIMIT),
    )(x_rows, w, b.reshape(1, c))


def fourier_layer(x, dft, idft, w_ri, w_conv, b_conv, *, modes, apply_act,
                  compute_dtype=jnp.float32):
    batch, length, cin = x.shape
    cout = w_conv.shape[1]
    kernel = functools.partial(_fourier_layer_kernel, modes=modes, cin=cin,
                               cout=cout, apply_act=apply_act,
                               compute_dtype=compute_dtype)
    return pl.pallas_call(
        kernel,
        out_shape=jax.ShapeDtypeStruct((batch, length, cout), jnp.float32),
        grid=(batch,),
        in_specs=[
            pl.BlockSpec((1, length, cin), lambda b: (b, 0, 0)),
            pl.BlockSpec((2 * modes, length), lambda b: (0, 0)),
            pl.BlockSpec((2 * cin, modes, 2 * cout), lambda b: (0, 0, 0)),
            pl.BlockSpec((length, 2 * modes), lambda b: (0, 0)),
            pl.BlockSpec((cin, cout), lambda b: (0, 0)),
            pl.BlockSpec((1, cout), lambda b: (0, 0)),
        ],
        out_specs=pl.BlockSpec((1, length, cout), lambda b: (b, 0, 0)),
        compiler_params=pltpu.CompilerParams(
            dimension_semantics=("parallel",),    # megacore: batch elements per TC
            vmem_limit_bytes=_VMEM_LIMIT),
    )(x, dft, w_ri, idft, w_conv, b_conv.reshape(1, cout))


def projection(x_rows, w1, b1, w2, b2, *, row_tile=512, compute_dtype=jnp.float32):
    rows, c = x_rows.shape
    f = w1.shape[1]
    o = w2.shape[1]
    tile = _pick_row_tile(rows, row_tile)
    kernel = functools.partial(_proj_kernel, compute_dtype=compute_dtype)
    return pl.pallas_call(
        kernel,
        out_shape=jax.ShapeDtypeStruct((rows, o), jnp.float32),
        grid=(rows // tile,),
        in_specs=[
            pl.BlockSpec((tile, c), lambda i: (i, 0)),
            pl.BlockSpec((c, f), lambda i: (0, 0)),
            pl.BlockSpec((1, f), lambda i: (0, 0)),
            pl.BlockSpec((f, o), lambda i: (0, 0)),
            pl.BlockSpec((1, o), lambda i: (0, 0)),
        ],
        out_specs=pl.BlockSpec((tile, o), lambda i: (i, 0)),
        compiler_params=pltpu.CompilerParams(
            dimension_semantics=("parallel",),
            vmem_limit_bytes=_VMEM_LIMIT),
    )(x_rows, w1, b1.reshape(1, f), w2, b2.reshape(1, o))


# ----------------------------------------------------------------------------
# FNO1d forward (only free reshapes + one tiny spatial pad remain in XLA)
# ----------------------------------------------------------------------------
def fno1d_forward(x, params, modes_list, pad_ratio, compute_dtype=jnp.float32):
    """x: (B, S, in_dim) -> (B, S, out_dim).  compute_dtype: dtype fed to the
    MXU; float32 matches the reference, jnp.bfloat16 gives ~2x MXU rate on
    v6e/v7x and halves weight/activation VMEM."""
    batch, size_1, in_dim = x.shape
    if max(pad_ratio) > 0:
        num_pad = [round(size_1 * r) for r in pad_ratio]
    else:
        num_pad = [0, 0]

    # lifting over flattened rows (B*S, in_dim) -> (B*S, C0), VPU only
    h = fc0(x.reshape(batch * size_1, in_dim), params["fc0_w"], params["fc0_b"])
    h = h.reshape(batch, size_1, -1)

    # pad the spatial axis (same semantics as the PyTorch add_padding)
    if max(num_pad) > 0:
        h = jnp.pad(h, ((0, 0), (num_pad[0], num_pad[1]), (0, 0)))
    length = h.shape[1]

    # Fourier blocks: one fused pallas_call per layer
    n_layers = len(params["layers"])
    for i, lp in enumerate(params["layers"]):
        dft, idft = _dft_matrices(length, modes_list[i])
        w_ri = _mix_weight(lp["sp_w_re"], lp["sp_w_im"])
        h = fourier_layer(h, dft, idft, w_ri, lp["w_w"], lp["w_b"],
                          modes=modes_list[i],
                          apply_act=(i != n_layers - 1),
                          compute_dtype=compute_dtype)

    # remove padding, then fused fc1 -> ReLU -> fc2 over flattened rows
    if max(num_pad) > 0:
        h = h[:, num_pad[0]:length - num_pad[1], :]
    width = h.shape[-1]
    out = projection(h.reshape(batch * size_1, width),
                     params["fc1_w"], params["fc1_b"],
                     params["fc2_w"], params["fc2_b"],
                     compute_dtype=compute_dtype)
    return out.reshape(batch, size_1, -1)


# ----------------------------------------------------------------------------
# Deterministic parameter init (shapes match the PyTorch module)
# ----------------------------------------------------------------------------
def init_params(key, modes_list, width=32, layers=None, fc_dim=128,
                in_dim=2, out_dim=1):
    if layers is None:
        layers = [width] * 4
    n_blocks = len(layers) - 1
    keys = iter(jax.random.split(key, 6 + 4 * n_blocks))

    params = {
        "fc0_w": 0.1 * jax.random.normal(next(keys), (in_dim, layers[0]), jnp.float32),
        "fc0_b": 0.1 * jax.random.normal(next(keys), (layers[0],), jnp.float32),
        "layers": [],
    }
    for i, (cin, cout) in enumerate(zip(layers, layers[1:])):
        scale = 1.0 / (cin * cout)
        params["layers"].append({
            # complex spectral weights, stored as (modes, Cin, Cout) re/im
            "sp_w_re": scale * jax.random.uniform(
                next(keys), (modes_list[i], cin, cout), jnp.float32),
            "sp_w_im": scale * jax.random.uniform(
                next(keys), (modes_list[i], cin, cout), jnp.float32),
            # 1x1 Conv1d weight (Cout, Cin, 1) -> stored transposed (Cin, Cout)
            "w_w": 0.1 * jax.random.normal(next(keys), (cin, cout), jnp.float32),
            "w_b": 0.1 * jax.random.normal(next(keys), (cout,), jnp.float32),
        })
    params["fc1_w"] = 0.1 * jax.random.normal(next(keys), (layers[-1], fc_dim), jnp.float32)
    params["fc1_b"] = 0.1 * jax.random.normal(next(keys), (fc_dim,), jnp.float32)
    params["fc2_w"] = 0.1 * jax.random.normal(next(keys), (fc_dim, out_dim), jnp.float32)
    params["fc2_b"] = 0.1 * jax.random.normal(next(keys), (out_dim,), jnp.float32)
    return params


# ----------------------------------------------------------------------------
# Pure-JAX FFT reference (mirrors the PyTorch module) -- only for the self-check
# ----------------------------------------------------------------------------
def _reference_forward(x, params, modes_list, pad_ratio):
    batch, size_1, _ = x.shape
    num_pad = [round(size_1 * r) for r in pad_ratio] if max(pad_ratio) > 0 else [0, 0]
    h = x @ params["fc0_w"] + params["fc0_b"]                     # (B, S, C)
    h = jnp.transpose(h, (0, 2, 1))                               # (B, C, S)
    if max(num_pad) > 0:
        h = jnp.pad(h, ((0, 0), (0, 0), (num_pad[0], num_pad[1])))
    length = h.shape[-1]
    n_layers = len(params["layers"])
    for i, lp in enumerate(params["layers"]):
        k = modes_list[i]
        w = (lp["sp_w_re"] + 1j * lp["sp_w_im"]).astype(jnp.complex64)   # (K,Cin,Cout)
        hf = jnp.fft.rfft(h, axis=-1)[:, :, :k]                   # (B, Cin, K)
        of = jnp.einsum("bik,kio->bok", hf, w)
        out_ft = jnp.zeros((h.shape[0], w.shape[-1], length // 2 + 1), jnp.complex64)
        out_ft = out_ft.at[:, :, :k].set(of)
        x1 = jnp.fft.irfft(out_ft, n=length, axis=-1)             # (B, Cout, L)
        x2 = jnp.einsum("bcl,co->bol", h, lp["w_w"]) + lp["w_b"][None, :, None]
        h = x1 + x2
        if i != n_layers - 1:
            h = jnp.maximum(h, 0.0)
    if max(num_pad) > 0:
        h = h[:, :, num_pad[0]:length - num_pad[1]]
    h = jnp.transpose(h, (0, 2, 1))                               # (B, S, C)
    h = jnp.maximum(h @ params["fc1_w"] + params["fc1_b"], 0.0)
    return h @ params["fc2_w"] + params["fc2_b"]


# ----------------------------------------------------------------------------
if __name__ == "__main__":
    B, S, in_dim = 2, 16, 2
    width = 32
    modes_list = [8, 8, 8]          # one per Fourier block (3 blocks for layers=[w]*4)
    pad_ratio = [0.0, 0.1]
    fc_dim, out_dim = 128, 1

    key = jax.random.PRNGKey(0)
    k_param, k_x = jax.random.split(key)
    params = init_params(k_param, modes_list, width=width,
                         fc_dim=fc_dim, in_dim=in_dim, out_dim=out_dim)
    x = jax.random.normal(k_x, (B, S, in_dim), jnp.float32)

    fwd = jax.jit(functools.partial(
        fno1d_forward, modes_list=modes_list, pad_ratio=pad_ratio))
    out = fwd(x, params)
    out = jax.block_until_ready(out)

    assert out.shape == (B, S, out_dim), out.shape
    assert out.dtype == jnp.float32

    # self-check against a plain-XLA FFT implementation of the same module
    with jax.default_matmul_precision("highest"):
        ref = _reference_forward(x, params, modes_list, pad_ratio)
    ref = jax.block_until_ready(ref)
    if not bool(jnp.allclose(out, ref, rtol=2e-2, atol=2e-3)):
        max_err = float(jnp.max(jnp.abs(out - ref)))
        raise AssertionError(
            f"Pallas FNO1d deviates from FFT reference (max abs err {max_err:.3e})")

    print("KERNEL_OK")
</pallas_src>

<mosaic_0001>
module attributes {stable_mosaic.version = 11 : i64} {
  func.func @_fc0_kernel(%arg0: i32, %arg1: memref<32x2xf32, #tpu.memory_space<vmem>>, %arg2: memref<2x32xf32, #tpu.memory_space<vmem>>, %arg3: memref<1x32xf32, #tpu.memory_space<vmem>>, %arg4: memref<32x32xf32, #tpu.memory_space<vmem>>) attributes {dimension_semantics = [#tpu.dimension_semantics<parallel>], iteration_bounds = array<i64: 1>, scalar_prefetch = 0 : i64, scratch_operands = 0 : i64, tpu.core_type = #tpu.core_type<tc>, window_params = [{transform_indices = @transform_0, window_bounds = array<i64: 32, 2>}, {pipeline_mode = #tpu.pipeline_mode<synchronous>, transform_indices = @transform_1, window_bounds = array<i64: 2, 32>}, {pipeline_mode = #tpu.pipeline_mode<synchronous>, transform_indices = @transform_2, window_bounds = array<i64: 1, 32>}, {transform_indices = @transform_3, window_bounds = array<i64: 32, 32>}]} {
    %c0 = arith.constant 0 : index
    %c0_0 = arith.constant 0 : index
    %0 = vector.load %arg1[%c0, %c0_0] : memref<32x2xf32, #tpu.memory_space<vmem>>, vector<32x1xf32>
    %c0_1 = arith.constant 0 : index
    %c0_2 = arith.constant 0 : index
    %1 = vector.load %arg2[%c0_1, %c0_2] : memref<2x32xf32, #tpu.memory_space<vmem>>, vector<1x32xf32>
    %2 = vector.broadcast %0 : vector<32x1xf32> to vector<32x32xf32>
    %3 = vector.broadcast %1 : vector<1x32xf32> to vector<32x32xf32>
    %4 = arith.mulf %2, %3 : vector<32x32xf32>
    %c0_3 = arith.constant 0 : index
    %c0_4 = arith.constant 0 : index
    %5 = vector.load %arg3[%c0_3, %c0_4] : memref<1x32xf32, #tpu.memory_space<vmem>>, vector<1x32xf32>
    %6 = vector.broadcast %5 : vector<1x32xf32> to vector<32x32xf32>
    %7 = arith.addf %4, %6 : vector<32x32xf32>
    %c0_5 = arith.constant 0 : index
    %c1 = arith.constant 1 : index
    %8 = vector.load %arg1[%c0_5, %c1] : memref<32x2xf32, #tpu.memory_space<vmem>>, vector<32x1xf32>
    %c1_6 = arith.constant 1 : index
    %c0_7 = arith.constant 0 : index
    %9 = vector.load %arg2[%c1_6, %c0_7] : memref<2x32xf32, #tpu.memory_space<vmem>>, vector<1x32xf32>
    %10 = vector.broadcast %8 : vector<32x1xf32> to vector<32x32xf32>
    %11 = vector.broadcast %9 : vector<1x32xf32> to vector<32x32xf32>
    %12 = arith.mulf %10, %11 : vector<32x32xf32>
    %13 = arith.addf %7, %12 : vector<32x32xf32>
    %c0_8 = arith.constant 0 : index
    %c0_9 = arith.constant 0 : index
    %14 = vector.load %arg4[%c0_8, %c0_9] : memref<32x32xf32, #tpu.memory_space<vmem>>, vector<32x32xf32>
    tpu.vector_store %arg4[%c0_8, %c0_9], %13 {strides = array<i32>} : memref<32x32xf32, #tpu.memory_space<vmem>>, vector<32x32xf32>,
    return
  }
  func.func @transform_0(%arg0: i32) -> (i32, i32) {
    %c0_i32 = arith.constant 0 : i32
    %c0_i32_0 = arith.constant 0 : i32
    return %arg0, %c0_i32 : i32, i32
  }
  func.func @transform_1(%arg0: i32) -> (i32, i32) {
    %c0_i32 = arith.constant 0 : i32
    %c0_i32_0 = arith.constant 0 : i32
    %c0_i32_1 = arith.constant 0 : i32
    return %c0_i32, %c0_i32_0 : i32, i32
  }
  func.func @transform_2(%arg0: i32) -> (i32, i32) {
    %c0_i32 = arith.constant 0 : i32
    %c0_i32_0 = arith.constant 0 : i32
    %c0_i32_1 = arith.constant 0 : i32
    return %c0_i32, %c0_i32_0 : i32, i32
  }
  func.func @transform_3(%arg0: i32) -> (i32, i32) {
    %c0_i32 = arith.constant 0 : i32
    %c0_i32_0 = arith.constant 0 : i32
    return %arg0, %c0_i32 : i32, i32
  }
}

module attributes {stable_mosaic.version = 11 : i64} {
  func.func @_fourier_layer_kernel(%arg0: i32, %arg1: memref<1x18x32xf32, #tpu.memory_space<vmem>>, %arg2: memref<16x18xf32, #tpu.memory_space<vmem>>, %arg3: memref<64x8x64xf32, #tpu.memory_space<vmem>>, %arg4: memref<18x16xf32, #tpu.memory_space<vmem>>, %arg5: memref<32x32xf32, #tpu.memory_space<vmem>>, %arg6: memref<1x32xf32, #tpu.memory_space<vmem>>, %arg7: memref<1x18x32xf32, #tpu.memory_space<vmem>>) attributes {dimension_semantics = [#tpu.dimension_semantics<parallel>], iteration_bounds = array<i64: 2>, scalar_prefetch = 0 : i64, scratch_operands = 0 : i64, tpu.core_type = #tpu.core_type<tc>, window_params = [{transform_indices = @transform_0, window_bounds = array<i64: 1, 18, 32>}, {pipeline_mode = #tpu.pipeline_mode<synchronous>, transform_indices = @transform_1, window_bounds = array<i64: 16, 18>}, {pipeline_mode = #tpu.pipeline_mode<synchronous>, transform_indices = @transform_2, window_bounds = array<i64: 64, 8, 64>}, {pipeline_mode = #tpu.pipeline_mode<synchronous>, transform_indices = @transform_3, window_bounds = array<i64: 18, 16>}, {pipeline_mode = #tpu.pipeline_mode<synchronous>, transform_indices = @transform_4, window_bounds = array<i64: 32, 32>}, {pipeline_mode = #tpu.pipeline_mode<synchronous>, transform_indices = @transform_5, window_bounds = array<i64: 1, 32>}, {transform_indices = @transform_6, window_bounds = array<i64: 1, 18, 32>}]} {
    %c0 = arith.constant 0 : index
    %c0_0 = arith.constant 0 : index
    %c0_1 = arith.constant 0 : index
    %0 = vector.load %arg1[%c0, %c0_0, %c0_1] : memref<1x18x32xf32, #tpu.memory_space<vmem>>, vector<1x18x32xf32>
    %1 = vector.shape_cast %0 : vector<1x18x32xf32> to vector<18x32xf32>
    %c0_2 = arith.constant 0 : index
    %c0_3 = arith.constant 0 : index
    %2 = vector.load %arg2[%c0_2, %c0_3] : memref<16x18xf32, #tpu.memory_space<vmem>>, vector<16x18xf32>
    %cst = arith.constant dense<0.000000e+00> : vector<16x32xf32>
    %3 = tpu.matmul %2, %1, %cst {dimension_numbers = #tpu.dot_dimension_numbers<[1], [0], [0], [1], [0, 0, 1, 1], [], []>} : vector<16x18xf32>, vector<18x32xf32>, vector<16x32xf32> -> vector<16x32xf32>
    %4 = vector.extract_strided_slice %3 {offsets = [0, 0], sizes = [8, 32], strides = [1, 1]} : vector<16x32xf32> to vector<8x32xf32>
    %5 = vector.extract_strided_slice %3 {offsets = [8, 0], sizes = [8, 32], strides = [1, 1]} : vector<16x32xf32> to vector<8x32xf32>
    %6 = vector.extract_strided_slice %4 {offsets = [0, 0], sizes = [8, 1], strides = [1, 1]} : vector<8x32xf32> to vector<8x1xf32>
    %c0_4 = arith.constant 0 : index
    %c0_5 = arith.constant 0 : index
    %c0_6 = arith.constant 0 : index
    %7 = vector.load %arg3[%c0_4, %c0_5, %c0_6] : memref<64x8x64xf32, #tpu.memory_space<vmem>>, vector<1x8x64xf32>
    %8 = vector.shape_cast %7 : vector<1x8x64xf32> to vector<8x64xf32>
    %9 = vector.broadcast %6 : vector<8x1xf32> to vector<8x64xf32>
    %10 = arith.mulf %9, %8 : vector<8x64xf32>
    %11 = vector.extract_strided_slice %5 {offsets = [0, 0], sizes = [8, 1], strides = [1, 1]} : vector<8x32xf32> to vector<8x1xf32>
    %c32 = arith.constant 32 : index
    %c0_7 = arith.constant 0 : index
    %c0_8 = arith.constant 0 : index
    %12 = vector.load %arg3[%c32, %c0_7, %c0_8] : memref<64x8x64xf32, #tpu.memory_space<vmem>>, vector<1x8x64xf32>
    %13 = vector.shape_cast %12 : vector<1x8x64xf32> to vector<8x64xf32>
    %14 = vector.broadcast %11 : vector<8x1xf32> to vector<8x64xf32>
    %15 = arith.mulf %14, %13 : vector<8x64xf32>
    %16 = vector.extract_strided_slice %4 {offsets = [0, 1], sizes = [8, 1], strides = [1, 1]} : vector<8x32xf32> to vector<8x1xf32>
    %c1 = arith.constant 1 : index
    %c0_9 = arith.constant 0 : index
    %c0_10 = arith.constant 0 : index
    %17 = vector.load %arg3[%c1, %c0_9, %c0_10] : memref<64x8x64xf32, #tpu.memory_space<vmem>>, vector<1x8x64xf32>
    %18 = vector.shape_cast %17 : vector<1x8x64xf32> to vector<8x64xf32>
    %19 = vector.broadcast %16 : vector<8x1xf32> to vector<8x64xf32>
    %20 = arith.mulf %19, %18 : vector<8x64xf32>
    %21 = arith.addf %10, %20 : vector<8x64xf32>
    %22 = vector.extract_strided_slice %5 {offsets = [0, 1], sizes = [8, 1], strides = [1, 1]} : vector<8x32xf32> to vector<8x1xf32>
    %c33 = arith.constant 33 : index
    %c0_11 = arith.constant 0 : index
    %c0_12 = arith.constant 0 : index
    %23 = vector.load %arg3[%c33, %c0_11, %c0_12] : memref<64x8x64xf32, #tpu.memory_space<vmem>>, vector<1x8x64xf32>
    %24 = vector.shape_cast %23 : vector<1x8x64xf32> to vector<8x64xf32>
    %25 = vector.broadcast %22 : vector<8x1xf32> to vector<8x64xf32>
    %26 = arith.mulf %25, %24 : vector<8x64xf32>
    %27 = arith.addf %15, %26 : vector<8x64xf32>
    %28 = vector.extract_strided_slice %4 {offsets = [0, 2], sizes = [8, 1], strides = [1, 1]} : vector<8x32xf32> to vector<8x1xf32>
    %c2 = arith.constant 2 : index
    %c0_13 = arith.constant 0 : index
    %c0_14 = arith.constant 0 : index
    %29 = vector.load %arg3[%c2, %c0_13, %c0_14] : memref<64x8x64xf32, #tpu.memory_space<vmem>>, vector<1x8x64xf32>
    %30 = vector.shape_cast %29 : vector<1x8x64xf32> to vector<8x64xf32>
    %31 = vector.broadcast %28 : vector<8x1xf32> to vector<8x64xf32>
    %32 = arith.mulf %31, %30 : vector<8x64xf32>
    %33 = arith.addf %21, %32 : vector<8x64xf32>
    %34 = vector.extract_strided_slice %5 {offsets = [0, 2], sizes = [8, 1], strides = [1, 1]} : vector<8x32xf32> to vector<8x1xf32>
    %c34 = arith.constant 34 : index
    %c0_15 = arith.constant 0 : index
    %c0_16 = arith.constant 0 : index
    %35 = vector.load %arg3[%c34, %c0_15, %c0_16] : memref<64x8x64xf32, #tpu.memory_space<vmem>>, vector<1x8x64xf32>
    %36 = vector.shape_cast %35 : vector<1x8x64xf32> to vector<8x64xf32>
    %37 = vector.broadcast %34 : vector<8x1xf32> to vector<8x64xf32>
    %38 = arith.mulf %37, %36 : vector<8x64xf32>
    %39 = arith.addf %27, %38 : vector<8x64xf32>
    %40 = vector.extract_strided_slice %4 {offsets = [0, 3], sizes = [8, 1], strides = [1, 1]} : vector<8x32xf32> to vector<8x1xf32>
    %c3 = arith.constant 3 : index
    %c0_17 = arith.constant 0 : index
    %c0_18 = arith.constant 0 : index
    %41 = vector.load %arg3[%c3, %c0_17, %c0_18] : memref<64x8x64xf32, #tpu.memory_space<vmem>>, vector<1x8x64xf32>
    %42 = vector.shape_cast %41 : vector<1x8x64xf32> to vector<8x64xf32>
    %43 = vector.broadcast %40 : vector<8x1xf32> to vector<8x64xf32>
    %44 = arith.mulf %43, %42 : vector<8x64xf32>
    %45 = arith.addf %33, %44 : vector<8x64xf32>
    %46 = vector.extract_strided_slice %5 {offsets = [0, 3], sizes = [8, 1], strides = [1, 1]} : vector<8x32xf32> to vector<8x1xf32>
    %c35 = arith.constant 35 : index
    %c0_19 = arith.constant 0 : index
    %c0_20 = arith.constant 0 : index
    %47 = vector.load %arg3[%c35, %c0_19, %c0_20] : memref<64x8x64xf32, #tpu.memory_space<vmem>>, vector<1x8x64xf32>
    %48 = vector.shape_cast %47 : vector<1x8x64xf32> to vector<8x64xf32>
    %49 = vector.broadcast %46 : vector<8x1xf32> to vector<8x64xf32>
    %50 = arith.mulf %49, %48 : vector<8x64xf32>
    %51 = arith.addf %39, %50 : vector<8x64xf32>
    %52 = vector.extract_strided_slice %4 {offsets = [0, 4], sizes = [8, 1], strides = [1, 1]} : vector<8x32xf32> to vector<8x1xf32>
    %c4 = arith.constant 4 : index
    %c0_21 = arith.constant 0 : index
    %c0_22 = arith.constant 0 : index
    %53 = vector.load %arg3[%c4, %c0_21, %c0_22] : memref<64x8x64xf32, #tpu.memory_space<vmem>>, vector<1x8x64xf32>
    %54 = vector.shape_cast %53 : vector<1x8x64xf32> to vector<8x64xf32>
    %55 = vector.broadcast %52 : vector<8x1xf32> to vector<8x64xf32>
    %56 = arith.mulf %55, %54 : vector<8x64xf32>
    %57 = arith.addf %45, %56 : vector<8x64xf32>
    %58 = vector.extract_strided_slice %5 {offsets = [0, 4], sizes = [8, 1], strides = [1, 1]} : vector<8x32xf32> to vector<8x1xf32>
    %c36 = arith.constant 36 : index
    %c0_23 = arith.constant 0 : index
    %c0_24 = arith.constant 0 : index
    %59 = vector.load %arg3[%c36, %c0_23, %c0_24] : memref<64x8x64xf32, #tpu.memory_space<vmem>>, vector<1x8x64xf32>
    %60 = vector.shape_cast %59 : vector<1x8x64xf32> to vector<8x64xf32>
    %61 = vector.broadcast %58 : vector<8x1xf32> to vector<8x64xf32>
    %62 = arith.mulf %61, %60 : vector<8x64xf32>
    %63 = arith.addf %51, %62 : vector<8x64xf32>
    %64 = vector.extract_strided_slice %4 {offsets = [0, 5], sizes = [8, 1], strides = [1, 1]} : vector<8x32xf32> to vector<8x1xf32>
    %c5 = arith.constant 5 : index
    %c0_25 = arith.constant 0 : index
    %c0_26 = arith.constant 0 : index
    %65 = vector.load %arg3[%c5, %c0_25, %c0_26] : memref<64x8x64xf32, #tpu.memory_space<vmem>>, vector<1x8x64xf32>
    %66 = vector.shape_cast %65 : vector<1x8x64xf32> to vector<8x64xf32>
    %67 = vector.broadcast %64 : vector<8x1xf32> to vector<8x64xf32>
    %68 = arith.mulf %67, %66 : vector<8x64xf32>
    %69 = arith.addf %57, %68 : vector<8x64xf32>
    %70 = vector.extract_strided_slice %5 {offsets = [0, 5], sizes = [8, 1], strides = [1, 1]} : vector<8x32xf32> to vector<8x1xf32>
    %c37 = arith.constant 37 : index
    %c0_27 = arith.constant 0 : index
    %c0_28 = arith.constant 0 : index
    %71 = vector.load %arg3[%c37, %c0_27, %c0_28] : memref<64x8x64xf32, #tpu.memory_space<vmem>>, vector<1x8x64xf32>
    %72 = vector.shape_cast %71 : vector<1x8x64xf32> to vector<8x64xf32>
    %73 = vector.broadcast %70 : vector<8x1xf32> to vector<8x64xf32>
    %74 = arith.mulf %73, %72 : vector<8x64xf32>
    %75 = arith.addf %63, %74 : vector<8x64xf32>
    %76 = vector.extract_strided_slice %4 {offsets = [0, 6], sizes = [8, 1], strides = [1, 1]} : vector<8x32xf32> to vector<8x1xf32>
    %c6 = arith.constant 6 : index
    %c0_29 = arith.constant 0 : index
    %c0_30 = arith.constant 0 : index
    %77 = vector.load %arg3[%c6, %c0_29, %c0_30] : memref<64x8x64xf32, #tpu.memory_space<vmem>>, vector<1x8x64xf32>
    %78 = vector.shape_cast %77 : vector<1x8x64xf32> to vector<8x64xf32>
    %79 = vector.broadcast %76 : vector<8x1xf32> to vector<8x64xf32>
    %80 = arith.mulf %79, %78 : vector<8x64xf32>
    %81 = arith.addf %69, %80 : vector<8x64xf32>
    %82 = vector.extract_strided_slice %5 {offsets = [0, 6], sizes = [8, 1], strides = [1, 1]} : vector<8x32xf32> to vector<8x1xf32>
    %c38 = arith.constant 38 : index
    %c0_31 = arith.constant 0 : index
    %c0_32 = arith.constant 0 : index
    %83 = vector.load %arg3[%c38, %c0_31, %c0_32] : memref<64x8x64xf32, #tpu.memory_space<vmem>>, vector<1x8x64xf32>
    %84 = vector.shape_cast %83 : vector<1x8x64xf32> to vector<8x64xf32>
    %85 = vector.broadcast %82 : vector<8x1xf32> to vector<8x64xf32>
    %86 = arith.mulf %85, %84 : vector<8x64xf32>
    %87 = arith.addf %75, %86 : vector<8x64xf32>
    %88 = vector.extract_strided_slice %4 {offsets = [0, 7], sizes = [8, 1], strides = [1, 1]} : vector<8x32xf32> to vector<8x1xf32>
    %c7 = arith.constant 7 : index
    %c0_33 = arith.constant 0 : index
    %c0_34 = arith.constant 0 : index
    %89 = vector.load %arg3[%c7, %c0_33, %c0_34] : memref<64x8x64xf32, #tpu.memory_space<vmem>>, vector<1x8x64xf32>
    %90 = vector.shape_cast %89 : vector<1x8x64xf32> to vector<8x64xf32>
    %91 = vector.broadcast %88 : vector<8x1xf32> to vector<8x64xf32>
    %92 = arith.mulf %91, %90 : vector<8x64xf32>
    %93 = arith.addf %81, %92 : vector<8x64xf32>
    %94 = vector.extract_strided_slice %5 {offsets = [0, 7], sizes = [8, 1], strides = [1, 1]} : vector<8x32xf32> to vector<8x1xf32>
    %c39 = arith.constant 39 : index
    %c0_35 = arith.constant 0 : index
    %c0_36 = arith.constant 0 : index
    %95 = vector.load %arg3[%c39, %c0_35, %c0_36] : memref<64x8x64xf32, #tpu.memory_space<vmem>>, vector<1x8x64xf32>
    %96 = vector.shape_cast %95 : vector<1x8x64xf32> to vector<8x64xf32>
    %97 = vector.broadcast %94 : vector<8x1xf32> to vector<8x64xf32>
    %98 = arith.mulf %97, %96 : vector<8x64xf32>
    %99 = arith.addf %87, %98 : vector<8x64xf32>
    %100 = vector.extract_strided_slice %4 {offsets = [0, 8], sizes = [8, 1], strides = [1, 1]} : vector<8x32xf32> to vector<8x1xf32>
    %c8 = arith.constant 8 : index
    %c0_37 = arith.constant 0 : index
    %c0_38 = arith.constant 0 : index
    %101 = vector.load %arg3[%c8, %c0_37, %c0_38] : memref<64x8x64xf32, #tpu.memory_space<vmem>>, vector<1x8x64xf32>
    %102 = vector.shape_cast %101 : vector<1x8x64xf32> to vector<8x64xf32>
    %103 = vector.broadcast %100 : vector<8x1xf32> to vector<8x64xf32>
    %104 = arith.mulf %103, %102 : vector<8x64xf32>
    %105 = arith.addf %93, %104 : vector<8x64xf32>
    %106 = vector.extract_strided_slice %5 {offsets = [0, 8], sizes = [8, 1], strides = [1, 1]} : vector<8x32xf32> to vector<8x1xf32>
    %c40 = arith.constant 40 : index
    %c0_39 = arith.constant 0 : index
    %c0_40 = arith.constant 0 : index
    %107 = vector.load %arg3[%c40, %c0_39, %c0_40] : memref<64x8x64xf32, #tpu.memory_space<vmem>>, vector<1x8x64xf32>
    %108 = vector.shape_cast %107 : vector<1x8x64xf32> to vector<8x64xf32>
    %109 = vector.broadcast %106 : vector<8x1xf32> to vector<8x64xf32>
    %110 = arith.mulf %109, %108 : vector<8x64xf32>
    %111 = arith.addf %99, %110 : vector<8x64xf32>
    %112 = vector.extract_strided_slice %4 {offsets = [0, 9], sizes = [8, 1], strides = [1, 1]} : vector<8x32xf32> to vector<8x1xf32>
    %c9 = arith.constant 9 : index
    %c0_41 = arith.constant 0 : index
    %c0_42 = arith.constant 0 : index
    %113 = vector.load %arg3[%c9, %c0_41, %c0_42] : memref<64x8x64xf32, #tpu.memory_space<vmem>>, vector<1x8x64xf32>
    %114 = vector.shape_cast %113 : vector<1x8x64xf32> to vector<8x64xf32>
    %115 = vector.broadcast %112 : vector<8x1xf32> to vector<8x64xf32>
    %116 = arith.mulf %115, %114 : vector<8x64xf32>
    %117 = arith.addf %105, %116 : vector<8x64xf32>
    %118 = vector.extract_strided_slice %5 {offsets = [0, 9], sizes = [8, 1], strides = [1, 1]} : vector<8x32xf32> to vector<8x1xf32>
    %c41 = arith.constant 41 : index
    %c0_43 = arith.constant 0 : index
    %c0_44 = arith.constant 0 : index
    %119 = vector.load %arg3[%c41, %c0_43, %c0_44] : memref<64x8x64xf32, #tpu.memory_space<vmem>>, vector<1x8x64xf32>
    %120 = vector.shape_cast %119 : vector<1x8x64xf32> to vector<8x64xf32>
    %121 = vector.broadcast %118 : vector<8x1xf32> to vector<8x64xf32>
    %122 = arith.mulf %121, %120 : vector<8x64xf32>
    %123 = arith.addf %111, %122 : vector<8x64xf32>
    %124 = vector.extract_strided_slice %4 {offsets = [0, 10], sizes = [8, 1], strides = [1, 1]} : vector<8x32xf32> to vector<8x1xf32>
    %c10 = arith.constant 10 : index
    %c0_45 = arith.constant 0 : index
    %c0_46 = arith.constant 0 : index
    %125 = vector.load %arg3[%c10, %c0_45, %c0_46] : memref<64x8x64xf32, #tpu.memory_space<vmem>>, vector<1x8x64xf32>
    %126 = vector.shape_cast %125 : vector<1x8x64xf32> to vector<8x64xf32>
    %127 = vector.broadcast %124 : vector<8x1xf32> to vector<8x64xf32>
    %128 = arith.mulf %127, %126 : vector<8x64xf32>
    %129 = arith.addf %117, %128 : vector<8x64xf32>
    %130 = vector.extract_strided_slice %5 {offsets = [0, 10], sizes = [8, 1], strides = [1, 1]} : vector<8x32xf32> to vector<8x1xf32>
    %c42 = arith.constant 42 : index
    %c0_47 = arith.constant 0 : index
    %c0_48 = arith.constant 0 : index
    %131 = vector.load %arg3[%c42, %c0_47, %c0_48] : memref<64x8x64xf32, #tpu.memory_space<vmem>>, vector<1x8x64xf32>
    %132 = vector.shape_cast %131 : vector<1x8x64xf32> to vector<8x64xf32>
    %133 = vector.broadcast %130 : vector<8x1xf32> to vector<8x64xf32>
    %134 = arith.mulf %133, %132 : vector<8x64xf32>
    %135 = arith.addf %123, %134 : vector<8x64xf32>
    %136 = vector.extract_strided_slice %4 {offsets = [0, 11], sizes = [8, 1], strides = [1, 1]} : vector<8x32xf32> to vector<8x1xf32>
    %c11 = arith.constant 11 : index
    %c0_49 = arith.constant 0 : index
    %c0_50 = arith.constant 0 : index
    %137 = vector.load %arg3[%c11, %c0_49, %c0_50] : memref<64x8x64xf32, #tpu.memory_space<vmem>>, vector<1x8x64xf32>
    %138 = vector.shape_cast %137 : vector<1x8x64xf32> to vector<8x64xf32>
    %139 = vector.broadcast %136 : vector<8x1xf32> to vector<8x64xf32>
    %140 = arith.mulf %139, %138 : vector<8x64xf32>
    %141 = arith.addf %129, %140 : vector<8x64xf32>
    %142 = vector.extract_strided_slice %5 {offsets = [0, 11], sizes = [8, 1], strides = [1, 1]} : vector<8x32xf32> to vector<8x1xf32>
    %c43 = arith.constant 43 : index
    %c0_51 = arith.constant 0 : index
    %c0_52 = arith.constant 0 : index
    %143 = vector.load %arg3[%c43, %c0_51, %c0_52] : memref<64x8x64xf32, #tpu.memory_space<vmem>>, vector<1x8x64xf32>
    %144 = vector.shape_cast %143 : vector<1x8x64xf32> to vector<8x64xf32>
    %145 = vector.broadcast %142 : vector<8x1xf32> to vector<8x64xf32>
    %146 = arith.mulf %145, %144 : vector<8x64xf32>
    %147 = arith.addf %135, %146 : vector<8x64xf32>
    %148 = vector.extract_strided_slice %4 {offsets = [0, 12], sizes = [8, 1], strides = [1, 1]} : vector<8x32xf32> to vector<8x1xf32>
    %c12 = arith.constant 12 : index
    %c0_53 = arith.constant 0 : index
    %c0_54 = arith.constant 0 : index
    %149 = vector.load %arg3[%c12, %c0_53, %c0_54] : memref<64x8x64xf32, #tpu.memory_space<vmem>>, vector<1x8x64xf32>
    %150 = vector.shape_cast %149 : vector<1x8x64xf32> to vector<8x64xf32>
    %151 = vector.broadcast %148 : vector<8x1xf32> to vector<8x64xf32>
    %152 = arith.mulf %151, %150 : vector<8x64xf32>
    %153 = arith.addf %141, %152 : vector<8x64xf32>
    %154 = vector.extract_strided_slice %5 {offsets = [0, 12], sizes = [8, 1], strides = [1, 1]} : vector<8x32xf32> to vector<8x1xf32>
    %c44 = arith.constant 44 : index
    %c0_55 = arith.constant 0 : index
    %c0_56 = arith.constant 0 : index
    %155 = vector.load %arg3[%c44, %c0_55, %c0_56] : memref<64x8x64xf32, #tpu.memory_space<vmem>>, vector<1x8x64xf32>
    %156 = vector.shape_cast %155 : vector<1x8x64xf32> to vector<8x64xf32>
    %157 = vector.broadcast %154 : vector<8x1xf32> to vector<8x64xf32>
    %158 = arith.mulf %157, %156 : vector<8x64xf32>
    %159 = arith.addf %147, %158 : vector<8x64xf32>
    %160 = vector.extract_strided_slice %4 {offsets = [0, 13], sizes = [8, 1], strides = [1, 1]} : vector<8x32xf32> to vector<8x1xf32>
    %c13 = arith.constant 13 : index
    %c0_57 = arith.constant 0 : index
    %c0_58 = arith.constant 0 : index
    %161 = vector.load %arg3[%c13, %c0_57, %c0_58] : memref<64x8x64xf32, #tpu.memory_space<vmem>>, vector<1x8x64xf32>
    %162 = vector.shape_cast %161 : vector<1x8x64xf32> to vector<8x64xf32>
    %163 = vector.broadcast %160 : vector<8x1xf32> to vector<8x64xf32>
    %164 = arith.mulf %163, %162 : vector<8x64xf32>
    %165 = arith.addf %153, %164 : vector<8x64xf32>
    %166 = vector.extract_strided_slice %5 {offsets = [0, 13], sizes = [8, 1], strides = [1, 1]} : vector<8x32xf32> to vector<8x1xf32>
    %c45 = arith.constant 45 : index
    %c0_59 = arith.constant 0 : index
    %c0_60 = arith.constant 0 : index
    %167 = vector.load %arg3[%c45, %c0_59, %c0_60] : memref<64x8x64xf32, #tpu.memory_space<vmem>>, vector<1x8x64xf32>
    %168 = vector.shape_cast %167 : vector<1x8x64xf32> to vector<8x64xf32>
    %169 = vector.broadcast %166 : vector<8x1xf32> to vector<8x64xf32>
    %170 = arith.mulf %169, %168 : vector<8x64xf32>
    %171 = arith.addf %159, %170 : vector<8x64xf32>
    %172 = vector.extract_strided_slice %4 {offsets = [0, 14], sizes = [8, 1], strides = [1, 1]} : vector<8x32xf32> to vector<8x1xf32>
    %c14 = arith.constant 14 : index
    %c0_61 = arith.constant 0 : index
    %c0_62 = arith.constant 0 : index
    %173 = vector.load %arg3[%c14, %c0_61, %c0_62] : memref<64x8x64xf32, #tpu.memory_space<vmem>>, vector<1x8x64xf32>
    %174 = vector.shape_cast %173 : vector<1x8x64xf32> to vector<8x64xf32>
    %175 = vector.broadcast %172 : vector<8x1xf32> to vector<8x64xf32>
    %176 = arith.mulf %175, %174 : vector<8x64xf32>
    %177 = arith.addf %165, %176 : vector<8x64xf32>
    %178 = vector.extract_strided_slice %5 {offsets = [0, 14], sizes = [8, 1], strides = [1, 1]} : vector<8x32xf32> to vector<8x1xf32>
    %c46 = arith.constant 46 : index
    %c0_63 = arith.constant 0 : index
    %c0_64 = arith.constant 0 : index
    %179 = vector.load %arg3[%c46, %c0_63, %c0_64] : memref<64x8x64xf32, #tpu.memory_space<vmem>>, vector<1x8x64xf32>
    %180 = vector.shape_cast %179 : vector<1x8x64xf32> to vector<8x64xf32>
    %181 = vector.broadcast %178 : vector<8x1xf32> to vector<8x64xf32>
    %182 = arith.mulf %181, %180 : vector<8x64xf32>
    %183 = arith.addf %171, %182 : vector<8x64xf32>
    %184 = vector.extract_strided_slice %4 {offsets = [0, 15], sizes = [8, 1], strides = [1, 1]} : vector<8x32xf32> to vector<8x1xf32>
    %c15 = arith.constant 15 : index
    %c0_65 = arith.constant 0 : index
    %c0_66 = arith.constant 0 : index
    %185 = vector.load %arg3[%c15, %c0_65, %c0_66] : memref<64x8x64xf32, #tpu.memory_space<vmem>>, vector<1x8x64xf32>
    %186 = vector.shape_cast %185 : vector<1x8x64xf32> to vector<8x64xf32>
    %187 = vector.broadcast %184 : vector<8x1xf32> to vector<8x64xf32>
    %188 = arith.mulf %187, %186 : vector<8x64xf32>
    %189 = arith.addf %177, %188 : vector<8x64xf32>
    %190 = vector.extract_strided_slice %5 {offsets = [0, 15], sizes = [8, 1], strides = [1, 1]} : vector<8x32xf32> to vector<8x1xf32>
    %c47 = arith.constant 47 : index
    %c0_67 = arith.constant 0 : index
    %c0_68 = arith.constant 0 : index
    %191 = vector.load %arg3[%c47, %c0_67, %c0_68] : memref<64x8x64xf32, #tpu.memory_space<vmem>>, vector<1x8x64xf32>
    %192 = vector.shape_cast %191 : vector<1x8x64xf32> to vector<8x64xf32>
    %193 = vector.broadcast %190 : vector<8x1xf32> to vector<8x64xf32>
    %194 = arith.mulf %193, %192 : vector<8x64xf32>
    %195 = arith.addf %183, %194 : vector<8x64xf32>
    %196 = vector.extract_strided_slice %4 {offsets = [0, 16], sizes = [8, 1], strides = [1, 1]} : vector<8x32xf32> to vector<8x1xf32>
    %c16 = arith.constant 16 : index
    %c0_69 = arith.constant 0 : index
    %c0_70 = arith.constant 0 : index
    %197 = vector.load %arg3[%c16, %c0_69, %c0_70] : memref<64x8x64xf32, #tpu.memory_space<vmem>>, vector<1x8x64xf32>
    %198 = vector.shape_cast %197 : vector<1x8x64xf32> to vector<8x64xf32>
    %199 = vector.broadcast %196 : vector<8x1xf32> to vector<8x64xf32>
    %200 = arith.mulf %199, %198 : vector<8x64xf32>
    %201 = arith.addf %189, %200 : vector<8x64xf32>
    %202 = vector.extract_strided_slice %5 {offsets = [0, 16], sizes = [8, 1], strides = [1, 1]} : vector<8x32xf32> to vector<8x1xf32>
    %c48 = arith.constant 48 : index
    %c0_71 = arith.constant 0 : index
    %c0_72 = arith.constant 0 : index
    %203 = vector.load %arg3[%c48, %c0_71, %c0_72] : memref<64x8x64xf32, #tpu.memory_space<vmem>>, vector<1x8x64xf32>
    %204 = vector.shape_cast %203 : vector<1x8x64xf32> to vector<8x64xf32>
    %205 = vector.broadcast %202 : vector<8x1xf32> to vector<8x64xf32>
    %206 = arith.mulf %205, %204 : vector<8x64xf32>
    %207 = arith.addf %195, %206 : vector<8x64xf32>
    %208 = vector.extract_strided_slice %4 {offsets = [0, 17], sizes = [8, 1], strides = [1, 1]} : vector<8x32xf32> to vector<8x1xf32>
    %c17 = arith.constant 17 : index
    %c0_73 = arith.constant 0 : index
    %c0_74 = arith.constant 0 : index
    %209 = vector.load %arg3[%c17, %c0_73, %c0_74] : memref<64x8x64xf32, #tpu.memory_space<vmem>>, vector<1x8x64xf32>
    %210 = vector.shape_cast %209 : vector<1x8x64xf32> to vector<8x64xf32>
    %211 = vector.broadcast %208 : vector<8x1xf32> to vector<8x64xf32>
    %212 = arith.mulf %211, %210 : vector<8x64xf32>
    %213 = arith.addf %201, %212 : vector<8x64xf32>
    %214 = vector.extract_strided_slice %5 {offsets = [0, 17], sizes = [8, 1], strides = [1, 1]} : vector<8x32xf32> to vector<8x1xf32>
    %c49 = arith.constant 49 : index
    %c0_75 = arith.constant 0 : index
    %c0_76 = arith.constant 0 : index
    %215 = vector.load %arg3[%c49, %c0_75, %c0_76] : memref<64x8x64xf32, #tpu.memory_space<vmem>>, vector<1x8x64xf32>
    %216 = vector.shape_cast %215 : vector<1x8x64xf32> to vector<8x64xf32>
    %217 = vector.broadcast %214 : vector<8x1xf32> to vector<8x64xf32>
    %218 = arith.mulf %217, %216 : vector<8x64xf32>
    %219 = arith.addf %207, %218 : vector<8x64xf32>
    %220 = vector.extract_strided_slice %4 {offsets = [0, 18], sizes = [8, 1], strides = [1, 1]} : vector<8x32xf32> to vector<8x1xf32>
    %c18 = arith.constant 18 : index
    %c0_77 = arith.constant 0 : index
    %c0_78 = arith.constant 0 : index
    %221 = vector.load %arg3[%c18, %c0_77, %c0_78] : memref<64x8x64xf32, #tpu.memory_space<vmem>>, vector<1x8x64xf32>
    %222 = vector.shape_cast %221 : vector<1x8x64xf32> to vector<8x64xf32>
    %223 = vector.broadcast %220 : vector<8x1xf32> to vector<8x64xf32>
    %224 = arith.mulf %223, %222 : vector<8x64xf32>
    %225 = arith.addf %213, %224 : vector<8x64xf32>
    %226 = vector.extract_strided_slice %5 {offsets = [0, 18], sizes = [8, 1], strides = [1, 1]} : vector<8x32xf32> to vector<8x1xf32>
    %c50 = arith.constant 50 : index
    %c0_79 = arith.constant 0 : index
    %c0_80 = arith.constant 0 : index
    %227 = vector.load %arg3[%c50, %c0_79, %c0_80] : memref<64x8x64xf32, #tpu.memory_space<vmem>>, vector<1x8x64xf32>
    %228 = vector.shape_cast %227 : vector<1x8x64xf32> to vector<8x64xf32>
    %229 = vector.broadcast %226 : vector<8x1xf32> to vector<8x64xf32>
    %230 = arith.mulf %229, %228 : vector<8x64xf32>
    %231 = arith.addf %219, %230 : vector<8x64xf32>
    %232 = vector.extract_strided_slice %4 {offsets = [0, 19], sizes = [8, 1], strides = [1, 1]} : vector<8x32xf32> to vector<8x1xf32>
    %c19 = arith.constant 19 : index
    %c0_81 = arith.constant 0 : index
    %c0_82 = arith.constant 0 : index
    %233 = vector.load %arg3[%c19, %c0_81, %c0_82] : memref<64x8x64xf32, #tpu.memory_space<vmem>>, vector<1x8x64xf32>
    %234 = vector.shape_cast %233 : vector<1x8x64xf32> to vector<8x64xf32>
    %235 = vector.broadcast %232 : vector<8x1xf32> to vector<8x64xf32>
    %236 = arith.mulf %235, %234 : vector<8x64xf32>
    %237 = arith.addf %225, %236 : vector<8x64xf32>
    %238 = vector.extract_strided_slice %5 {offsets = [0, 19], sizes = [8, 1], strides = [1, 1]} : vector<8x32xf32> to vector<8x1xf32>
    %c51 = arith.constant 51 : index
    %c0_83 = arith.constant 0 : index
    %c0_84 = arith.constant 0 : index
    %239 = vector.load %arg3[%c51, %c0_83, %c0_84] : memref<64x8x64xf32, #tpu.memory_space<vmem>>, vector<1x8x64xf32>
    %240 = vector.shape_cast %239 : vector<1x8x64xf32> to vector<8x64xf32>
    %241 = vector.broadcast %238 : vector<8x1xf32> to vector<8x64xf32>
    %242 = arith.mulf %241, %240 : vector<8x64xf32>
    %243 = arith.addf %231, %242 : vector<8x64xf32>
    %244 = vector.extract_strided_slice %4 {offsets = [0, 20], sizes = [8, 1], strides = [1, 1]} : vector<8x32xf32> to vector<8x1xf32>
    %c20 = arith.constant 20 : index
    %c0_85 = arith.constant 0 : index
    %c0_86 = arith.constant 0 : index
    %245 = vector.load %arg3[%c20, %c0_85, %c0_86] : memref<64x8x64xf32, #tpu.memory_space<vmem>>, vector<1x8x64xf32>
    %246 = vector.shape_cast %245 : vector<1x8x64xf32> to vector<8x64xf32>
    %247 = vector.broadcast %244 : vector<8x1xf32> to vector<8x64xf32>
    %248 = arith.mulf %247, %246 : vector<8x64xf32>
    %249 = arith.addf %237, %248 : vector<8x64xf32>
    %250 = vector.extract_strided_slice %5 {offsets = [0, 20], sizes = [8, 1], strides = [1, 1]} : vector<8x32xf32> to vector<8x1xf32>
    %c52 = arith.constant 52 : index
    %c0_87 = arith.constant 0 : index
    %c0_88 = arith.constant 0 : index
    %251 = vector.load %arg3[%c52, %c0_87, %c0_88] : memref<64x8x64xf32, #tpu.memory_space<vmem>>, vector<1x8x64xf32>
    %252 = vector.shape_cast %251 : vector<1x8x64xf32> to vector<8x64xf32>
    %253 = vector.broadcast %250 : vector<8x1xf32> to vector<8x64xf32>
    %254 = arith.mulf %253, %252 : vector<8x64xf32>
    %255 = arith.addf %243, %254 : vector<8x64xf32>
    %256 = vector.extract_strided_slice %4 {offsets = [0, 21], sizes = [8, 1], strides = [1, 1]} : vector<8x32xf32> to vector<8x1xf32>
    %c21 = arith.constant 21 : index
    %c0_89 = arith.constant 0 : index
    %c0_90 = arith.constant 0 : index
    %257 = vector.load %arg3[%c21, %c0_89, %c0_90] : memref<64x8x64xf32, #tpu.memory_space<vmem>>, vector<1x8x64xf32>
    %258 = vector.shape_cast %257 : vector<1x8x64xf32> to vector<8x64xf32>
    %259 = vector.broadcast %256 : vector<8x1xf32> to vector<8x64xf32>
    %260 = arith.mulf %259, %258 : vector<8x64xf32>
    %261 = arith.addf %249, %260 : vector<8x64xf32>
    %262 = vector.extract_strided_slice %5 {offsets = [0, 21], sizes = [8, 1], strides = [1, 1]} : vector<8x32xf32> to vector<8x1xf32>
    %c53 = arith.constant 53 : index
    %c0_91 = arith.constant 0 : index
    %c0_92 = arith.constant 0 : index
    %263 = vector.load %arg3[%c53, %c0_91, %c0_92] : memref<64x8x64xf32, #tpu.memory_space<vmem>>, vector<1x8x64xf32>
    %264 = vector.shape_cast %263 : vector<1x8x64xf32> to vector<8x64xf32>
    %265 = vector.broadcast %262 : vector<8x1xf32> to vector<8x64xf32>
    %266 = arith.mulf %265, %264 : vector<8x64xf32>
    %267 = arith.addf %255, %266 : vector<8x64xf32>
    %268 = vector.extract_strided_slice %4 {offsets = [0, 22], sizes = [8, 1], strides = [1, 1]} : vector<8x32xf32> to vector<8x1xf32>
    %c22 = arith.constant 22 : index
    %c0_93 = arith.constant 0 : index
    %c0_94 = arith.constant 0 : index
    %269 = vector.load %arg3[%c22, %c0_93, %c0_94] : memref<64x8x64xf32, #tpu.memory_space<vmem>>, vector<1x8x64xf32>
    %270 = vector.shape_cast %269 : vector<1x8x64xf32> to vector<8x64xf32>
    %271 = vector.broadcast %268 : vector<8x1xf32> to vector<8x64xf32>
    %272 = arith.mulf %271, %270 : vector<8x64xf32>
    %273 = arith.addf %261, %272 : vector<8x64xf32>
    %274 = vector.extract_strided_slice %5 {offsets = [0, 22], sizes = [8, 1], strides = [1, 1]} : vector<8x32xf32> to vector<8x1xf32>
    %c54 = arith.constant 54 : index
    %c0_95 = arith.constant 0 : index
    %c0_96 = arith.constant 0 : index
    %275 = vector.load %arg3[%c54, %c0_95, %c0_96] : memref<64x8x64xf32, #tpu.memory_space<vmem>>, vector<1x8x64xf32>
    %276 = vector.shape_cast %275 : vector<1x8x64xf32> to vector<8x64xf32>
    %277 = vector.broadcast %274 : vector<8x1xf32> to vector<8x64xf32>
    %278 = arith.mulf %277, %276 : vector<8x64xf32>
    %279 = arith.addf %267, %278 : vector<8x64xf32>
    %280 = vector.extract_strided_slice %4 {offsets = [0, 23], sizes = [8, 1], strides = [1, 1]} : vector<8x32xf32> to vector<8x1xf32>
    %c23 = arith.constant 23 : index
    %c0_97 = arith.constant 0 : index
    %c0_98 = arith.constant 0 : index
    %281 = vector.load %arg3[%c23, %c0_97, %c0_98] : memref<64x8x64xf32, #tpu.memory_space<vmem>>, vector<1x8x64xf32>
    %282 = vector.shape_cast %281 : vector<1x8x64xf32> to vector<8x64xf32>
    %283 = vector.broadcast %280 : vector<8x1xf32> to vector<8x64xf32>
    %284 = arith.mulf %283, %282 : vector<8x64xf32>
    %285 = arith.addf %273, %284 : vector<8x64xf32>
    %286 = vector.extract_strided_slice %5 {offsets = [0, 23], sizes = [8, 1], strides = [1, 1]} : vector<8x32xf32> to vector<8x1xf32>
    %c55 = arith.constant 55 : index
    %c0_99 = arith.constant 0 : index
    %c0_100 = arith.constant 0 : index
    %287 = vector.load %arg3[%c55, %c0_99, %c0_100] : memref<64x8x64xf32, #tpu.memory_space<vmem>>, vector<1x8x64xf32>
    %288 = vector.shape_cast %287 : vector<1x8x64xf32> to vector<8x64xf32>
    %289 = vector.broadcast %286 : vector<8x1xf32> to vector<8x64xf32>
    %290 = arith.mulf %289, %288 : vector<8x64xf32>
    %291 = arith.addf %279, %290 : vector<8x64xf32>
    %292 = vector.extract_strided_slice %4 {offsets = [0, 24], sizes = [8, 1], strides = [1, 1]} : vector<8x32xf32> to vector<8x1xf32>
    %c24 = arith.constant 24 : index
    %c0_101 = arith.constant 0 : index
    %c0_102 = arith.constant 0 : index
    %293 = vector.load %arg3[%c24, %c0_101, %c0_102] : memref<64x8x64xf32, #tpu.memory_space<vmem>>, vector<1x8x64xf32>
    %294 = vector.shape_cast %293 : vector<1x8x64xf32> to vector<8x64xf32>
    %295 = vector.broadcast %292 : vector<8x1xf32> to vector<8x64xf32>
    %296 = arith.mulf %295, %294 : vector<8x64xf32>
    %297 = arith.addf %285, %296 : vector<8x64xf32>
    %298 = vector.extract_strided_slice %5 {offsets = [0, 24], sizes = [8, 1], strides = [1, 1]} : vector<8x32xf32> to vector<8x1xf32>
    %c56 = arith.constant 56 : index
    %c0_103 = arith.constant 0 : index
    %c0_104 = arith.constant 0 : index
    %299 = vector.load %arg3[%c56, %c0_103, %c0_104] : memref<64x8x64xf32, #tpu.memory_space<vmem>>, vector<1x8x64xf32>
    %300 = vector.shape_cast %299 : vector<1x8x64xf32> to vector<8x64xf32>
    %301 = vector.broadcast %298 : vector<8x1xf32> to vector<8x64xf32>
    %302 = arith.mulf %301, %300 : vector<8x64xf32>
    %303 = arith.addf %291, %302 : vector<8x64xf32>
    %304 = vector.extract_strided_slice %4 {offsets = [0, 25], sizes = [8, 1], strides = [1, 1]} : vector<8x32xf32> to vector<8x1xf32>
    %c25 = arith.constant 25 : index
    %c0_105 = arith.constant 0 : index
    %c0_106 = arith.constant 0 : index
    %305 = vector.load %arg3[%c25, %c0_105, %c0_106] : memref<64x8x64xf32, #tpu.memory_space<vmem>>, vector<1x8x64xf32>
    %306 = vector.shape_cast %305 : vector<1x8x64xf32> to vector<8x64xf32>
    %307 = vector.broadcast %304 : vector<8x1xf32> to vector<8x64xf32>
    %308 = arith.mulf %307, %306 : vector<8x64xf32>
    %309 = arith.addf %297, %308 : vector<8x64xf32>
    %310 = vector.extract_strided_slice %5 {offsets = [0, 25], sizes = [8, 1], strides = [1, 1]} : vector<8x32xf32> to vector<8x1xf32>
    %c57 = arith.constant 57 : index
    %c0_107 = arith.constant 0 : index
    %c0_108 = arith.constant 0 : index
    %311 = vector.load %arg3[%c57, %c0_107, %c0_108] : memref<64x8x64xf32, #tpu.memory_space<vmem>>, vector<1x8x64xf32>
    %312 = vector.shape_cast %311 : vector<1x8x64xf32> to vector<8x64xf32>
    %313 = vector.broadcast %310 : vector<8x1xf32> to vector<8x64xf32>
    %314 = arith.mulf %313, %312 : vector<8x64xf32>
    %315 = arith.addf %303, %314 : vector<8x64xf32>
    %316 = vector.extract_strided_slice %4 {offsets = [0, 26], sizes = [8, 1], strides = [1, 1]} : vector<8x32xf32> to vector<8x1xf32>
    %c26 = arith.constant 26 : index
    %c0_109 = arith.constant 0 : index
    %c0_110 = arith.constant 0 : index
    %317 = vector.load %arg3[%c26, %c0_109, %c0_110] : memref<64x8x64xf32, #tpu.memory_space<vmem>>, vector<1x8x64xf32>
    %318 = vector.shape_cast %317 : vector<1x8x64xf32> to vector<8x64xf32>
    %319 = vector.broadcast %316 : vector<8x1xf32> to vector<8x64xf32>
    %320 = arith.mulf %319, %318 : vector<8x64xf32>
    %321 = arith.addf %309, %320 : vector<8x64xf32>
    %322 = vector.extract_strided_slice %5 {offsets = [0, 26], sizes = [8, 1], strides = [1, 1]} : vector<8x32xf32> to vector<8x1xf32>
    %c58 = arith.constant 58 : index
    %c0_111 = arith.constant 0 : index
    %c0_112 = arith.constant 0 : index
    %323 = vector.load %arg3[%c58, %c0_111, %c0_112] : memref<64x8x64xf32, #tpu.memory_space<vmem>>, vector<1x8x64xf32>
    %324 = vector.shape_cast %323 : vector<1x8x64xf32> to vector<8x64xf32>
    %325 = vector.broadcast %322 : vector<8x1xf32> to vector<8x64xf32>
    %326 = arith.mulf %325, %324 : vector<8x64xf32>
    %327 = arith.addf %315, %326 : vector<8x64xf32>
    %328 = vector.extract_strided_slice %4 {offsets = [0, 27], sizes = [8, 1], strides = [1, 1]} : vector<8x32xf32> to vector<8x1xf32>
    %c27 = arith.constant 27 : index
    %c0_113 = arith.constant 0 : index
    %c0_114 = arith.constant 0 : index
    %329 = vector.load %arg3[%c27, %c0_113, %c0_114] : memref<64x8x64xf32, #tpu.memory_space<vmem>>, vector<1x8x64xf32>
    %330 = vector.shape_cast %329 : vector<1x8x64xf32> to vector<8x64xf32>
    %331 = vector.broadcast %328 : vector<8x1xf32> to vector<8x64xf32>
    %332 = arith.mulf %331, %330 : vector<8x64xf32>
    %333 = arith.addf %321, %332 : vector<8x64xf32>
    %334 = vector.extract_strided_slice %5 {offsets = [0, 27], sizes = [8, 1], strides = [1, 1]} : vector<8x32xf32> to vector<8x1xf32>
    %c59 = arith.constant 59 : index
    %c0_115 = arith.constant 0 : index
    %c0_116 = arith.constant 0 : index
    %335 = vector.load %arg3[%c59, %c0_115, %c0_116] : memref<64x8x64xf32, #tpu.memory_space<vmem>>, vector<1x8x64xf32>
    %336 = vector.shape_cast %335 : vector<1x8x64xf32> to vector<8x64xf32>
    %337 = vector.broadcast %334 : vector<8x1xf32> to vector<8x64xf32>
    %338 = arith.mulf %337, %336 : vector<8x64xf32>
    %339 = arith.addf %327, %338 : vector<8x64xf32>
    %340 = vector.extract_strided_slice %4 {offsets = [0, 28], sizes = [8, 1], strides = [1, 1]} : vector<8x32xf32> to vector<8x1xf32>
    %c28 = arith.constant 28 : index
    %c0_117 = arith.constant 0 : index
    %c0_118 = arith.constant 0 : index
    %341 = vector.load %arg3[%c28, %c0_117, %c0_118] : memref<64x8x64xf32, #tpu.memory_space<vmem>>, vector<1x8x64xf32>
    %342 = vector.shape_cast %341 : vector<1x8x64xf32> to vector<8x64xf32>
    %343 = vector.broadcast %340 : vector<8x1xf32> to vector<8x64xf32>
    %344 = arith.mulf %343, %342 : vector<8x64xf32>
    %345 = arith.addf %333, %344 : vector<8x64xf32>
    %346 = vector.extract_strided_slice %5 {offsets = [0, 28], sizes = [8, 1], strides = [1, 1]} : vector<8x32xf32> to vector<8x1xf32>
    %c60 = arith.constant 60 : index
    %c0_119 = arith.constant 0 : index
    %c0_120 = arith.constant 0 : index
    %347 = vector.load %arg3[%c60, %c0_119, %c0_120] : memref<64x8x64xf32, #tpu.memory_space<vmem>>, vector<1x8x64xf32>
    %348 = vector.shape_cast %347 : vector<1x8x64xf32> to vector<8x64xf32>
    %349 = vector.broadcast %346 : vector<8x1xf32> to vector<8x64xf32>
    %350 = arith.mulf %349, %348 : vector<8x64xf32>
    %351 = arith.addf %339, %350 : vector<8x64xf32>
    %352 = vector.extract_strided_slice %4 {offsets = [0, 29], sizes = [8, 1], strides = [1, 1]} : vector<8x32xf32> to vector<8x1xf32>
    %c29 = arith.constant 29 : index
    %c0_121 = arith.constant 0 : index
    %c0_122 = arith.constant 0 : index
    %353 = vector.load %arg3[%c29, %c0_121, %c0_122] : memref<64x8x64xf32, #tpu.memory_space<vmem>>, vector<1x8x64xf32>
    %354 = vector.shape_cast %353 : vector<1x8x64xf32> to vector<8x64xf32>
    %355 = vector.broadcast %352 : vector<8x1xf32> to vector<8x64xf32>
    %356 = arith.mulf %355, %354 : vector<8x64xf32>
    %357 = arith.addf %345, %356 : vector<8x64xf32>
    %358 = vector.extract_strided_slice %5 {offsets = [0, 29], sizes = [8, 1], strides = [1, 1]} : vector<8x32xf32> to vector<8x1xf32>
    %c61 = arith.constant 61 : index
    %c0_123 = arith.constant 0 : index
    %c0_124 = arith.constant 0 : index
    %359 = vector.load %arg3[%c61, %c0_123, %c0_124] : memref<64x8x64xf32, #tpu.memory_space<vmem>>, vector<1x8x64xf32>
    %360 = vector.shape_cast %359 : vector<1x8x64xf32> to vector<8x64xf32>
    %361 = vector.broadcast %358 : vector<8x1xf32> to vector<8x64xf32>
    %362 = arith.mulf %361, %360 : vector<8x64xf32>
    %363 = arith.addf %351, %362 : vector<8x64xf32>
    %364 = vector.extract_strided_slice %4 {offsets = [0, 30], sizes = [8, 1], strides = [1, 1]} : vector<8x32xf32> to vector<8x1xf32>
    %c30 = arith.constant 30 : index
    %c0_125 = arith.constant 0 : index
    %c0_126 = arith.constant 0 : index
    %365 = vector.load %arg3[%c30, %c0_125, %c0_126] : memref<64x8x64xf32, #tpu.memory_space<vmem>>, vector<1x8x64xf32>
    %366 = vector.shape_cast %365 : vector<1x8x64xf32> to vector<8x64xf32>
    %367 = vector.broadcast %364 : vector<8x1xf32> to vector<8x64xf32>
    %368 = arith.mulf %367, %366 : vector<8x64xf32>
    %369 = arith.addf %357, %368 : vector<8x64xf32>
    %370 = vector.extract_strided_slice %5 {offsets = [0, 30], sizes = [8, 1], strides = [1, 1]} : vector<8x32xf32> to vector<8x1xf32>
    %c62 = arith.constant 62 : index
    %c0_127 = arith.constant 0 : index
    %c0_128 = arith.constant 0 : index
    %371 = vector.load %arg3[%c62, %c0_127, %c0_128] : memref<64x8x64xf32, #tpu.memory_space<vmem>>, vector<1x8x64xf32>
    %372 = vector.shape_cast %371 : vector<1x8x64xf32> to vector<8x64xf32>
    %373 = vector.broadcast %370 : vector<8x1xf32> to vector<8x64xf32>
    %374 = arith.mulf %373, %372 : vector<8x64xf32>
    %375 = arith.addf %363, %374 : vector<8x64xf32>
    %376 = vector.extract_strided_slice %4 {offsets = [0, 31], sizes = [8, 1], strides = [1, 1]} : vector<8x32xf32> to vector<8x1xf32>
    %c31 = arith.constant 31 : index
    %c0_129 = arith.constant 0 : index
    %c0_130 = arith.constant 0 : index
    %377 = vector.load %arg3[%c31, %c0_129, %c0_130] : memref<64x8x64xf32, #tpu.memory_space<vmem>>, vector<1x8x64xf32>
    %378 = vector.shape_cast %377 : vector<1x8x64xf32> to vector<8x64xf32>
    %379 = vector.broadcast %376 : vector<8x1xf32> to vector<8x64xf32>
    %380 = arith.mulf %379, %378 : vector<8x64xf32>
    %381 = arith.addf %369, %380 : vector<8x64xf32>
    %382 = vector.extract_strided_slice %5 {offsets = [0, 31], sizes = [8, 1], strides = [1, 1]} : vector<8x32xf32> to vector<8x1xf32>
    %c63 = arith.constant 63 : index
    %c0_131 = arith.constant 0 : index
    %c0_132 = arith.constant 0 : index
    %383 = vector.load %arg3[%c63, %c0_131, %c0_132] : memref<64x8x64xf32, #tpu.memory_space<vmem>>, vector<1x8x64xf32>
    %384 = vector.shape_cast %383 : vector<1x8x64xf32> to vector<8x64xf32>
    %385 = vector.broadcast %382 : vector<8x1xf32> to vector<8x64xf32>
    %386 = arith.mulf %385, %384 : vector<8x64xf32>
    %387 = arith.addf %375, %386 : vector<8x64xf32>
    %388 = arith.addf %381, %387 : vector<8x64xf32>
    %389 = vector.extract_strided_slice %388 {offsets = [0, 0], sizes = [8, 32], strides = [1, 1]} : vector<8x64xf32> to vector<8x32xf32>
    %390 = vector.extract_strided_slice %388 {offsets = [0, 32], sizes = [8, 32], strides = [1, 1]} : vector<8x64xf32> to vector<8x32xf32>
    %391 = tpu.concatenate %389, %390 in 0 : vector<8x32xf32>, vector<8x32xf32> -> vector<16x32xf32>
    %c0_133 = arith.constant 0 : index
    %c0_134 = arith.constant 0 : index
    %392 = vector.load %arg4[%c0_133, %c0_134] : memref<18x16xf32, #tpu.memory_space<vmem>>, vector<18x16xf32>
    %cst_135 = arith.constant dense<0.000000e+00> : vector<18x32xf32>
    %393 = tpu.matmul %392, %391, %cst_135 {dimension_numbers = #tpu.dot_dimension_numbers<[1], [0], [0], [1], [0, 0, 1, 1], [], []>} : vector<18x16xf32>, vector<16x32xf32>, vector<18x32xf32> -> vector<18x32xf32>
    %c0_136 = arith.constant 0 : index
    %c0_137 = arith.constant 0 : index
    %394 = vector.load %arg5[%c0_136, %c0_137] : memref<32x32xf32, #tpu.memory_space<vmem>>, vector<32x32xf32>
    %cst_138 = arith.constant dense<0.000000e+00> : vector<18x32xf32>
    %395 = tpu.matmul %1, %394, %cst_138 {dimension_numbers = #tpu.dot_dimension_numbers<[1], [0], [0], [1], [0, 0, 1, 1], [], []>} : vector<18x32xf32>, vector<32x32xf32>, vector<18x32xf32> -> vector<18x32xf32>
    %c0_139 = arith.constant 0 : index
    %c0_140 = arith.constant 0 : index
    %396 = vector.load %arg6[%c0_139, %c0_140] : memref<1x32xf32, #tpu.memory_space<vmem>>, vector<1x32xf32>
    %397 = vector.broadcast %396 : vector<1x32xf32> to vector<18x32xf32>
    %398 = arith.addf %395, %397 : vector<18x32xf32>
    %399 = arith.addf %398, %393 : vector<18x32xf32>
    %cst_141 = arith.constant 0.000000e+00 : f32
    %400 = vector.broadcast %cst_141 : f32 to vector<18x32xf32>
    %401 = arith.maximumf %399, %400 : vector<18x32xf32>
    %c0_142 = arith.constant 0 : index
    %c0_143 = arith.constant 0 : index
    %c0_144 = arith.constant 0 : index
    %402 = vector.load %arg7[%c0_142, %c0_143, %c0_144] : memref<1x18x32xf32, #tpu.memory_space<vmem>>, vector<1x18x32xf32>
    %403 = vector.shape_cast %402 : vector<1x18x32xf32> to vector<18x32xf32>
    %404 = vector.shape_cast %401 : vector<18x32xf32> to vector<1x18x32xf32>
    tpu.vector_store %arg7[%c0_142, %c0_143, %c0_144], %404 {strides = array<i32>} : memref<1x18x32xf32, #tpu.memory_space<vmem>>, vector<1x18x32xf32>,
    return
  }
  func.func @transform_0(%arg0: i32) -> (i32, i32, i32) {
    %c0_i32 = arith.constant 0 : i32
    %c0_i32_0 = arith.constant 0 : i32
    %c0_i32_1 = arith.constant 0 : i32
    return %arg0, %c0_i32, %c0_i32_0 : i32, i32, i32
  }
  func.func @transform_1(%arg0: i32) -> (i32, i32) {
    %c0_i32 = arith.constant 0 : i32
    %c0_i32_0 = arith.constant 0 : i32
    %c0_i32_1 = arith.constant 0 : i32
    return %c0_i32, %c0_i32_0 : i32, i32
  }
  func.func @transform_2(%arg0: i32) -> (i32, i32, i32) {
    %c0_i32 = arith.constant 0 : i32
    %c0_i32_0 = arith.constant 0 : i32
    %c0_i32_1 = arith.constant 0 : i32
    %c0_i32_2 = arith.constant 0 : i32
    return %c0_i32, %c0_i32_0, %c0_i32_1 : i32, i32, i32
  }
  func.func @transform_3(%arg0: i32) -> (i32, i32) {
    %c0_i32 = arith.constant 0 : i32
    %c0_i32_0 = arith.constant 0 : i32
    %c0_i32_1 = arith.constant 0 : i32
    return %c0_i32, %c0_i32_0 : i32, i32
  }
  func.func @transform_4(%arg0: i32) -> (i32, i32) {
    %c0_i32 = arith.constant 0 : i32
    %c0_i32_0 = arith.constant 0 : i32
    %c0_i32_1 = arith.constant 0 : i32
    return %c0_i32, %c0_i32_0 : i32, i32
  }
  func.func @transform_5(%arg0: i32) -> (i32, i32) {
    %c0_i32 = arith.constant 0 : i32
    %c0_i32_0 = arith.constant 0 : i32
    %c0_i32_1 = arith.constant 0 : i32
    return %c0_i32, %c0_i32_0 : i32, i32
  }
  func.func @transform_6(%arg0: i32) -> (i32, i32, i32) {
    %c0_i32 = arith.constant 0 : i32
    %c0_i32_0 = arith.constant 0 : i32
    %c0_i32_1 = arith.constant 0 : i32
    return %arg0, %c0_i32, %c0_i32_0 : i32, i32, i32
  }
}

module attributes {stable_mosaic.version = 11 : i64} {
  func.func @_fourier_layer_kernel(%arg0: i32, %arg1: memref<1x18x32xf32, #tpu.memory_space<vmem>>, %arg2: memref<16x18xf32, #tpu.memory_space<vmem>>, %arg3: memref<64x8x64xf32, #tpu.memory_space<vmem>>, %arg4: memref<18x16xf32, #tpu.memory_space<vmem>>, %arg5: memref<32x32xf32, #tpu.memory_space<vmem>>, %arg6: memref<1x32xf32, #tpu.memory_space<vmem>>, %arg7: memref<1x18x32xf32, #tpu.memory_space<vmem>>) attributes {dimension_semantics = [#tpu.dimension_semantics<parallel>], iteration_bounds = array<i64: 2>, scalar_prefetch = 0 : i64, scratch_operands = 0 : i64, tpu.core_type = #tpu.core_type<tc>, window_params = [{transform_indices = @transform_0, window_bounds = array<i64: 1, 18, 32>}, {pipeline_mode = #tpu.pipeline_mode<synchronous>, transform_indices = @transform_1, window_bounds = array<i64: 16, 18>}, {pipeline_mode = #tpu.pipeline_mode<synchronous>, transform_indices = @transform_2, window_bounds = array<i64: 64, 8, 64>}, {pipeline_mode = #tpu.pipeline_mode<synchronous>, transform_indices = @transform_3, window_bounds = array<i64: 18, 16>}, {pipeline_mode = #tpu.pipeline_mode<synchronous>, transform_indices = @transform_4, window_bounds = array<i64: 32, 32>}, {pipeline_mode = #tpu.pipeline_mode<synchronous>, transform_indices = @transform_5, window_bounds = array<i64: 1, 32>}, {transform_indices = @transform_6, window_bounds = array<i64: 1, 18, 32>}]} {
    %c0 = arith.constant 0 : index
    %c0_0 = arith.constant 0 : index
    %c0_1 = arith.constant 0 : index
    %0 = vector.load %arg1[%c0, %c0_0, %c0_1] : memref<1x18x32xf32, #tpu.memory_space<vmem>>, vector<1x18x32xf32>
    %1 = vector.shape_cast %0 : vector<1x18x32xf32> to vector<18x32xf32>
    %c0_2 = arith.constant 0 : index
    %c0_3 = arith.constant 0 : index
    %2 = vector.load %arg2[%c0_2, %c0_3] : memref<16x18xf32, #tpu.memory_space<vmem>>, vector<16x18xf32>
    %cst = arith.constant dense<0.000000e+00> : vector<16x32xf32>
    %3 = tpu.matmul %2, %1, %cst {dimension_numbers = #tpu.dot_dimension_numbers<[1], [0], [0], [1], [0, 0, 1, 1], [], []>} : vector<16x18xf32>, vector<18x32xf32>, vector<16x32xf32> -> vector<16x32xf32>
    %4 = vector.extract_strided_slice %3 {offsets = [0, 0], sizes = [8, 32], strides = [1, 1]} : vector<16x32xf32> to vector<8x32xf32>
    %5 = vector.extract_strided_slice %3 {offsets = [8, 0], sizes = [8, 32], strides = [1, 1]} : vector<16x32xf32> to vector<8x32xf32>
    %6 = vector.extract_strided_slice %4 {offsets = [0, 0], sizes = [8, 1], strides = [1, 1]} : vector<8x32xf32> to vector<8x1xf32>
    %c0_4 = arith.constant 0 : index
    %c0_5 = arith.constant 0 : index
    %c0_6 = arith.constant 0 : index
    %7 = vector.load %arg3[%c0_4, %c0_5, %c0_6] : memref<64x8x64xf32, #tpu.memory_space<vmem>>, vector<1x8x64xf32>
    %8 = vector.shape_cast %7 : vector<1x8x64xf32> to vector<8x64xf32>
    %9 = vector.broadcast %6 : vector<8x1xf32> to vector<8x64xf32>
    %10 = arith.mulf %9, %8 : vector<8x64xf32>
    %11 = vector.extract_strided_slice %5 {offsets = [0, 0], sizes = [8, 1], strides = [1, 1]} : vector<8x32xf32> to vector<8x1xf32>
    %c32 = arith.constant 32 : index
    %c0_7 = arith.constant 0 : index
    %c0_8 = arith.constant 0 : index
    %12 = vector.load %arg3[%c32, %c0_7, %c0_8] : memref<64x8x64xf32, #tpu.memory_space<vmem>>, vector<1x8x64xf32>
    %13 = vector.shape_cast %12 : vector<1x8x64xf32> to vector<8x64xf32>
    %14 = vector.broadcast %11 : vector<8x1xf32> to vector<8x64xf32>
    %15 = arith.mulf %14, %13 : vector<8x64xf32>
    %16 = vector.extract_strided_slice %4 {offsets = [0, 1], sizes = [8, 1], strides = [1, 1]} : vector<8x32xf32> to vector<8x1xf32>
    %c1 = arith.constant 1 : index
    %c0_9 = arith.constant 0 : index
    %c0_10 = arith.constant 0 : index
    %17 = vector.load %arg3[%c1, %c0_9, %c0_10] : memref<64x8x64xf32, #tpu.memory_space<vmem>>, vector<1x8x64xf32>
    %18 = vector.shape_cast %17 : vector<1x8x64xf32> to vector<8x64xf32>
    %19 = vector.broadcast %16 : vector<8x1xf32> to vector<8x64xf32>
    %20 = arith.mulf %19, %18 : vector<8x64xf32>
    %21 = arith.addf %10, %20 : vector<8x64xf32>
    %22 = vector.extract_strided_slice %5 {offsets = [0, 1], sizes = [8, 1], strides = [1, 1]} : vector<8x32xf32> to vector<8x1xf32>
    %c33 = arith.constant 33 : index
    %c0_11 = arith.constant 0 : index
    %c0_12 = arith.constant 0 : index
    %23 = vector.load %arg3[%c33, %c0_11, %c0_12] : memref<64x8x64xf32, #tpu.memory_space<vmem>>, vector<1x8x64xf32>
    %24 = vector.shape_cast %23 : vector<1x8x64xf32> to vector<8x64xf32>
    %25 = vector.broadcast %22 : vector<8x1xf32> to vector<8x64xf32>
    %26 = arith.mulf %25, %24 : vector<8x64xf32>
    %27 = arith.addf %15, %26 : vector<8x64xf32>
    %28 = vector.extract_strided_slice %4 {offsets = [0, 2], sizes = [8, 1], strides = [1, 1]} : vector<8x32xf32> to vector<8x1xf32>
    %c2 = arith.constant 2 : index
    %c0_13 = arith.constant 0 : index
    %c0_14 = arith.constant 0 : index
    %29 = vector.load %arg3[%c2, %c0_13, %c0_14] : memref<64x8x64xf32, #tpu.memory_space<vmem>>, vector<1x8x64xf32>
    %30 = vector.shape_cast %29 : vector<1x8x64xf32> to vector<8x64xf32>
    %31 = vector.broadcast %28 : vector<8x1xf32> to vector<8x64xf32>
    %32 = arith.mulf %31, %30 : vector<8x64xf32>
    %33 = arith.addf %21, %32 : vector<8x64xf32>
    %34 = vector.extract_strided_slice %5 {offsets = [0, 2], sizes = [8, 1], strides = [1, 1]} : vector<8x32xf32> to vector<8x1xf32>
    %c34 = arith.constant 34 : index
    %c0_15 = arith.constant 0 : index
    %c0_16 = arith.constant 0 : index
    %35 = vector.load %arg3[%c34, %c0_15, %c0_16] : memref<64x8x64xf32, #tpu.memory_space<vmem>>, vector<1x8x64xf32>
    %36 = vector.shape_cast %35 : vector<1x8x64xf32> to vector<8x64xf32>
    %37 = vector.broadcast %34 : vector<8x1xf32> to vector<8x64xf32>
    %38 = arith.mulf %37, %36 : vector<8x64xf32>
    %39 = arith.addf %27, %38 : vector<8x64xf32>
    %40 = vector.extract_strided_slice %4 {offsets = [0, 3], sizes = [8, 1], strides = [1, 1]} : vector<8x32xf32> to vector<8x1xf32>
    %c3 = arith.constant 3 : index
    %c0_17 = arith.constant 0 : index
    %c0_18 = arith.constant 0 : index
    %41 = vector.load %arg3[%c3, %c0_17, %c0_18] : memref<64x8x64xf32, #tpu.memory_space<vmem>>, vector<1x8x64xf32>
    %42 = vector.shape_cast %41 : vector<1x8x64xf32> to vector<8x64xf32>
    %43 = vector.broadcast %40 : vector<8x1xf32> to vector<8x64xf32>
    %44 = arith.mulf %43, %42 : vector<8x64xf32>
    %45 = arith.addf %33, %44 : vector<8x64xf32>
    %46 = vector.extract_strided_slice %5 {offsets = [0, 3], sizes = [8, 1], strides = [1, 1]} : vector<8x32xf32> to vector<8x1xf32>
    %c35 = arith.constant 35 : index
    %c0_19 = arith.constant 0 : index
    %c0_20 = arith.constant 0 : index
    %47 = vector.load %arg3[%c35, %c0_19, %c0_20] : memref<64x8x64xf32, #tpu.memory_space<vmem>>, vector<1x8x64xf32>
    %48 = vector.shape_cast %47 : vector<1x8x64xf32> to vector<8x64xf32>
    %49 = vector.broadcast %46 : vector<8x1xf32> to vector<8x64xf32>
    %50 = arith.mulf %49, %48 : vector<8x64xf32>
    %51 = arith.addf %39, %50 : vector<8x64xf32>
    %52 = vector.extract_strided_slice %4 {offsets = [0, 4], sizes = [8, 1], strides = [1, 1]} : vector<8x32xf32> to vector<8x1xf32>
    %c4 = arith.constant 4 : index
    %c0_21 = arith.constant 0 : index
    %c0_22 = arith.constant 0 : index
    %53 = vector.load %arg3[%c4, %c0_21, %c0_22] : memref<64x8x64xf32, #tpu.memory_space<vmem>>, vector<1x8x64xf32>
    %54 = vector.shape_cast %53 : vector<1x8x64xf32> to vector<8x64xf32>
    %55 = vector.broadcast %52 : vector<8x1xf32> to vector<8x64xf32>
    %56 = arith.mulf %55, %54 : vector<8x64xf32>
    %57 = arith.addf %45, %56 : vector<8x64xf32>
    %58 = vector.extract_strided_slice %5 {offsets = [0, 4], sizes = [8, 1], strides = [1, 1]} : vector<8x32xf32> to vector<8x1xf32>
    %c36 = arith.constant 36 : index
    %c0_23 = arith.constant 0 : index
    %c0_24 = arith.constant 0 : index
    %59 = vector.load %arg3[%c36, %c0_23, %c0_24] : memref<64x8x64xf32, #tpu.memory_space<vmem>>, vector<1x8x64xf32>
    %60 = vector.shape_cast %59 : vector<1x8x64xf32> to vector<8x64xf32>
    %61 = vector.broadcast %58 : vector<8x1xf32> to vector<8x64xf32>
    %62 = arith.mulf %61, %60 : vector<8x64xf32>
    %63 = arith.addf %51, %62 : vector<8x64xf32>
    %64 = vector.extract_strided_slice %4 {offsets = [0, 5], sizes = [8, 1], strides = [1, 1]} : vector<8x32xf32> to vector<8x1xf32>
    %c5 = arith.constant 5 : index
    %c0_25 = arith.constant 0 : index
    %c0_26 = arith.constant 0 : index
    %65 = vector.load %arg3[%c5, %c0_25, %c0_26] : memref<64x8x64xf32, #tpu.memory_space<vmem>>, vector<1x8x64xf32>
    %66 = vector.shape_cast %65 : vector<1x8x64xf32> to vector<8x64xf32>
    %67 = vector.broadcast %64 : vector<8x1xf32> to vector<8x64xf32>
    %68 = arith.mulf %67, %66 : vector<8x64xf32>
    %69 = arith.addf %57, %68 : vector<8x64xf32>
    %70 = vector.extract_strided_slice %5 {offsets = [0, 5], sizes = [8, 1], strides = [1, 1]} : vector<8x32xf32> to vector<8x1xf32>
    %c37 = arith.constant 37 : index
    %c0_27 = arith.constant 0 : index
    %c0_28 = arith.constant 0 : index
    %71 = vector.load %arg3[%c37, %c0_27, %c0_28] : memref<64x8x64xf32, #tpu.memory_space<vmem>>, vector<1x8x64xf32>
    %72 = vector.shape_cast %71 : vector<1x8x64xf32> to vector<8x64xf32>
    %73 = vector.broadcast %70 : vector<8x1xf32> to vector<8x64xf32>
    %74 = arith.mulf %73, %72 : vector<8x64xf32>
    %75 = arith.addf %63, %74 : vector<8x64xf32>
    %76 = vector.extract_strided_slice %4 {offsets = [0, 6], sizes = [8, 1], strides = [1, 1]} : vector<8x32xf32> to vector<8x1xf32>
    %c6 = arith.constant 6 : index
    %c0_29 = arith.constant 0 : index
    %c0_30 = arith.constant 0 : index
    %77 = vector.load %arg3[%c6, %c0_29, %c0_30] : memref<64x8x64xf32, #tpu.memory_space<vmem>>, vector<1x8x64xf32>
    %78 = vector.shape_cast %77 : vector<1x8x64xf32> to vector<8x64xf32>
    %79 = vector.broadcast %76 : vector<8x1xf32> to vector<8x64xf32>
    %80 = arith.mulf %79, %78 : vector<8x64xf32>
    %81 = arith.addf %69, %80 : vector<8x64xf32>
    %82 = vector.extract_strided_slice %5 {offsets = [0, 6], sizes = [8, 1], strides = [1, 1]} : vector<8x32xf32> to vector<8x1xf32>
    %c38 = arith.constant 38 : index
    %c0_31 = arith.constant 0 : index
    %c0_32 = arith.constant 0 : index
    %83 = vector.load %arg3[%c38, %c0_31, %c0_32] : memref<64x8x64xf32, #tpu.memory_space<vmem>>, vector<1x8x64xf32>
    %84 = vector.shape_cast %83 : vector<1x8x64xf32> to vector<8x64xf32>
    %85 = vector.broadcast %82 : vector<8x1xf32> to vector<8x64xf32>
    %86 = arith.mulf %85, %84 : vector<8x64xf32>
    %87 = arith.addf %75, %86 : vector<8x64xf32>
    %88 = vector.extract_strided_slice %4 {offsets = [0, 7], sizes = [8, 1], strides = [1, 1]} : vector<8x32xf32> to vector<8x1xf32>
    %c7 = arith.constant 7 : index
    %c0_33 = arith.constant 0 : index
    %c0_34 = arith.constant 0 : index
    %89 = vector.load %arg3[%c7, %c0_33, %c0_34] : memref<64x8x64xf32, #tpu.memory_space<vmem>>, vector<1x8x64xf32>
    %90 = vector.shape_cast %89 : vector<1x8x64xf32> to vector<8x64xf32>
    %91 = vector.broadcast %88 : vector<8x1xf32> to vector<8x64xf32>
    %92 = arith.mulf %91, %90 : vector<8x64xf32>
    %93 = arith.addf %81, %92 : vector<8x64xf32>
    %94 = vector.extract_strided_slice %5 {offsets = [0, 7], sizes = [8, 1], strides = [1, 1]} : vector<8x32xf32> to vector<8x1xf32>
    %c39 = arith.constant 39 : index
    %c0_35 = arith.constant 0 : index
    %c0_36 = arith.constant 0 : index
    %95 = vector.load %arg3[%c39, %c0_35, %c0_36] : memref<64x8x64xf32, #tpu.memory_space<vmem>>, vector<1x8x64xf32>
    %96 = vector.shape_cast %95 : vector<1x8x64xf32> to vector<8x64xf32>
    %97 = vector.broadcast %94 : vector<8x1xf32> to vector<8x64xf32>
    %98 = arith.mulf %97, %96 : vector<8x64xf32>
    %99 = arith.addf %87, %98 : vector<8x64xf32>
    %100 = vector.extract_strided_slice %4 {offsets = [0, 8], sizes = [8, 1], strides = [1, 1]} : vector<8x32xf32> to vector<8x1xf32>
    %c8 = arith.constant 8 : index
    %c0_37 = arith.constant 0 : index
    %c0_38 = arith.constant 0 : index
    %101 = vector.load %arg3[%c8, %c0_37, %c0_38] : memref<64x8x64xf32, #tpu.memory_space<vmem>>, vector<1x8x64xf32>
    %102 = vector.shape_cast %101 : vector<1x8x64xf32> to vector<8x64xf32>
    %103 = vector.broadcast %100 : vector<8x1xf32> to vector<8x64xf32>
    %104 = arith.mulf %103, %102 : vector<8x64xf32>
    %105 = arith.addf %93, %104 : vector<8x64xf32>
    %106 = vector.extract_strided_slice %5 {offsets = [0, 8], sizes = [8, 1], strides = [1, 1]} : vector<8x32xf32> to vector<8x1xf32>
    %c40 = arith.constant 40 : index
    %c0_39 = arith.constant 0 : index
    %c0_40 = arith.constant 0 : index
    %107 = vector.load %arg3[%c40, %c0_39, %c0_40] : memref<64x8x64xf32, #tpu.memory_space<vmem>>, vector<1x8x64xf32>
    %108 = vector.shape_cast %107 : vector<1x8x64xf32> to vector<8x64xf32>
    %109 = vector.broadcast %106 : vector<8x1xf32> to vector<8x64xf32>
    %110 = arith.mulf %109, %108 : vector<8x64xf32>
    %111 = arith.addf %99, %110 : vector<8x64xf32>
    %112 = vector.extract_strided_slice %4 {offsets = [0, 9], sizes = [8, 1], strides = [1, 1]} : vector<8x32xf32> to vector<8x1xf32>
    %c9 = arith.constant 9 : index
    %c0_41 = arith.constant 0 : index
    %c0_42 = arith.constant 0 : index
    %113 = vector.load %arg3[%c9, %c0_41, %c0_42] : memref<64x8x64xf32, #tpu.memory_space<vmem>>, vector<1x8x64xf32>
    %114 = vector.shape_cast %113 : vector<1x8x64xf32> to vector<8x64xf32>
    %115 = vector.broadcast %112 : vector<8x1xf32> to vector<8x64xf32>
    %116 = arith.mulf %115, %114 : vector<8x64xf32>
    %117 = arith.addf %105, %116 : vector<8x64xf32>
    %118 = vector.extract_strided_slice %5 {offsets = [0, 9], sizes = [8, 1], strides = [1, 1]} : vector<8x32xf32> to vector<8x1xf32>
    %c41 = arith.constant 41 : index
    %c0_43 = arith.constant 0 : index
    %c0_44 = arith.constant 0 : index
    %119 = vector.load %arg3[%c41, %c0_43, %c0_44] : memref<64x8x64xf32, #tpu.memory_space<vmem>>, vector<1x8x64xf32>
    %120 = vector.shape_cast %119 : vector<1x8x64xf32> to vector<8x64xf32>
    %121 = vector.broadcast %118 : vector<8x1xf32> to vector<8x64xf32>
    %122 = arith.mulf %121, %120 : vector<8x64xf32>
    %123 = arith.addf %111, %122 : vector<8x64xf32>
    %124 = vector.extract_strided_slice %4 {offsets = [0, 10], sizes = [8, 1], strides = [1, 1]} : vector<8x32xf32> to vector<8x1xf32>
    %c10 = arith.constant 10 : index
    %c0_45 = arith.constant 0 : index
    %c0_46 = arith.constant 0 : index
    %125 = vector.load %arg3[%c10, %c0_45, %c0_46] : memref<64x8x64xf32, #tpu.memory_space<vmem>>, vector<1x8x64xf32>
    %126 = vector.shape_cast %125 : vector<1x8x64xf32> to vector<8x64xf32>
    %127 = vector.broadcast %124 : vector<8x1xf32> to vector<8x64xf32>
    %128 = arith.mulf %127, %126 : vector<8x64xf32>
    %129 = arith.addf %117, %128 : vector<8x64xf32>
    %130 = vector.extract_strided_slice %5 {offsets = [0, 10], sizes = [8, 1], strides = [1, 1]} : vector<8x32xf32> to vector<8x1xf32>
    %c42 = arith.constant 42 : index
    %c0_47 = arith.constant 0 : index
    %c0_48 = arith.constant 0 : index
    %131 = vector.load %arg3[%c42, %c0_47, %c0_48] : memref<64x8x64xf32, #tpu.memory_space<vmem>>, vector<1x8x64xf32>
    %132 = vector.shape_cast %131 : vector<1x8x64xf32> to vector<8x64xf32>
    %133 = vector.broadcast %130 : vector<8x1xf32> to vector<8x64xf32>
    %134 = arith.mulf %133, %132 : vector<8x64xf32>
    %135 = arith.addf %123, %134 : vector<8x64xf32>
    %136 = vector.extract_strided_slice %4 {offsets = [0, 11], sizes = [8, 1], strides = [1, 1]} : vector<8x32xf32> to vector<8x1xf32>
    %c11 = arith.constant 11 : index
    %c0_49 = arith.constant 0 : index
    %c0_50 = arith.constant 0 : index
    %137 = vector.load %arg3[%c11, %c0_49, %c0_50] : memref<64x8x64xf32, #tpu.memory_space<vmem>>, vector<1x8x64xf32>
    %138 = vector.shape_cast %137 : vector<1x8x64xf32> to vector<8x64xf32>
    %139 = vector.broadcast %136 : vector<8x1xf32> to vector<8x64xf32>
    %140 = arith.mulf %139, %138 : vector<8x64xf32>
    %141 = arith.addf %129, %140 : vector<8x64xf32>
    %142 = vector.extract_strided_slice %5 {offsets = [0, 11], sizes = [8, 1], strides = [1, 1]} : vector<8x32xf32> to vector<8x1xf32>
    %c43 = arith.constant 43 : index
    %c0_51 = arith.constant 0 : index
    %c0_52 = arith.constant 0 : index
    %143 = vector.load %arg3[%c43, %c0_51, %c0_52] : memref<64x8x64xf32, #tpu.memory_space<vmem>>, vector<1x8x64xf32>
    %144 = vector.shape_cast %143 : vector<1x8x64xf32> to vector<8x64xf32>
    %145 = vector.broadcast %142 : vector<8x1xf32> to vector<8x64xf32>
    %146 = arith.mulf %145, %144 : vector<8x64xf32>
    %147 = arith.addf %135, %146 : vector<8x64xf32>
    %148 = vector.extract_strided_slice %4 {offsets = [0, 12], sizes = [8, 1], strides = [1, 1]} : vector<8x32xf32> to vector<8x1xf32>
    %c12 = arith.constant 12 : index
    %c0_53 = arith.constant 0 : index
    %c0_54 = arith.constant 0 : index
    %149 = vector.load %arg3[%c12, %c0_53, %c0_54] : memref<64x8x64xf32, #tpu.memory_space<vmem>>, vector<1x8x64xf32>
    %150 = vector.shape_cast %149 : vector<1x8x64xf32> to vector<8x64xf32>
    %151 = vector.broadcast %148 : vector<8x1xf32> to vector<8x64xf32>
    %152 = arith.mulf %151, %150 : vector<8x64xf32>
    %153 = arith.addf %141, %152 : vector<8x64xf32>
    %154 = vector.extract_strided_slice %5 {offsets = [0, 12], sizes = [8, 1], strides = [1, 1]} : vector<8x32xf32> to vector<8x1xf32>
    %c44 = arith.constant 44 : index
    %c0_55 = arith.constant 0 : index
    %c0_56 = arith.constant 0 : index
    %155 = vector.load %arg3[%c44, %c0_55, %c0_56] : memref<64x8x64xf32, #tpu.memory_space<vmem>>, vector<1x8x64xf32>
    %156 = vector.shape_cast %155 : vector<1x8x64xf32> to vector<8x64xf32>
    %157 = vector.broadcast %154 : vector<8x1xf32> to vector<8x64xf32>
    %158 = arith.mulf %157, %156 : vector<8x64xf32>
    %159 = arith.addf %147, %158 : vector<8x64xf32>
    %160 = vector.extract_strided_slice %4 {offsets = [0, 13], sizes = [8, 1], strides = [1, 1]} : vector<8x32xf32> to vector<8x1xf32>
    %c13 = arith.constant 13 : index
    %c0_57 = arith.constant 0 : index
    %c0_58 = arith.constant 0 : index
    %161 = vector.load %arg3[%c13, %c0_57, %c0_58] : memref<64x8x64xf32, #tpu.memory_space<vmem>>, vector<1x8x64xf32>
    %162 = vector.shape_cast %161 : vector<1x8x64xf32> to vector<8x64xf32>
    %163 = vector.broadcast %160 : vector<8x1xf32> to vector<8x64xf32>
    %164 = arith.mulf %163, %162 : vector<8x64xf32>
    %165 = arith.addf %153, %164 : vector<8x64xf32>
    %166 = vector.extract_strided_slice %5 {offsets = [0, 13], sizes = [8, 1], strides = [1, 1]} : vector<8x32xf32> to vector<8x1xf32>
    %c45 = arith.constant 45 : index
    %c0_59 = arith.constant 0 : index
    %c0_60 = arith.constant 0 : index
    %167 = vector.load %arg3[%c45, %c0_59, %c0_60] : memref<64x8x64xf32, #tpu.memory_space<vmem>>, vector<1x8x64xf32>
    %168 = vector.shape_cast %167 : vector<1x8x64xf32> to vector<8x64xf32>
    %169 = vector.broadcast %166 : vector<8x1xf32> to vector<8x64xf32>
    %170 = arith.mulf %169, %168 : vector<8x64xf32>
    %171 = arith.addf %159, %170 : vector<8x64xf32>
    %172 = vector.extract_strided_slice %4 {offsets = [0, 14], sizes = [8, 1], strides = [1, 1]} : vector<8x32xf32> to vector<8x1xf32>
    %c14 = arith.constant 14 : index
    %c0_61 = arith.constant 0 : index
    %c0_62 = arith.constant 0 : index
    %173 = vector.load %arg3[%c14, %c0_61, %c0_62] : memref<64x8x64xf32, #tpu.memory_space<vmem>>, vector<1x8x64xf32>
    %174 = vector.shape_cast %173 : vector<1x8x64xf32> to vector<8x64xf32>
    %175 = vector.broadcast %172 : vector<8x1xf32> to vector<8x64xf32>
    %176 = arith.mulf %175, %174 : vector<8x64xf32>
    %177 = arith.addf %165, %176 : vector<8x64xf32>
    %178 = vector.extract_strided_slice %5 {offsets = [0, 14], sizes = [8, 1], strides = [1, 1]} : vector<8x32xf32> to vector<8x1xf32>
    %c46 = arith.constant 46 : index
    %c0_63 = arith.constant 0 : index
    %c0_64 = arith.constant 0 : index
    %179 = vector.load %arg3[%c46, %c0_63, %c0_64] : memref<64x8x64xf32, #tpu.memory_space<vmem>>, vector<1x8x64xf32>
    %180 = vector.shape_cast %179 : vector<1x8x64xf32> to vector<8x64xf32>
    %181 = vector.broadcast %178 : vector<8x1xf32> to vector<8x64xf32>
    %182 = arith.mulf %181, %180 : vector<8x64xf32>
    %183 = arith.addf %171, %182 : vector<8x64xf32>
    %184 = vector.extract_strided_slice %4 {offsets = [0, 15], sizes = [8, 1], strides = [1, 1]} : vector<8x32xf32> to vector<8x1xf32>
    %c15 = arith.constant 15 : index
    %c0_65 = arith.constant 0 : index
    %c0_66 = arith.constant 0 : index
    %185 = vector.load %arg3[%c15, %c0_65, %c0_66] : memref<64x8x64xf32, #tpu.memory_space<vmem>>, vector<1x8x64xf32>
    %186 = vector.shape_cast %185 : vector<1x8x64xf32> to vector<8x64xf32>
    %187 = vector.broadcast %184 : vector<8x1xf32> to vector<8x64xf32>
    %188 = arith.mulf %187, %186 : vector<8x64xf32>
    %189 = arith.addf %177, %188 : vector<8x64xf32>
    %190 = vector.extract_strided_slice %5 {offsets = [0, 15], sizes = [8, 1], strides = [1, 1]} : vector<8x32xf32> to vector<8x1xf32>
    %c47 = arith.constant 47 : index
    %c0_67 = arith.constant 0 : index
    %c0_68 = arith.constant 0 : index
    %191 = vector.load %arg3[%c47, %c0_67, %c0_68] : memref<64x8x64xf32, #tpu.memory_space<vmem>>, vector<1x8x64xf32>
    %192 = vector.shape_cast %191 : vector<1x8x64xf32> to vector<8x64xf32>
    %193 = vector.broadcast %190 : vector<8x1xf32> to vector<8x64xf32>
    %194 = arith.mulf %193, %192 : vector<8x64xf32>
    %195 = arith.addf %183, %194 : vector<8x64xf32>
    %196 = vector.extract_strided_slice %4 {offsets = [0, 16], sizes = [8, 1], strides = [1, 1]} : vector<8x32xf32> to vector<8x1xf32>
    %c16 = arith.constant 16 : index
    %c0_69 = arith.constant 0 : index
    %c0_70 = arith.constant 0 : index
    %197 = vector.load %arg3[%c16, %c0_69, %c0_70] : memref<64x8x64xf32, #tpu.memory_space<vmem>>, vector<1x8x64xf32>
    %198 = vector.shape_cast %197 : vector<1x8x64xf32> to vector<8x64xf32>
    %199 = vector.broadcast %196 : vector<8x1xf32> to vector<8x64xf32>
    %200 = arith.mulf %199, %198 : vector<8x64xf32>
    %201 = arith.addf %189, %200 : vector<8x64xf32>
    %202 = vector.extract_strided_slice %5 {offsets = [0, 16], sizes = [8, 1], strides = [1, 1]} : vector<8x32xf32> to vector<8x1xf32>
    %c48 = arith.constant 48 : index
    %c0_71 = arith.constant 0 : index
    %c0_72 = arith.constant 0 : index
    %203 = vector.load %arg3[%c48, %c0_71, %c0_72] : memref<64x8x64xf32, #tpu.memory_space<vmem>>, vector<1x8x64xf32>
    %204 = vector.shape_cast %203 : vector<1x8x64xf32> to vector<8x64xf32>
    %205 = vector.broadcast %202 : vector<8x1xf32> to vector<8x64xf32>
    %206 = arith.mulf %205, %204 : vector<8x64xf32>
    %207 = arith.addf %195, %206 : vector<8x64xf32>
    %208 = vector.extract_strided_slice %4 {offsets = [0, 17], sizes = [8, 1], strides = [1, 1]} : vector<8x32xf32> to vector<8x1xf32>
    %c17 = arith.constant 17 : index
    %c0_73 = arith.constant 0 : index
    %c0_74 = arith.constant 0 : index
    %209 = vector.load %arg3[%c17, %c0_73, %c0_74] : memref<64x8x64xf32, #tpu.memory_space<vmem>>, vector<1x8x64xf32>
    %210 = vector.shape_cast %209 : vector<1x8x64xf32> to vector<8x64xf32>
    %211 = vector.broadcast %208 : vector<8x1xf32> to vector<8x64xf32>
    %212 = arith.mulf %211, %210 : vector<8x64xf32>
    %213 = arith.addf %201, %212 : vector<8x64xf32>
    %214 = vector.extract_strided_slice %5 {offsets = [0, 17], sizes = [8, 1], strides = [1, 1]} : vector<8x32xf32> to vector<8x1xf32>
    %c49 = arith.constant 49 : index
    %c0_75 = arith.constant 0 : index
    %c0_76 = arith.constant 0 : index
    %215 = vector.load %arg3[%c49, %c0_75, %c0_76] : memref<64x8x64xf32, #tpu.memory_space<vmem>>, vector<1x8x64xf32>
    %216 = vector.shape_cast %215 : vector<1x8x64xf32> to vector<8x64xf32>
    %217 = vector.broadcast %214 : vector<8x1xf32> to vector<8x64xf32>
    %218 = arith.mulf %217, %216 : vector<8x64xf32>
    %219 = arith.addf %207, %218 : vector<8x64xf32>
    %220 = vector.extract_strided_slice %4 {offsets = [0, 18], sizes = [8, 1], strides = [1, 1]} : vector<8x32xf32> to vector<8x1xf32>
    %c18 = arith.constant 18 : index
    %c0_77 = arith.constant 0 : index
    %c0_78 = arith.constant 0 : index
    %221 = vector.load %arg3[%c18, %c0_77, %c0_78] : memref<64x8x64xf32, #tpu.memory_space<vmem>>, vector<1x8x64xf32>
    %222 = vector.shape_cast %221 : vector<1x8x64xf32> to vector<8x64xf32>
    %223 = vector.broadcast %220 : vector<8x1xf32> to vector<8x64xf32>
    %224 = arith.mulf %223, %222 : vector<8x64xf32>
    %225 = arith.addf %213, %224 : vector<8x64xf32>
    %226 = vector.extract_strided_slice %5 {offsets = [0, 18], sizes = [8, 1], strides = [1, 1]} : vector<8x32xf32> to vector<8x1xf32>
    %c50 = arith.constant 50 : index
    %c0_79 = arith.constant 0 : index
    %c0_80 = arith.constant 0 : index
    %227 = vector.load %arg3[%c50, %c0_79, %c0_80] : memref<64x8x64xf32, #tpu.memory_space<vmem>>, vector<1x8x64xf32>
    %228 = vector.shape_cast %227 : vector<1x8x64xf32> to vector<8x64xf32>
    %229 = vector.broadcast %226 : vector<8x1xf32> to vector<8x64xf32>
    %230 = arith.mulf %229, %228 : vector<8x64xf32>
    %231 = arith.addf %219, %230 : vector<8x64xf32>
    %232 = vector.extract_strided_slice %4 {offsets = [0, 19], sizes = [8, 1], strides = [1, 1]} : vector<8x32xf32> to vector<8x1xf32>
    %c19 = arith.constant 19 : index
    %c0_81 = arith.constant 0 : index
    %c0_82 = arith.constant 0 : index
    %233 = vector.load %arg3[%c19, %c0_81, %c0_82] : memref<64x8x64xf32, #tpu.memory_space<vmem>>, vector<1x8x64xf32>
    %234 = vector.shape_cast %233 : vector<1x8x64xf32> to vector<8x64xf32>
    %235 = vector.broadcast %232 : vector<8x1xf32> to vector<8x64xf32>
    %236 = arith.mulf %235, %234 : vector<8x64xf32>
    %237 = arith.addf %225, %236 : vector<8x64xf32>
    %238 = vector.extract_strided_slice %5 {offsets = [0, 19], sizes = [8, 1], strides = [1, 1]} : vector<8x32xf32> to vector<8x1xf32>
    %c51 = arith.constant 51 : index
    %c0_83 = arith.constant 0 : index
    %c0_84 = arith.constant 0 : index
    %239 = vector.load %arg3[%c51, %c0_83, %c0_84] : memref<64x8x64xf32, #tpu.memory_space<vmem>>, vector<1x8x64xf32>
    %240 = vector.shape_cast %239 : vector<1x8x64xf32> to vector<8x64xf32>
    %241 = vector.broadcast %238 : vector<8x1xf32> to vector<8x64xf32>
    %242 = arith.mulf %241, %240 : vector<8x64xf32>
    %243 = arith.addf %231, %242 : vector<8x64xf32>
    %244 = vector.extract_strided_slice %4 {offsets = [0, 20], sizes = [8, 1], strides = [1, 1]} : vector<8x32xf32> to vector<8x1xf32>
    %c20 = arith.constant 20 : index
    %c0_85 = arith.constant 0 : index
    %c0_86 = arith.constant 0 : index
    %245 = vector.load %arg3[%c20, %c0_85, %c0_86] : memref<64x8x64xf32, #tpu.memory_space<vmem>>, vector<1x8x64xf32>
    %246 = vector.shape_cast %245 : vector<1x8x64xf32> to vector<8x64xf32>
    %247 = vector.broadcast %244 : vector<8x1xf32> to vector<8x64xf32>
    %248 = arith.mulf %247, %246 : vector<8x64xf32>
    %249 = arith.addf %237, %248 : vector<8x64xf32>
    %250 = vector.extract_strided_slice %5 {offsets = [0, 20], sizes = [8, 1], strides = [1, 1]} : vector<8x32xf32> to vector<8x1xf32>
    %c52 = arith.constant 52 : index
    %c0_87 = arith.constant 0 : index
    %c0_88 = arith.constant 0 : index
    %251 = vector.load %arg3[%c52, %c0_87, %c0_88] : memref<64x8x64xf32, #tpu.memory_space<vmem>>, vector<1x8x64xf32>
    %252 = vector.shape_cast %251 : vector<1x8x64xf32> to vector<8x64xf32>
    %253 = vector.broadcast %250 : vector<8x1xf32> to vector<8x64xf32>
    %254 = arith.mulf %253, %252 : vector<8x64xf32>
    %255 = arith.addf %243, %254 : vector<8x64xf32>
    %256 = vector.extract_strided_slice %4 {offsets = [0, 21], sizes = [8, 1], strides = [1, 1]} : vector<8x32xf32> to vector<8x1xf32>
    %c21 = arith.constant 21 : index
    %c0_89 = arith.constant 0 : index
    %c0_90 = arith.constant 0 : index
    %257 = vector.load %arg3[%c21, %c0_89, %c0_90] : memref<64x8x64xf32, #tpu.memory_space<vmem>>, vector<1x8x64xf32>
    %258 = vector.shape_cast %257 : vector<1x8x64xf32> to vector<8x64xf32>
    %259 = vector.broadcast %256 : vector<8x1xf32> to vector<8x64xf32>
    %260 = arith.mulf %259, %258 : vector<8x64xf32>
    %261 = arith.addf %249, %260 : vector<8x64xf32>
    %262 = vector.extract_strided_slice %5 {offsets = [0, 21], sizes = [8, 1], strides = [1, 1]} : vector<8x32xf32> to vector<8x1xf32>
    %c53 = arith.constant 53 : index
    %c0_91 = arith.constant 0 : index
    %c0_92 = arith.constant 0 : index
    %263 = vector.load %arg3[%c53, %c0_91, %c0_92] : memref<64x8x64xf32, #tpu.memory_space<vmem>>, vector<1x8x64xf32>
    %264 = vector.shape_cast %263 : vector<1x8x64xf32> to vector<8x64xf32>
    %265 = vector.broadcast %262 : vector<8x1xf32> to vector<8x64xf32>
    %266 = arith.mulf %265, %264 : vector<8x64xf32>
    %267 = arith.addf %255, %266 : vector<8x64xf32>
    %268 = vector.extract_strided_slice %4 {offsets = [0, 22], sizes = [8, 1], strides = [1, 1]} : vector<8x32xf32> to vector<8x1xf32>
    %c22 = arith.constant 22 : index
    %c0_93 = arith.constant 0 : index
    %c0_94 = arith.constant 0 : index
    %269 = vector.load %arg3[%c22, %c0_93, %c0_94] : memref<64x8x64xf32, #tpu.memory_space<vmem>>, vector<1x8x64xf32>
    %270 = vector.shape_cast %269 : vector<1x8x64xf32> to vector<8x64xf32>
    %271 = vector.broadcast %268 : vector<8x1xf32> to vector<8x64xf32>
    %272 = arith.mulf %271, %270 : vector<8x64xf32>
    %273 = arith.addf %261, %272 : vector<8x64xf32>
    %274 = vector.extract_strided_slice %5 {offsets = [0, 22], sizes = [8, 1], strides = [1, 1]} : vector<8x32xf32> to vector<8x1xf32>
    %c54 = arith.constant 54 : index
    %c0_95 = arith.constant 0 : index
    %c0_96 = arith.constant 0 : index
    %275 = vector.load %arg3[%c54, %c0_95, %c0_96] : memref<64x8x64xf32, #tpu.memory_space<vmem>>, vector<1x8x64xf32>
    %276 = vector.shape_cast %275 : vector<1x8x64xf32> to vector<8x64xf32>
    %277 = vector.broadcast %274 : vector<8x1xf32> to vector<8x64xf32>
    %278 = arith.mulf %277, %276 : vector<8x64xf32>
    %279 = arith.addf %267, %278 : vector<8x64xf32>
    %280 = vector.extract_strided_slice %4 {offsets = [0, 23], sizes = [8, 1], strides = [1, 1]} : vector<8x32xf32> to vector<8x1xf32>
    %c23 = arith.constant 23 : index
    %c0_97 = arith.constant 0 : index
    %c0_98 = arith.constant 0 : index
    %281 = vector.load %arg3[%c23, %c0_97, %c0_98] : memref<64x8x64xf32, #tpu.memory_space<vmem>>, vector<1x8x64xf32>
    %282 = vector.shape_cast %281 : vector<1x8x64xf32> to vector<8x64xf32>
    %283 = vector.broadcast %280 : vector<8x1xf32> to vector<8x64xf32>
    %284 = arith.mulf %283, %282 : vector<8x64xf32>
    %285 = arith.addf %273, %284 : vector<8x64xf32>
    %286 = vector.extract_strided_slice %5 {offsets = [0, 23], sizes = [8, 1], strides = [1, 1]} : vector<8x32xf32> to vector<8x1xf32>
    %c55 = arith.constant 55 : index
    %c0_99 = arith.constant 0 : index
    %c0_100 = arith.constant 0 : index
    %287 = vector.load %arg3[%c55, %c0_99, %c0_100] : memref<64x8x64xf32, #tpu.memory_space<vmem>>, vector<1x8x64xf32>
    %288 = vector.shape_cast %287 : vector<1x8x64xf32> to vector<8x64xf32>
    %289 = vector.broadcast %286 : vector<8x1xf32> to vector<8x64xf32>
    %290 = arith.mulf %289, %288 : vector<8x64xf32>
    %291 = arith.addf %279, %290 : vector<8x64xf32>
    %292 = vector.extract_strided_slice %4 {offsets = [0, 24], sizes = [8, 1], strides = [1, 1]} : vector<8x32xf32> to vector<8x1xf32>
    %c24 = arith.constant 24 : index
    %c0_101 = arith.constant 0 : index
    %c0_102 = arith.constant 0 : index
    %293 = vector.load %arg3[%c24, %c0_101, %c0_102] : memref<64x8x64xf32, #tpu.memory_space<vmem>>, vector<1x8x64xf32>
    %294 = vector.shape_cast %293 : vector<1x8x64xf32> to vector<8x64xf32>
    %295 = vector.broadcast %292 : vector<8x1xf32> to vector<8x64xf32>
    %296 = arith.mulf %295, %294 : vector<8x64xf32>
    %297 = arith.addf %285, %296 : vector<8x64xf32>
    %298 = vector.extract_strided_slice %5 {offsets = [0, 24], sizes = [8, 1], strides = [1, 1]} : vector<8x32xf32> to vector<8x1xf32>
    %c56 = arith.constant 56 : index
    %c0_103 = arith.constant 0 : index
    %c0_104 = arith.constant 0 : index
    %299 = vector.load %arg3[%c56, %c0_103, %c0_104] : memref<64x8x64xf32, #tpu.memory_space<vmem>>, vector<1x8x64xf32>
    %300 = vector.shape_cast %299 : vector<1x8x64xf32> to vector<8x64xf32>
    %301 = vector.broadcast %298 : vector<8x1xf32> to vector<8x64xf32>
    %302 = arith.mulf %301, %300 : vector<8x64xf32>
    %303 = arith.addf %291, %302 : vector<8x64xf32>
    %304 = vector.extract_strided_slice %4 {offsets = [0, 25], sizes = [8, 1], strides = [1, 1]} : vector<8x32xf32> to vector<8x1xf32>
    %c25 = arith.constant 25 : index
    %c0_105 = arith.constant 0 : index
    %c0_106 = arith.constant 0 : index
    %305 = vector.load %arg3[%c25, %c0_105, %c0_106] : memref<64x8x64xf32, #tpu.memory_space<vmem>>, vector<1x8x64xf32>
    %306 = vector.shape_cast %305 : vector<1x8x64xf32> to vector<8x64xf32>
    %307 = vector.broadcast %304 : vector<8x1xf32> to vector<8x64xf32>
    %308 = arith.mulf %307, %306 : vector<8x64xf32>
    %309 = arith.addf %297, %308 : vector<8x64xf32>
    %310 = vector.extract_strided_slice %5 {offsets = [0, 25], sizes = [8, 1], strides = [1, 1]} : vector<8x32xf32> to vector<8x1xf32>
    %c57 = arith.constant 57 : index
    %c0_107 = arith.constant 0 : index
    %c0_108 = arith.constant 0 : index
    %311 = vector.load %arg3[%c57, %c0_107, %c0_108] : memref<64x8x64xf32, #tpu.memory_space<vmem>>, vector<1x8x64xf32>
    %312 = vector.shape_cast %311 : vector<1x8x64xf32> to vector<8x64xf32>
    %313 = vector.broadcast %310 : vector<8x1xf32> to vector<8x64xf32>
    %314 = arith.mulf %313, %312 : vector<8x64xf32>
    %315 = arith.addf %303, %314 : vector<8x64xf32>
    %316 = vector.extract_strided_slice %4 {offsets = [0, 26], sizes = [8, 1], strides = [1, 1]} : vector<8x32xf32> to vector<8x1xf32>
    %c26 = arith.constant 26 : index
    %c0_109 = arith.constant 0 : index
    %c0_110 = arith.constant 0 : index
    %317 = vector.load %arg3[%c26, %c0_109, %c0_110] : memref<64x8x64xf32, #tpu.memory_space<vmem>>, vector<1x8x64xf32>
    %318 = vector.shape_cast %317 : vector<1x8x64xf32> to vector<8x64xf32>
    %319 = vector.broadcast %316 : vector<8x1xf32> to vector<8x64xf32>
    %320 = arith.mulf %319, %318 : vector<8x64xf32>
    %321 = arith.addf %309, %320 : vector<8x64xf32>
    %322 = vector.extract_strided_slice %5 {offsets = [0, 26], sizes = [8, 1], strides = [1, 1]} : vector<8x32xf32> to vector<8x1xf32>
    %c58 = arith.constant 58 : index
    %c0_111 = arith.constant 0 : index
    %c0_112 = arith.constant 0 : index
    %323 = vector.load %arg3[%c58, %c0_111, %c0_112] : memref<64x8x64xf32, #tpu.memory_space<vmem>>, vector<1x8x64xf32>
    %324 = vector.shape_cast %323 : vector<1x8x64xf32> to vector<8x64xf32>
    %325 = vector.broadcast %322 : vector<8x1xf32> to vector<8x64xf32>
    %326 = arith.mulf %325, %324 : vector<8x64xf32>
    %327 = arith.addf %315, %326 : vector<8x64xf32>
    %328 = vector.extract_strided_slice %4 {offsets = [0, 27], sizes = [8, 1], strides = [1, 1]} : vector<8x32xf32> to vector<8x1xf32>
    %c27 = arith.constant 27 : index
    %c0_113 = arith.constant 0 : index
    %c0_114 = arith.constant 0 : index
    %329 = vector.load %arg3[%c27, %c0_113, %c0_114] : memref<64x8x64xf32, #tpu.memory_space<vmem>>, vector<1x8x64xf32>
    %330 = vector.shape_cast %329 : vector<1x8x64xf32> to vector<8x64xf32>
    %331 = vector.broadcast %328 : vector<8x1xf32> to vector<8x64xf32>
    %332 = arith.mulf %331, %330 : vector<8x64xf32>
    %333 = arith.addf %321, %332 : vector<8x64xf32>
    %334 = vector.extract_strided_slice %5 {offsets = [0, 27], sizes = [8, 1], strides = [1, 1]} : vector<8x32xf32> to vector<8x1xf32>
    %c59 = arith.constant 59 : index
    %c0_115 = arith.constant 0 : index
    %c0_116 = arith.constant 0 : index
    %335 = vector.load %arg3[%c59, %c0_115, %c0_116] : memref<64x8x64xf32, #tpu.memory_space<vmem>>, vector<1x8x64xf32>
    %336 = vector.shape_cast %335 : vector<1x8x64xf32> to vector<8x64xf32>
    %337 = vector.broadcast %334 : vector<8x1xf32> to vector<8x64xf32>
    %338 = arith.mulf %337, %336 : vector<8x64xf32>
    %339 = arith.addf %327, %338 : vector<8x64xf32>
    %340 = vector.extract_strided_slice %4 {offsets = [0, 28], sizes = [8, 1], strides = [1, 1]} : vector<8x32xf32> to vector<8x1xf32>
    %c28 = arith.constant 28 : index
    %c0_117 = arith.constant 0 : index
    %c0_118 = arith.constant 0 : index
    %341 = vector.load %arg3[%c28, %c0_117, %c0_118] : memref<64x8x64xf32, #tpu.memory_space<vmem>>, vector<1x8x64xf32>
    %342 = vector.shape_cast %341 : vector<1x8x64xf32> to vector<8x64xf32>
    %343 = vector.broadcast %340 : vector<8x1xf32> to vector<8x64xf32>
    %344 = arith.mulf %343, %342 : vector<8x64xf32>
    %345 = arith.addf %333, %344 : vector<8x64xf32>
    %346 = vector.extract_strided_slice %5 {offsets = [0, 28], sizes = [8, 1], strides = [1, 1]} : vector<8x32xf32> to vector<8x1xf32>
    %c60 = arith.constant 60 : index
    %c0_119 = arith.constant 0 : index
    %c0_120 = arith.constant 0 : index
    %347 = vector.load %arg3[%c60, %c0_119, %c0_120] : memref<64x8x64xf32, #tpu.memory_space<vmem>>, vector<1x8x64xf32>
    %348 = vector.shape_cast %347 : vector<1x8x64xf32> to vector<8x64xf32>
    %349 = vector.broadcast %346 : vector<8x1xf32> to vector<8x64xf32>
    %350 = arith.mulf %349, %348 : vector<8x64xf32>
    %351 = arith.addf %339, %350 : vector<8x64xf32>
    %352 = vector.extract_strided_slice %4 {offsets = [0, 29], sizes = [8, 1], strides = [1, 1]} : vector<8x32xf32> to vector<8x1xf32>
    %c29 = arith.constant 29 : index
    %c0_121 = arith.constant 0 : index
    %c0_122 = arith.constant 0 : index
    %353 = vector.load %arg3[%c29, %c0_121, %c0_122] : memref<64x8x64xf32, #tpu.memory_space<vmem>>, vector<1x8x64xf32>
    %354 = vector.shape_cast %353 : vector<1x8x64xf32> to vector<8x64xf32>
    %355 = vector.broadcast %352 : vector<8x1xf32> to vector<8x64xf32>
    %356 = arith.mulf %355, %354 : vector<8x64xf32>
    %357 = arith.addf %345, %356 : vector<8x64xf32>
    %358 = vector.extract_strided_slice %5 {offsets = [0, 29], sizes = [8, 1], strides = [1, 1]} : vector<8x32xf32> to vector<8x1xf32>
    %c61 = arith.constant 61 : index
    %c0_123 = arith.constant 0 : index
    %c0_124 = arith.constant 0 : index
    %359 = vector.load %arg3[%c61, %c0_123, %c0_124] : memref<64x8x64xf32, #tpu.memory_space<vmem>>, vector<1x8x64xf32>
    %360 = vector.shape_cast %359 : vector<1x8x64xf32> to vector<8x64xf32>
    %361 = vector.broadcast %358 : vector<8x1xf32> to vector<8x64xf32>
    %362 = arith.mulf %361, %360 : vector<8x64xf32>
    %363 = arith.addf %351, %362 : vector<8x64xf32>
    %364 = vector.extract_strided_slice %4 {offsets = [0, 30], sizes = [8, 1], strides = [1, 1]} : vector<8x32xf32> to vector<8x1xf32>
    %c30 = arith.constant 30 : index
    %c0_125 = arith.constant 0 : index
    %c0_126 = arith.constant 0 : index
    %365 = vector.load %arg3[%c30, %c0_125, %c0_126] : memref<64x8x64xf32, #tpu.memory_space<vmem>>, vector<1x8x64xf32>
    %366 = vector.shape_cast %365 : vector<1x8x64xf32> to vector<8x64xf32>
    %367 = vector.broadcast %364 : vector<8x1xf32> to vector<8x64xf32>
    %368 = arith.mulf %367, %366 : vector<8x64xf32>
    %369 = arith.addf %357, %368 : vector<8x64xf32>
    %370 = vector.extract_strided_slice %5 {offsets = [0, 30], sizes = [8, 1], strides = [1, 1]} : vector<8x32xf32> to vector<8x1xf32>
    %c62 = arith.constant 62 : index
    %c0_127 = arith.constant 0 : index
    %c0_128 = arith.constant 0 : index
    %371 = vector.load %arg3[%c62, %c0_127, %c0_128] : memref<64x8x64xf32, #tpu.memory_space<vmem>>, vector<1x8x64xf32>
    %372 = vector.shape_cast %371 : vector<1x8x64xf32> to vector<8x64xf32>
    %373 = vector.broadcast %370 : vector<8x1xf32> to vector<8x64xf32>
    %374 = arith.mulf %373, %372 : vector<8x64xf32>
    %375 = arith.addf %363, %374 : vector<8x64xf32>
    %376 = vector.extract_strided_slice %4 {offsets = [0, 31], sizes = [8, 1], strides = [1, 1]} : vector<8x32xf32> to vector<8x1xf32>
    %c31 = arith.constant 31 : index
    %c0_129 = arith.constant 0 : index
    %c0_130 = arith.constant 0 : index
    %377 = vector.load %arg3[%c31, %c0_129, %c0_130] : memref<64x8x64xf32, #tpu.memory_space<vmem>>, vector<1x8x64xf32>
    %378 = vector.shape_cast %377 : vector<1x8x64xf32> to vector<8x64xf32>
    %379 = vector.broadcast %376 : vector<8x1xf32> to vector<8x64xf32>
    %380 = arith.mulf %379, %378 : vector<8x64xf32>
    %381 = arith.addf %369, %380 : vector<8x64xf32>
    %382 = vector.extract_strided_slice %5 {offsets = [0, 31], sizes = [8, 1], strides = [1, 1]} : vector<8x32xf32> to vector<8x1xf32>
    %c63 = arith.constant 63 : index
    %c0_131 = arith.constant 0 : index
    %c0_132 = arith.constant 0 : index
    %383 = vector.load %arg3[%c63, %c0_131, %c0_132] : memref<64x8x64xf32, #tpu.memory_space<vmem>>, vector<1x8x64xf32>
    %384 = vector.shape_cast %383 : vector<1x8x64xf32> to vector<8x64xf32>
    %385 = vector.broadcast %382 : vector<8x1xf32> to vector<8x64xf32>
    %386 = arith.mulf %385, %384 : vector<8x64xf32>
    %387 = arith.addf %375, %386 : vector<8x64xf32>
    %388 = arith.addf %381, %387 : vector<8x64xf32>
    %389 = vector.extract_strided_slice %388 {offsets = [0, 0], sizes = [8, 32], strides = [1, 1]} : vector<8x64xf32> to vector<8x32xf32>
    %390 = vector.extract_strided_slice %388 {offsets = [0, 32], sizes = [8, 32], strides = [1, 1]} : vector<8x64xf32> to vector<8x32xf32>
    %391 = tpu.concatenate %389, %390 in 0 : vector<8x32xf32>, vector<8x32xf32> -> vector<16x32xf32>
    %c0_133 = arith.constant 0 : index
    %c0_134 = arith.constant 0 : index
    %392 = vector.load %arg4[%c0_133, %c0_134] : memref<18x16xf32, #tpu.memory_space<vmem>>, vector<18x16xf32>
    %cst_135 = arith.constant dense<0.000000e+00> : vector<18x32xf32>
    %393 = tpu.matmul %392, %391, %cst_135 {dimension_numbers = #tpu.dot_dimension_numbers<[1], [0], [0], [1], [0, 0, 1, 1], [], []>} : vector<18x16xf32>, vector<16x32xf32>, vector<18x32xf32> -> vector<18x32xf32>
    %c0_136 = arith.constant 0 : index
    %c0_137 = arith.constant 0 : index
    %394 = vector.load %arg5[%c0_136, %c0_137] : memref<32x32xf32, #tpu.memory_space<vmem>>, vector<32x32xf32>
    %cst_138 = arith.constant dense<0.000000e+00> : vector<18x32xf32>
    %395 = tpu.matmul %1, %394, %cst_138 {dimension_numbers = #tpu.dot_dimension_numbers<[1], [0], [0], [1], [0, 0, 1, 1], [], []>} : vector<18x32xf32>, vector<32x32xf32>, vector<18x32xf32> -> vector<18x32xf32>
    %c0_139 = arith.constant 0 : index
    %c0_140 = arith.constant 0 : index
    %396 = vector.load %arg6[%c0_139, %c0_140] : memref<1x32xf32, #tpu.memory_space<vmem>>, vector<1x32xf32>
    %397 = vector.broadcast %396 : vector<1x32xf32> to vector<18x32xf32>
    %398 = arith.addf %395, %397 : vector<18x32xf32>
    %399 = arith.addf %398, %393 : vector<18x32xf32>
    %c0_141 = arith.constant 0 : index
    %c0_142 = arith.constant 0 : index
    %c0_143 = arith.constant 0 : index
    %400 = vector.load %arg7[%c0_141, %c0_142, %c0_143] : memref<1x18x32xf32, #tpu.memory_space<vmem>>, vector<1x18x32xf32>
    %401 = vector.shape_cast %400 : vector<1x18x32xf32> to vector<18x32xf32>
    %402 = vector.shape_cast %399 : vector<18x32xf32> to vector<1x18x32xf32>
    tpu.vector_store %arg7[%c0_141, %c0_142, %c0_143], %402 {strides = array<i32>} : memref<1x18x32xf32, #tpu.memory_space<vmem>>, vector<1x18x32xf32>,
    return
  }
  func.func @transform_0(%arg0: i32) -> (i32, i32, i32) {
    %c0_i32 = arith.constant 0 : i32
    %c0_i32_0 = arith.constant 0 : i32
    %c0_i32_1 = arith.constant 0 : i32
    return %arg0, %c0_i32, %c0_i32_0 : i32, i32, i32
  }
  func.func @transform_1(%arg0: i32) -> (i32, i32) {
    %c0_i32 = arith.constant 0 : i32
    %c0_i32_0 = arith.constant 0 : i32
    %c0_i32_1 = arith.constant 0 : i32
    return %c0_i32, %c0_i32_0 : i32, i32
  }
  func.func @transform_2(%arg0: i32) -> (i32, i32, i32) {
    %c0_i32 = arith.constant 0 : i32
    %c0_i32_0 = arith.constant 0 : i32
    %c0_i32_1 = arith.constant 0 : i32
    %c0_i32_2 = arith.constant 0 : i32
    return %c0_i32, %c0_i32_0, %c0_i32_1 : i32, i32, i32
  }
  func.func @transform_3(%arg0: i32) -> (i32, i32) {
    %c0_i32 = arith.constant 0 : i32
    %c0_i32_0 = arith.constant 0 : i32
    %c0_i32_1 = arith.constant 0 : i32
    return %c0_i32, %c0_i32_0 : i32, i32
  }
  func.func @transform_4(%arg0: i32) -> (i32, i32) {
    %c0_i32 = arith.constant 0 : i32
    %c0_i32_0 = arith.constant 0 : i32
    %c0_i32_1 = arith.constant 0 : i32
    return %c0_i32, %c0_i32_0 : i32, i32
  }
  func.func @transform_5(%arg0: i32) -> (i32, i32) {
    %c0_i32 = arith.constant 0 : i32
    %c0_i32_0 = arith.constant 0 : i32
    %c0_i32_1 = arith.constant 0 : i32
    return %c0_i32, %c0_i32_0 : i32, i32
  }
  func.func @transform_6(%arg0: i32) -> (i32, i32, i32) {
    %c0_i32 = arith.constant 0 : i32
    %c0_i32_0 = arith.constant 0 : i32
    %c0_i32_1 = arith.constant 0 : i32
    return %arg0, %c0_i32, %c0_i32_0 : i32, i32, i32
  }
}

module attributes {stable_mosaic.version = 11 : i64} {
  func.func @_proj_kernel(%arg0: i32, %arg1: memref<32x32xf32, #tpu.memory_space<vmem>>, %arg2: memref<32x128xf32, #tpu.memory_space<vmem>>, %arg3: memref<1x128xf32, #tpu.memory_space<vmem>>, %arg4: memref<128x1xf32, #tpu.memory_space<vmem>>, %arg5: memref<1x1xf32, #tpu.memory_space<vmem>>, %arg6: memref<32x1xf32, #tpu.memory_space<vmem>>) attributes {dimension_semantics = [#tpu.dimension_semantics<parallel>], iteration_bounds = array<i64: 1>, scalar_prefetch = 0 : i64, scratch_operands = 0 : i64, tpu.core_type = #tpu.core_type<tc>, window_params = [{transform_indices = @transform_0, window_bounds = array<i64: 32, 32>}, {pipeline_mode = #tpu.pipeline_mode<synchronous>, transform_indices = @transform_1, window_bounds = array<i64: 32, 128>}, {pipeline_mode = #tpu.pipeline_mode<synchronous>, transform_indices = @transform_2, window_bounds = array<i64: 1, 128>}, {pipeline_mode = #tpu.pipeline_mode<synchronous>, transform_indices = @transform_3, window_bounds = array<i64: 128, 1>}, {pipeline_mode = #tpu.pipeline_mode<synchronous>, transform_indices = @transform_4, window_bounds = array<i64: 1, 1>}, {transform_indices = @transform_5, window_bounds = array<i64: 32, 1>}]} {
    %c0 = arith.constant 0 : index
    %c0_0 = arith.constant 0 : index
    %0 = vector.load %arg1[%c0, %c0_0] : memref<32x32xf32, #tpu.memory_space<vmem>>, vector<32x32xf32>
    %c0_1 = arith.constant 0 : index
    %c0_2 = arith.constant 0 : index
    %1 = vector.load %arg2[%c0_1, %c0_2] : memref<32x128xf32, #tpu.memory_space<vmem>>, vector<32x128xf32>
    %cst = arith.constant dense<0.000000e+00> : vector<32x128xf32>
    %2 = tpu.matmul %0, %1, %cst {dimension_numbers = #tpu.dot_dimension_numbers<[1], [0], [0], [1], [0, 0, 1, 1], [], []>} : vector<32x32xf32>, vector<32x128xf32>, vector<32x128xf32> -> vector<32x128xf32>
    %c0_3 = arith.constant 0 : index
    %c0_4 = arith.constant 0 : index
    %3 = vector.load %arg3[%c0_3, %c0_4] : memref<1x128xf32, #tpu.memory_space<vmem>>, vector<1x128xf32>
    %4 = vector.broadcast %3 : vector<1x128xf32> to vector<32x128xf32>
    %5 = arith.addf %2, %4 : vector<32x128xf32>
    %cst_5 = arith.constant 0.000000e+00 : f32
    %6 = vector.broadcast %cst_5 : f32 to vector<32x128xf32>
    %7 = arith.maximumf %5, %6 : vector<32x128xf32>
    %c0_6 = arith.constant 0 : index
    %c0_7 = arith.constant 0 : index
    %8 = vector.load %arg4[%c0_6, %c0_7] : memref<128x1xf32, #tpu.memory_space<vmem>>, vector<128x1xf32>
    %cst_8 = arith.constant dense<0.000000e+00> : vector<32x1xf32>
    %9 = tpu.matmul %7, %8, %cst_8 {dimension_numbers = #tpu.dot_dimension_numbers<[1], [0], [0], [1], [0, 0, 1, 1], [], []>} : vector<32x128xf32>, vector<128x1xf32>, vector<32x1xf32> -> vector<32x1xf32>
    %c0_9 = arith.constant 0 : index
    %c0_10 = arith.constant 0 : index
    %10 = vector.load %arg5[%c0_9, %c0_10] : memref<1x1xf32, #tpu.memory_space<vmem>>, vector<1x1xf32>
    %11 = vector.broadcast %10 : vector<1x1xf32> to vector<32x1xf32>
    %12 = arith.addf %9, %11 : vector<32x1xf32>
    %c0_11 = arith.constant 0 : index
    %c0_12 = arith.constant 0 : index
    %13 = vector.load %arg6[%c0_11, %c0_12] : memref<32x1xf32, #tpu.memory_space<vmem>>, vector<32x1xf32>
    tpu.vector_store %arg6[%c0_11, %c0_12], %12 {strides = array<i32>} : memref<32x1xf32, #tpu.memory_space<vmem>>, vector<32x1xf32>,
    return
  }
  func.func @transform_0(%arg0: i32) -> (i32, i32) {
    %c0_i32 = arith.constant 0 : i32
    %c0_i32_0 = arith.constant 0 : i32
    return %arg0, %c0_i32 : i32, i32
  }
  func.func @transform_1(%arg0: i32) -> (i32, i32) {
    %c0_i32 = arith.constant 0 : i32
    %c0_i32_0 = arith.constant 0 : i32
    %c0_i32_1 = arith.constant 0 : i32
    return %c0_i32, %c0_i32_0 : i32, i32
  }
  func.func @transform_2(%arg0: i32) -> (i32, i32) {
    %c0_i32 = arith.constant 0 : i32
    %c0_i32_0 = arith.constant 0 : i32
    %c0_i32_1 = arith.constant 0 : i32
    return %c0_i32, %c0_i32_0 : i32, i32
  }
  func.func @transform_3(%arg0: i32) -> (i32, i32) {
    %c0_i32 = arith.constant 0 : i32
    %c0_i32_0 = arith.constant 0 : i32
    %c0_i32_1 = arith.constant 0 : i32
    return %c0_i32, %c0_i32_0 : i32, i32
  }
  func.func @transform_4(%arg0: i32) -> (i32, i32) {
    %c0_i32 = arith.constant 0 : i32
    %c0_i32_0 = arith.constant 0 : i32
    %c0_i32_1 = arith.constant 0 : i32
    return %c0_i32, %c0_i32_0 : i32, i32
  }
  func.func @transform_5(%arg0: i32) -> (i32, i32) {
    %c0_i32 = arith.constant 0 : i32
    %c0_i32_0 = arith.constant 0 : i32
    return %arg0, %c0_i32 : i32, i32
  }
}

</mosaic_0001>

<llo_original>
// kernel: fno1d_forward.5
$region0: #{fno1d_forward.5}
  #allocation0 [shape = 'u32[]', space=smem, size = 0x4, offset = 0x4, fixed_abs, tag = 'smem constant byte address 0x4 - core index']
  #allocation1 [shape = 'u32[72,128]{1,0:T(1,128)}', space=vmem, size = 0x9000, scoped, tag = 'internal scratch']
  %s0 = inlined_call_operand.vmem [shape: f32[32,2], index: 0, kind: input, shape index: {}]
  %s1 = inlined_call_operand.vmem [shape: f32[2,32], index: 1, kind: input, shape index: {}]
  %s2 = inlined_call_operand.vmem [shape: f32[1,32], index: 2, kind: input, shape index: {}]
  %s3 = inlined_call_operand.vmem [shape: f32[32,32], index: 3, kind: output, shape index: {}]
  %s4 = sld [smem:[#allocation0]]
  $region22: #{fno1d_forward.5} parent=0
    _
  %s6 = ssub.s32 1, %s4
  %s7 = scalar_select 0, %s6, %s4
  // Predicated region
  $region2: #{fno1d_forward.5} parent=0 // pred_check
    _
  $region3: #{fno1d_forward.5} parent=0 // pred_check_branch
    %9 = sbr.rel (0) target = $region5
  $region4: #{fno1d_forward.5} parent=0 // pred_region
    _
  $region5: #{fno1d_forward.5} parent=0 // pred_fallthru
    _
  // Predicated region
  $region6: #{fno1d_forward.5} parent=0 // pred_check
    _
  $region7: #{fno1d_forward.5} parent=0 // pred_check_branch
    %11 = sbr.rel (0) target = $region9
  $region8: #{fno1d_forward.5} parent=0 // pred_region
    _
  $region9: #{fno1d_forward.5} parent=0 // pred_fallthru
    _
  // Predicated region
  $region10: #{fno1d_forward.5} parent=0 // pred_check
    _
  $region11: #{fno1d_forward.5} parent=0 // pred_check_branch
    %13 = sbr.rel (0) target = $region13
  $region12: #{fno1d_forward.5} parent=0 // pred_region
    _
  $region13: #{fno1d_forward.5} parent=0 // pred_fallthru
    _
  %v14 = vld [vmem:[%s0] sm:$0xff]
  %v15 = vld [vmem:[%s0 + $0x8] sm:$0xff]
  %v16 = vld [vmem:[%s0 + $0x10] sm:$0xff]
  %v17 = vld [vmem:[%s0 + $0x18] sm:$0xff]
  %v18 = vld [vmem:[%s1] sm:$0x1]
  %20 = vset.pattern.permute.xlu0 0
  %21 = vperm.xlu0 %20, %v14
  %v22 = vpop.permute.xlu0 %21
  %25 = vset.pattern.permute.xlu0 0
  %26 = vperm.xlu0 %25, %v15
  %v27 = vpop.permute.xlu0 %26
  %30 = vset.pattern.permute.xlu0 0
  %31 = vperm.xlu0 %30, %v16
  %v32 = vpop.permute.xlu0 %31
  %35 = vset.pattern.permute.xlu0 0
  %36 = vperm.xlu0 %35, %v17
  %v37 = vpop.permute.xlu0 %36
  %v39 = vperm.slane %v18, 0
  %v40 = vmul.f32 %v22, %v39
  %v41 = vmul.f32 %v27, %v39
  %v42 = vmul.f32 %v32, %v39
  %v43 = vmul.f32 %v37, %v39
  %v44 = vld [vmem:[%s2] sm:$0x1]
  %v46 = vperm.slane %v44, 0
  %v48 = vadd.f32 %v40, %v46
  %v49 = vadd.f32 %v41, %v46
  %v50 = vadd.f32 %v42, %v46
  %v51 = vadd.f32 %v43, %v46
  %v52 = vld [vmem:[%s1 + $0x1] sm:$0x1]
  %53 = vset.pattern.permute.xlu0 1
  %54 = vperm.xlu0 %53, %v14
  %v55 = vpop.permute.xlu0 %54
  %57 = vset.pattern.permute.xlu0 1
  %58 = vperm.xlu0 %57, %v15
  %v59 = vpop.permute.xlu0 %58
  %61 = vset.pattern.permute.xlu0 1
  %62 = vperm.xlu0 %61, %v16
  %v63 = vpop.permute.xlu0 %62
  %65 = vset.pattern.permute.xlu0 1
  %66 = vperm.xlu0 %65, %v17
  %v67 = vpop.permute.xlu0 %66
  %v69 = vperm.slane %v52, 0
  %v70 = vmul.f32 %v55, %v69
  %v71 = vmul.f32 %v59, %v69
  %v72 = vmul.f32 %v63, %v69
  %v73 = vmul.f32 %v67, %v69
  %v74 = vadd.f32 %v48, %v70
  %v75 = vadd.f32 %v49, %v71
  %v76 = vadd.f32 %v50, %v72
  %v77 = vadd.f32 %v51, %v73
  %vm78 = vcmask 261120
  %79 = vst.msk [vmem:[%s3] sm:$0xff] %vm78, %v74
  %80 = vst.msk [vmem:[%s3 + $0x8] sm:$0xff] %vm78, %v75
  %81 = vst.msk [vmem:[%s3 + $0x10] sm:$0xff] %vm78, %v76
  %82 = vst.msk [vmem:[%s3 + $0x18] sm:$0xff] %vm78, %v77
  // Predicated region
  $region14: #{fno1d_forward.5} parent=0 // pred_check
    _
  $region15: #{fno1d_forward.5} parent=0 // pred_check_branch
    %84 = sbr.rel (0) target = $region17
  $region16: #{fno1d_forward.5} parent=0 // pred_region
    _
  $region17: #{fno1d_forward.5} parent=0 // pred_fallthru
    _
  // Predicated region
  $region18: #{fno1d_forward.5} parent=0 // pred_check
    _
  $region19: #{fno1d_forward.5} parent=0 // pred_check_branch
    %86 = sbr.rel (0) target = $region21
  $region20: #{fno1d_forward.5} parent=0 // pred_region
    _
  $region21: #{fno1d_forward.5} parent=0 // pred_fallthru
    _

// kernel: fno1d_forward.9
$region0: #{fno1d_forward.9}
  #allocation0 [shape = 'u32[]', space=smem, size = 0x4, offset = 0x4, fixed_abs, tag = 'smem constant byte address 0x4 - core index']
  #allocation1 [shape = 'u32[72,128]{1,0:T(1,128)}', space=vmem, size = 0x9000, scoped, tag = 'internal scratch']
  #allocation2 [shape = 'f32[1,1]{1,0:T(1,128)S(1)}', space=vmem, size = 0x200, scoped, tag = 'scoped memory for fno1d_forward.9']
  %s0 = inlined_call_operand.vmem [shape: f32[32,32], index: 0, kind: input, shape index: {}]
  %s1 = inlined_call_operand.vmem [shape: f32[32,128], index: 1, kind: input, shape index: {}]
  %s2 = inlined_call_operand.vmem [shape: f32[1,128], index: 2, kind: input, shape index: {}]
  %s3 = inlined_call_operand.vmem [shape: f32[128,1], index: 3, kind: input, shape index: {}]
  %s4 = inlined_call_operand.<no memory space> [shape: f32[1,1], index: 4, kind: input, shape index: {}]
  %s5 = inlined_call_operand.vmem [shape: f32[32,1], index: 5, kind: output, shape index: {}]
  %s6 = sld [smem:[#allocation0]]
  $region30: #{fno1d_forward.9} parent=0
    _
  %s8 = ssub.s32 1, %s6
  %s9 = scalar_select 0, %s8, %s6
  %v10 = vstv %s4
  %11 = vst [vmem:[#allocation2] sm:$0x1] %v10
  // Predicated region
  $region2: #{fno1d_forward.9} parent=0 // pred_check
    _
  $region3: #{fno1d_forward.9} parent=0 // pred_check_branch
    %13 = sbr.rel (0) target = $region5
  $region4: #{fno1d_forward.9} parent=0 // pred_region
    _
  $region5: #{fno1d_forward.9} parent=0 // pred_fallthru
    _
  // Predicated region
  $region6: #{fno1d_forward.9} parent=0 // pred_check
    _
  $region7: #{fno1d_forward.9} parent=0 // pred_check_branch
    %15 = sbr.rel (0) target = $region9
  $region8: #{fno1d_forward.9} parent=0 // pred_region
    _
  $region9: #{fno1d_forward.9} parent=0 // pred_fallthru
    _
  // Predicated region
  $region10: #{fno1d_forward.9} parent=0 // pred_check
    _
  $region11: #{fno1d_forward.9} parent=0 // pred_check_branch
    %17 = sbr.rel (0) target = $region13
  $region12: #{fno1d_forward.9} parent=0 // pred_region
    _
  $region13: #{fno1d_forward.9} parent=0 // pred_fallthru
    _
  // Predicated region
  $region14: #{fno1d_forward.9} parent=0 // pred_check
    _
  $region15: #{fno1d_forward.9} parent=0 // pred_check_branch
    %19 = sbr.rel (0) target = $region17
  $region16: #{fno1d_forward.9} parent=0 // pred_region
    _
  $region17: #{fno1d_forward.9} parent=0 // pred_fallthru
    _
  // Predicated region
  $region18: #{fno1d_forward.9} parent=0 // pred_check
    _
  $region19: #{fno1d_forward.9} parent=0 // pred_check_branch
    %21 = sbr.rel (0) target = $region21
  $region20: #{fno1d_forward.9} parent=0 // pred_region
    _
  $region21: #{fno1d_forward.9} parent=0 // pred_fallthru
    _
  %v22 = vld [vmem:[%s0] sm:$0xff]
  %v23 = vld [vmem:[%s0 + $0x8] sm:$0xff]
  %v24 = vld [vmem:[%s0 + $0x10] sm:$0xff]
  %v25 = vld [vmem:[%s0 + $0x18] sm:$0xff]
  %v26 = vld [vmem:[%s1] sm:$0xff]
  %v27 = vld [vmem:[%s1 + $0x8] sm:$0xff]
  %v28 = vld [vmem:[%s1 + $0x10] sm:$0xff]
  %v29 = vld [vmem:[%s1 + $0x18] sm:$0xff]
  %v30 = vld [vmem:[%s2] sm:$0x1]
  %v32 = vperm.slane %v30, 0
  %vm34 = vcmask 261120
  %v36 = vsel %vm34, %v22, 0
  %v39 = vsel %vm34, %v23, 0
  %v42 = vsel %vm34, %v24, 0
  %v45 = vsel %vm34, %v25, 0
  %47 = vmatpush.msra.mxu0 0.0
  %48 = vmatpush.msra.mxu0 0.0
  %49 = vmatpush.msra.mxu0 0.0
  %50 = vmatpush.msra.mxu0 0.0
  %51 = vmatpush.msra.mxu0 0.0
  %52 = vmatpush.msra.mxu0 0.0
  %53 = vmatpush.msra.mxu0 0.0
  %54 = vmatpush.msra.mxu0 0.0
  %55 = vmatpush.msra.mxu0 0.0
  %56 = vmatpush.msra.mxu0 0.0
  %57 = vmatpush.msra.mxu0 0.0
  %58 = vmatpush.msra.mxu0 0.0
  %59 = vmatpush.msra.mxu0 %v29
  %60 = vmatpush.msra.mxu0 %v28
  %61 = vmatpush.msra.mxu0 %v27
  %62 = vmatpush.msra.mxu0 %v26
  %63 = vmatmul.f32.gmra.mxu0 %v36
  %v64 = vpop.f32.mrf.mxu0
  %v65 = vadd.f32 %v32, %v64
  %66 = vmatmul.f32.gmra.mxu0 %v39
  %v67 = vpop.f32.mrf.mxu0
  %v68 = vadd.f32 %v32, %v67
  %69 = vmatmul.f32.gmra.mxu0 %v42
  %v70 = vpop.f32.mrf.mxu0
  %v71 = vadd.f32 %v32, %v70
  %72 = vmatmul.f32.gmra.mxu0 %v45
  %v73 = vpop.f32.mrf.mxu0
  %v74 = vadd.f32 %v32, %v73
  %75 = vdwg.mxu0
  %v76 = vmax.f32 %v65, 0.0
  %v77 = vmax.f32 %v68, 0.0
  %v78 = vmax.f32 %v71, 0.0
  %v79 = vmax.f32 %v74, 0.0
  %v80 = vld [vmem:[%s3] sm:$0xff]
  %v81 = vld [vmem:[%s3 + $0x8] sm:$0xff]
  %v82 = vld [vmem:[%s3 + $0x10] sm:$0xff]
  %v83 = vld [vmem:[%s3 + $0x18] sm:$0xff]
  %v84 = vld [vmem:[%s3 + $0x20] sm:$0xff]
  %v85 = vld [vmem:[%s3 + $0x28] sm:$0xff]
  %v86 = vld [vmem:[%s3 + $0x30] sm:$0xff]
  %v87 = vld [vmem:[%s3 + $0x38] sm:$0xff]
  %v88 = vld [vmem:[%s3 + $0x40] sm:$0xff]
  %v89 = vld [vmem:[%s3 + $0x48] sm:$0xff]
  %v90 = vld [vmem:[%s3 + $0x50] sm:$0xff]
  %v91 = vld [vmem:[%s3 + $0x58] sm:$0xff]
  %v92 = vld [vmem:[%s3 + $0x60] sm:$0xff]
  %v93 = vld [vmem:[%s3 + $0x68] sm:$0xff]
  %v94 = vld [vmem:[%s3 + $0x70] sm:$0xff]
  %v95 = vld [vmem:[%s3 + $0x78] sm:$0xff]
  %v96 = vld [vmem:[#allocation2] sm:$0x1]
  %v98 = vperm.slane %v96, 0
  %100 = vmatpush.msra.mxu0 %v95
  %101 = vmatpush.msra.mxu0 %v94
  %102 = vmatpush.msra.mxu0 %v93
  %103 = vmatpush.msra.mxu0 %v92
  %104 = vmatpush.msra.mxu0 %v91
  %105 = vmatpush.msra.mxu0 %v90
  %106 = vmatpush.msra.mxu0 %v89
  %107 = vmatpush.msra.mxu0 %v88
  %108 = vmatpush.msra.mxu0 %v87
  %109 = vmatpush.msra.mxu0 %v86
  %110 = vmatpush.msra.mxu0 %v85
  %111 = vmatpush.msra.mxu0 %v84
  %112 = vmatpush.msra.mxu0 %v83
  %113 = vmatpush.msra.mxu0 %v82
  %114 = vmatpush.msra.mxu0 %v81
  %115 = vmatpush.msra.mxu0 %v80
  %116 = vmatmul.f32.gmra.mxu0 %v76
  %v117 = vpop.f32.mrf.mxu0
  %v118 = vadd.f32 %v98, %v117
  %119 = vmatmul.f32.gmra.mxu0 %v77
  %v120 = vpop.f32.mrf.mxu0
  %v121 = vadd.f32 %v98, %v120
  %122 = vmatmul.f32.gmra.mxu0 %v78
  %v123 = vpop.f32.mrf.mxu0
  %v124 = vadd.f32 %v98, %v123
  %125 = vmatmul.f32.gmra.mxu0 %v79
  %v126 = vpop.f32.mrf.mxu0
  %v127 = vadd.f32 %v98, %v126
  %128 = vdwg.mxu0
  %vm129 = vcmask 7168
  %130 = vst.msk [vmem:[%s5] sm:$0xff] %vm129, %v118
  %131 = vst.msk [vmem:[%s5 + $0x8] sm:$0xff] %vm129, %v121
  %132 = vst.msk [vmem:[%s5 + $0x10] sm:$0xff] %vm129, %v124
  %133 = vst.msk [vmem:[%s5 + $0x18] sm:$0xff] %vm129, %v127
  // Predicated region
  $region22: #{fno1d_forward.9} parent=0 // pred_check
    _
  $region23: #{fno1d_forward.9} parent=0 // pred_check_branch
    %135 = sbr.rel (0) target = $region25
  $region24: #{fno1d_forward.9} parent=0 // pred_region
    _
  $region25: #{fno1d_forward.9} parent=0 // pred_fallthru
    _
  // Predicated region
  $region26: #{fno1d_forward.9} parent=0 // pred_check
    _
  $region27: #{fno1d_forward.9} parent=0 // pred_check_branch
    %137 = sbr.rel (0) target = $region29
  $region28: #{fno1d_forward.9} parent=0 // pred_region
    _
  $region29: #{fno1d_forward.9} parent=0 // pred_fallthru
    _

// kernel: fno1d_forward.6
$region0: #{fno1d_forward.6}
  #allocation0 [shape = 'u32[]', space=smem, size = 0x4, offset = 0x4, fixed_abs, tag = 'smem constant byte address 0x4 - core index']
  #allocation1 [shape = 'u32[72,128]{1,0:T(1,128)}', space=vmem, size = 0x9000, scoped, tag = 'internal scratch']
  %s0 = inlined_call_operand.vmem [shape: f32[2,18,32], index: 0, kind: input, shape index: {}]
  %s1 = inlined_call_operand.vmem [shape: f32[16,18], index: 1, kind: input, shape index: {}]
  %s2 = inlined_call_operand.vmem [shape: f32[64,8,64], index: 2, kind: input, shape index: {}]
  %s3 = inlined_call_operand.vmem [shape: f32[18,16], index: 3, kind: input, shape index: {}]
  %s4 = inlined_call_operand.vmem [shape: f32[32,32], index: 4, kind: input, shape index: {}]
  %s5 = inlined_call_operand.vmem [shape: f32[1,32], index: 5, kind: input, shape index: {}]
  %s6 = inlined_call_operand.vmem [shape: f32[2,18,32], index: 6, kind: output, shape index: {}]
  %s7 = sld [smem:[#allocation0]]
  $region57: #{fno1d_forward.6} parent=0
    _
  %s9 = ssub.s32 1, %s7
  %s10 = scalar_select 0, %s9, %s7
  loop: start=0, step=1, limit=4
  $region2: #{fno1d_forward.6} parent=0 // loop_pre_header
    _
  $region3: #{fno1d_forward.6} parent=0 // loop_header
    %s12 = sphi 0, %s16
    %p13 = scmp.ge.s32.totalorder %s12, 4
    %s22 = sphi 0, %s24
    %s25 = sphi 0, %s22
    %s26 = sphi 0, %s25
    %s42 = sphi 0, %s26
    %s46 = sphi 0, %s46
    %s48 = sphi 0, %s46
    %s49 = sphi 0, %s48
    %s63 = sphi 0, %s49
    %s67 = sphi 0, %s67
    %s69 = sphi 0, %s67
    %s70 = sphi 0, %s69
    %s84 = sphi 0, %s70
    %s88 = sphi 0, %s88
    %s90 = sphi 0, %s88
    %s91 = sphi 0, %s90
    %s105 = sphi 0, %s91
    %s109 = sphi 0, %s109
    %s111 = sphi 0, %s109
    %s112 = sphi 0, %s111
    %s126 = sphi 0, %s112
    %s130 = sphi 0, %s130
    %s132 = sphi 0, %s130
    %s133 = sphi 0, %s132
    %s147 = sphi 0, %s133
    %s153 = sphi 0, %s155
    %s156 = sphi 0, %s153
    %s157 = sphi 0, %s156
    %s173 = sphi 0, %s157
  $region4: #{fno1d_forward.6} parent=0 // loop_header_branch
    %15 = sbr.rel (%p13) target = $region8
  $region5: #{fno1d_forward.6} parent=0 // loop_body
    %s17 = ssub.s32 %s12, 1
    %s18 = ssub.s32 %s12, 2
    %s19 = sadd.s32 %s12, 1
    %s20 = ssub.s32 %s12, %s19
    %p21 = scmp.eq.s32.totalorder %s20, 0
    %s23 = sadd.s32 %s22, 1
    %s24 = scalar_select %p21, %s22, %s23
    %p27 = pneg %p21
    %p28 = scmp.eq.s32.totalorder %s12, 1
    %p29 = por %p27, %p28
    %p30 = scmp.ne.s32.totalorder %s22, %s25
    %p31 = scmp.eq.s32.totalorder %s12, 0
    %p32 = por %p30, %p31
    %p33 = scmp.ne.s32.totalorder %s22, %s25
    %p34 = scmp.eq.s32.totalorder %s17, 1
    %p35 = por %p33, %p34
    %p36 = scmp.ne.s32.totalorder %s25, %s26
    %p37 = scmp.eq.s32.totalorder %s17, 0
    %p38 = por %p36, %p37
    %p39 = scmp.ne.s32.totalorder %s25, %s26
    %p40 = scmp.eq.s32.totalorder %s18, 1
    %p41 = por %p39, %p40
    %p43 = scmp.ne.s32.totalorder %s26, %s42
    %p44 = scmp.eq.s32.totalorder %s18, 0
    %p45 = por %p43, %p44
    %s47 = sadd.s32 %s46, 1
    %p50 = scmp.eq.s32.totalorder %s12, 1
    %p51 = scmp.ne.s32.totalorder %s46, %s48
    %p52 = scmp.eq.s32.totalorder %s12, 0
    %p53 = por %p51, %p52
    %p54 = scmp.ne.s32.totalorder %s46, %s48
    %p55 = scmp.eq.s32.totalorder %s17, 1
    %p56 = por %p54, %p55
    %p57 = scmp.ne.s32.totalorder %s48, %s49
    %p58 = scmp.eq.s32.totalorder %s17, 0
    %p59 = por %p57, %p58
    %p60 = scmp.ne.s32.totalorder %s48, %s49
    %p61 = scmp.eq.s32.totalorder %s18, 1
    %p62 = por %p60, %p61
    %p64 = scmp.ne.s32.totalorder %s49, %s63
    %p65 = scmp.eq.s32.totalorder %s18, 0
    %p66 = por %p64, %p65
    %s68 = sadd.s32 %s67, 1
    %p71 = scmp.eq.s32.totalorder %s12, 1
    %p72 = scmp.ne.s32.totalorder %s67, %s69
    %p73 = scmp.eq.s32.totalorder %s12, 0
    %p74 = por %p72, %p73
    %p75 = scmp.ne.s32.totalorder %s67, %s69
    %p76 = scmp.eq.s32.totalorder %s17, 1
    %p77 = por %p75, %p76
    %p78 = scmp.ne.s32.totalorder %s69, %s70
    %p79 = scmp.eq.s32.totalorder %s17, 0
    %p80 = por %p78, %p79
    %p81 = scmp.ne.s32.totalorder %s69, %s70
    %p82 = scmp.eq.s32.totalorder %s18, 1
    %p83 = por %p81, %p82
    %p85 = scmp.ne.s32.totalorder %s70, %s84
    %p86 = scmp.eq.s32.totalorder %s18, 0
    %p87 = por %p85, %p86
    %s89 = sadd.s32 %s88, 1
    %p92 = scmp.eq.s32.totalorder %s12, 1
    %p93 = scmp.ne.s32.totalorder %s88, %s90
    %p94 = scmp.eq.s32.totalorder %s12, 0
    %p95 = por %p93, %p94
    %p96 = scmp.ne.s32.totalorder %s88, %s90
    %p97 = scmp.eq.s32.totalorder %s17, 1
    %p98 = por %p96, %p97
    %p99 = scmp.ne.s32.totalorder %s90, %s91
    %p100 = scmp.eq.s32.totalorder %s17, 0
    %p101 = por %p99, %p100
    %p102 = scmp.ne.s32.totalorder %s90, %s91
    %p103 = scmp.eq.s32.totalorder %s18, 1
    %p104 = por %p102, %p103
    %p106 = scmp.ne.s32.totalorder %s91, %s105
    %p107 = scmp.eq.s32.totalorder %s18, 0
    %p108 = por %p106, %p107
    %s110 = sadd.s32 %s109, 1
    %p113 = scmp.eq.s32.totalorder %s12, 1
    %p114 = scmp.ne.s32.totalorder %s109, %s111
    %p115 = scmp.eq.s32.totalorder %s12, 0
    %p116 = por %p114, %p115
    %p117 = scmp.ne.s32.totalorder %s109, %s111
    %p118 = scmp.eq.s32.totalorder %s17, 1
    %p119 = por %p117, %p118
    %p120 = scmp.ne.s32.totalorder %s111, %s112
    %p121 = scmp.eq.s32.totalorder %s17, 0
    %p122 = por %p120, %p121
    %p123 = scmp.ne.s32.totalorder %s111, %s112
    %p124 = scmp.eq.s32.totalorder %s18, 1
    %p125 = por %p123, %p124
    %p127 = scmp.ne.s32.totalorder %s112, %s126
    %p128 = scmp.eq.s32.totalorder %s18, 0
    %p129 = por %p127, %p128
    %s131 = sadd.s32 %s130, 1
    %p134 = scmp.eq.s32.totalorder %s12, 1
    %p135 = scmp.ne.s32.totalorder %s130, %s132
    %p136 = scmp.eq.s32.totalorder %s12, 0
    %p137 = por %p135, %p136
    %p138 = scmp.ne.s32.totalorder %s130, %s132
    %p139 = scmp.eq.s32.totalorder %s17, 1
    %p140 = por %p138, %p139
    %p141 = scmp.ne.s32.totalorder %s132, %s133
    %p142 = scmp.eq.s32.totalorder %s17, 0
    %p143 = por %p141, %p142
    %p144 = scmp.ne.s32.totalorder %s132, %s133
    %p145 = scmp.eq.s32.totalorder %s18, 1
    %p146 = por %p144, %p145
    %p148 = scmp.ne.s32.totalorder %s133, %s147
    %p149 = scmp.eq.s32.totalorder %s18, 0
    %p150 = por %p148, %p149
    %s151 = ssub.s32 %s12, %s19
    %p152 = scmp.eq.s32.totalorder %s151, 0
    %s154 = sadd.s32 %s153, 1
    %s155 = scalar_select %p152, %s153, %s154
    %p158 = pneg %p152
    %p159 = scmp.eq.s32.totalorder %s12, 1
    %p160 = por %p158, %p159
    %p161 = scmp.ne.s32.totalorder %s153, %s156
    %p162 = scmp.eq.s32.totalorder %s12, 0
    %p163 = por %p161, %p162
    %p164 = scmp.ne.s32.totalorder %s153, %s156
    %p165 = scmp.eq.s32.totalorder %s17, 1
    %p166 = por %p164, %p165
    %p167 = scmp.ne.s32.totalorder %s156, %s157
    %p168 = scmp.eq.s32.totalorder %s17, 0
    %p169 = por %p167, %p168
    %p170 = scmp.ne.s32.totalorder %s156, %s157
    %p171 = scmp.eq.s32.totalorder %s18, 1
    %p172 = por %p170, %p171
    %p174 = scmp.ne.s32.totalorder %s157, %s173
    %p175 = scmp.eq.s32.totalorder %s18, 0
    %p176 = por %p174, %p175
    %p177 = scmp.le.s32.totalorder 1, %s12
    %p178 = scmp.lt.s32.totalorder %s12, 3
    %p179 = pnand %p177, %p178
    %p180 = pneg %p179
    // Predicated region
    $region9: #{fno1d_forward.6} parent=5 // pred_check
      _
    $region10: #{fno1d_forward.6} parent=5 // pred_check_branch
      %182 = sbr.rel (%p179) target = $region12
    $region11: #{fno1d_forward.6} parent=5 // pred_region
      %s183 = ssub.s32 %s12, 1
      // Predicated region
      $region13: #{fno1d_forward.6} parent=11 // pred_check
        %p184 = pneg %p59
      $region14: #{fno1d_forward.6} parent=11 // pred_check_branch
        %186 = sbr.rel (%p184) target = $region16
      $region15: #{fno1d_forward.6} parent=11 // pred_region
        _
      $region16: #{fno1d_forward.6} parent=11 // pred_fallthru
        _
      // Predicated region
      $region17: #{fno1d_forward.6} parent=11 // pred_check
        %p187 = pneg %p80
      $region18: #{fno1d_forward.6} parent=11 // pred_check_branch
        %189 = sbr.rel (%p187) target = $region20
      $region19: #{fno1d_forward.6} parent=11 // pred_region
        _
      $region20: #{fno1d_forward.6} parent=11 // pred_fallthru
        _
      // Predicated region
      $region21: #{fno1d_forward.6} parent=11 // pred_check
        %p190 = pneg %p101
      $region22: #{fno1d_forward.6} parent=11 // pred_check_branch
        %192 = sbr.rel (%p190) target = $region24
      $region23: #{fno1d_forward.6} parent=11 // pred_region
        _
      $region24: #{fno1d_forward.6} parent=11 // pred_fallthru
        _
      // Predicated region
      $region25: #{fno1d_forward.6} parent=11 // pred_check
        %p193 = pneg %p122
      $region26: #{fno1d_forward.6} parent=11 // pred_check_branch
        %195 = sbr.rel (%p193) target = $region28
      $region27: #{fno1d_forward.6} parent=11 // pred_region
        _
      $region28: #{fno1d_forward.6} parent=11 // pred_fallthru
        _
      // Predicated region
      $region29: #{fno1d_forward.6} parent=11 // pred_check
        %p196 = pneg %p143
      $region30: #{fno1d_forward.6} parent=11 // pred_check_branch
        %198 = sbr.rel (%p196) target = $region32
      $region31: #{fno1d_forward.6} parent=11 // pred_region
        _
      $region32: #{fno1d_forward.6} parent=11 // pred_fallthru
        _
    $region12: #{fno1d_forward.6} parent=5 // pred_fallthru
      _
    %p199 = scmp.lt.s32.totalorder %s12, 2
    // Predicated region
    $region33: #{fno1d_forward.6} parent=5 // pred_check
      %p200 = pneg %p199
    $region34: #{fno1d_forward.6} parent=5 // pred_check_branch
      %202 = sbr.rel (%p200) target = $region36
    $region35: #{fno1d_forward.6} parent=5 // pred_region
      // Predicated region
      $region37: #{fno1d_forward.6} parent=35 // pred_check
        %p203 = pneg %p32
      $region38: #{fno1d_forward.6} parent=35 // pred_check_branch
        %205 = sbr.rel (%p203) target = $region40
      $region39: #{fno1d_forward.6} parent=35 // pred_region
        %p206 = scmp.lt.s32.totalorder %s12, 1
        %s207 = scalar_select %p206, %s12, 1
        %s208 = smul.addr %s207, 3
        %s209 = smul.addr %s208, 8
        %s210 = scalar_lea.vmem %s0, %s209
      $region40: #{fno1d_forward.6} parent=35 // pred_fallthru
        _
    $region36: #{fno1d_forward.6} parent=5 // pred_fallthru
      _
    %p211 = scmp.le.s32.totalorder 1, %s12
    %p212 = scmp.lt.s32.totalorder %s12, 3
    %p213 = pnand %p211, %p212
    %p214 = pneg %p213
    // Predicated region
    $region41: #{fno1d_forward.6} parent=5 // pred_check
      _
    $region42: #{fno1d_forward.6} parent=5 // pred_check_branch
      %216 = sbr.rel (%p213) target = $region44
    $region43: #{fno1d_forward.6} parent=5 // pred_region
      %s217 = ssub.s32 %s12, 1
      %p218 = scmp.lt.s32.totalorder %s17, 1
      %s219 = scalar_select %p218, %s17, 1
      %s220 = smul.addr %s219, 3
      %s221 = smul.addr %s220, 8
      %s222 = scalar_lea.vmem %s0, %s221
      %p223 = pneg %p38
      %p224 = pneg %p35
      %p225 = pneg %p59
      %p226 = pneg %p56
      %p227 = pneg %p80
      %p228 = pneg %p77
      %p229 = pneg %p101
      %p230 = pneg %p98
      %p231 = pneg %p122
      %p232 = pneg %p119
      %p233 = pneg %p143
      %p234 = pneg %p140
      %p235 = pneg %p169
      %p236 = pneg %p166
      %p237 = scmp.lt.s32.totalorder %s17, 1
      %s238 = scalar_select %p237, %s17, 1
      %s239 = smul.addr %s238, 3
      %s240 = smul.addr %s239, 8
      %s241 = scalar_lea.vmem %s6, %s240
      %p242 = scmp.lt.s32.totalorder %s17, 1
      %s243 = scalar_select %p242, %s17, 1
      %s244 = smul.addr %s243, 3
      %s245 = smul.addr %s244, 8
      %s246 = scalar_lea.vmem %s0, %s245
      %p247 = scmp.lt.s32.totalorder %s17, 1
      %s248 = scalar_select %p247, %s17, 1
      %s249 = smul.addr %s248, 3
      %s250 = smul.addr %s249, 8
      %s251 = scalar_lea.vmem %s6, %s250
      %v252 = vld [vmem:[%s246] sm:$0xff]
      %v253 = vld [vmem:[%s246 + $0x8] sm:$0xff]
      %v254 = vld [vmem:[%s246 + $0x10] sm:$0x3]
      %v255 = vld [vmem:[%s1] sm:$0xff]
      %v256 = vld [vmem:[%s1 + $0x8] sm:$0xff]
      %vm257 = vcmask 146432
      %v259 = vsel %vm257, %v255, 0
      %v262 = vsel %vm257, %v256, 0
      %vm264 = vcmask 1041408
      %v266 = vsel %vm264, %v254, 0
      %268 = vmatpush.msra.mxu0 0.0
      %269 = vmatpush.msra.mxu0 0.0
      %270 = vmatpush.msra.mxu0 0.0
      %271 = vmatpush.msra.mxu0 0.0
      %272 = vmatpush.msra.mxu0 0.0
      %273 = vmatpush.msra.mxu0 0.0
      %274 = vmatpush.msra.mxu0 0.0
      %275 = vmatpush.msra.mxu0 0.0
      %276 = vmatpush.msra.mxu0 0.0
      %277 = vmatpush.msra.mxu0 0.0
      %278 = vmatpush.msra.mxu0 0.0
      %279 = vmatpush.msra.mxu0 0.0
      %280 = vmatpush.msra.mxu0 0.0
      %281 = vmatpush.msra.mxu0 %v266
      %282 = vmatpush.msra.mxu0 %v253
      %283 = vmatpush.msra.mxu0 %v252
      %284 = vmatmul.f32.gmra.mxu0 %v259
      %v285 = vpop.f32.mrf.mxu0
      %v286 = vadd.f32 0.0, %v285
      %287 = vmatmul.f32.gmra.mxu0 %v262
      %v288 = vpop.f32.mrf.mxu0
      %v289 = vadd.f32 0.0, %v288
      %290 = vdwg.mxu0
      %v291 = vld [vmem:[%s2] sm:$0xff]
      %293 = vset.pattern.permute.xlu0 0
      %294 = vperm.xlu0 %293, %v286
      %v295 = vpop.permute.xlu0 %294
      %v297 = vmul.f32 %v295, %v291
      %s298 = scalar_lea.vmem %s2, 256
      %v299 = vld [vmem:[%s298] sm:$0xff]
      %301 = vset.pattern.permute.xlu0 0
      %302 = vperm.xlu0 %301, %v289
      %v303 = vpop.permute.xlu0 %302
      %v305 = vmul.f32 %v303, %v299
      %s306 = scalar_lea.vmem %s2, 8
      %v307 = vld [vmem:[%s306] sm:$0xff]
      %308 = vset.pattern.permute.xlu0 1
      %309 = vperm.xlu0 %308, %v286
      %v310 = vpop.permute.xlu0 %309
      %v312 = vmul.f32 %v310, %v307
      %v313 = vadd.f32 %v297, %v312
      %s314 = scalar_lea.vmem %s2, 264
      %v315 = vld [vmem:[%s314] sm:$0xff]
      %316 = vset.pattern.permute.xlu0 1
      %317 = vperm.xlu0 %316, %v289
      %v318 = vpop.permute.xlu0 %317
      %v320 = vmul.f32 %v318, %v315
      %v321 = vadd.f32 %v305, %v320
      %s322 = scalar_lea.vmem %s2, 16
      %v323 = vld [vmem:[%s322] sm:$0xff]
      %324 = vset.pattern.permute.xlu0 2
      %325 = vperm.xlu0 %324, %v286
      %v326 = vpop.permute.xlu0 %325
      %v328 = vmul.f32 %v326, %v323
      %v329 = vadd.f32 %v313, %v328
      %s330 = scalar_lea.vmem %s2, 272
      %v331 = vld [vmem:[%s330] sm:$0xff]
      %332 = vset.pattern.permute.xlu0 2
      %333 = vperm.xlu0 %332, %v289
      %v334 = vpop.permute.xlu0 %333
      %v336 = vmul.f32 %v334, %v331
      %v337 = vadd.f32 %v321, %v336
      %s338 = scalar_lea.vmem %s2, 24
      %v339 = vld [vmem:[%s338] sm:$0xff]
      %340 = vset.pattern.permute.xlu0 3
      %341 = vperm.xlu0 %340, %v286
      %v342 = vpop.permute.xlu0 %341
      %v344 = vmul.f32 %v342, %v339
      %v345 = vadd.f32 %v329, %v344
      %s346 = scalar_lea.vmem %s2, 280
      %v347 = vld [vmem:[%s346] sm:$0xff]
      %348 = vset.pattern.permute.xlu0 3
      %349 = vperm.xlu0 %348, %v289
      %v350 = vpop.permute.xlu0 %349
      %v352 = vmul.f32 %v350, %v347
      %v353 = vadd.f32 %v337, %v352
      %s354 = scalar_lea.vmem %s2, 32
      %v355 = vld [vmem:[%s354] sm:$0xff]
      %356 = vset.pattern.permute.xlu0 4
      %357 = vperm.xlu0 %356, %v286
      %v358 = vpop.permute.xlu0 %357
      %v360 = vmul.f32 %v358, %v355
      %v361 = vadd.f32 %v345, %v360
      %s362 = scalar_lea.vmem %s2, 288
      %v363 = vld [vmem:[%s362] sm:$0xff]
      %364 = vset.pattern.permute.xlu0 4
      %365 = vperm.xlu0 %364, %v289
      %v366 = vpop.permute.xlu0 %365
      %v368 = vmul.f32 %v366, %v363
      %v369 = vadd.f32 %v353, %v368
      %s370 = scalar_lea.vmem %s2, 40
      %v371 = vld [vmem:[%s370] sm:$0xff]
      %372 = vset.pattern.permute.xlu0 5
      %373 = vperm.xlu0 %372, %v286
      %v374 = vpop.permute.xlu0 %373
      %v376 = vmul.f32 %v374, %v371
      %v377 = vadd.f32 %v361, %v376
      %s378 = scalar_lea.vmem %s2, 296
      %v379 = vld [vmem:[%s378] sm:$0xff]
      %380 = vset.pattern.permute.xlu0 5
      %381 = vperm.xlu0 %380, %v289
      %v382 = vpop.permute.xlu0 %381
      %v384 = vmul.f32 %v382, %v379
      %v385 = vadd.f32 %v369, %v384
      %s386 = scalar_lea.vmem %s2, 48
      %v387 = vld [vmem:[%s386] sm:$0xff]
      %388 = vset.pattern.permute.xlu0 6
      %389 = vperm.xlu0 %388, %v286
      %v390 = vpop.permute.xlu0 %389
      %v392 = vmul.f32 %v390, %v387
      %v393 = vadd.f32 %v377, %v392
      %s394 = scalar_lea.vmem %s2, 304
      %v395 = vld [vmem:[%s394] sm:$0xff]
      %396 = vset.pattern.permute.xlu0 6
      %397 = vperm.xlu0 %396, %v289
      %v398 = vpop.permute.xlu0 %397
      %v400 = vmul.f32 %v398, %v395
      %v401 = vadd.f32 %v385, %v400
      %s402 = scalar_lea.vmem %s2, 56
      %v403 = vld [vmem:[%s402] sm:$0xff]
      %404 = vset.pattern.permute.xlu0 7
      %405 = vperm.xlu0 %404, %v286
      %v406 = vpop.permute.xlu0 %405
      %v408 = vmul.f32 %v406, %v403
      %v409 = vadd.f32 %v393, %v408
      %s410 = scalar_lea.vmem %s2, 312
      %v411 = vld [vmem:[%s410] sm:$0xff]
      %412 = vset.pattern.permute.xlu0 7
      %413 = vperm.xlu0 %412, %v289
      %v414 = vpop.permute.xlu0 %413
      %v416 = vmul.f32 %v414, %v411
      %v417 = vadd.f32 %v401, %v416
      %s418 = scalar_lea.vmem %s2, 64
      %v419 = vld [vmem:[%s418] sm:$0xff]
      %420 = vset.pattern.permute.xlu0 8
      %421 = vperm.xlu0 %420, %v286
      %v422 = vpop.permute.xlu0 %421
      %v424 = vmul.f32 %v422, %v419
      %v425 = vadd.f32 %v409, %v424
      %s426 = scalar_lea.vmem %s2, 320
      %v427 = vld [vmem:[%s426] sm:$0xff]
      %428 = vset.pattern.permute.xlu0 8
      %429 = vperm.xlu0 %428, %v289
      %v430 = vpop.permute.xlu0 %429
      %v432 = vmul.f32 %v430, %v427
      %v433 = vadd.f32 %v417, %v432
      %s434 = scalar_lea.vmem %s2, 72
      %v435 = vld [vmem:[%s434] sm:$0xff]
      %436 = vset.pattern.permute.xlu0 9
      %437 = vperm.xlu0 %436, %v286
      %v438 = vpop.permute.xlu0 %437
      %v440 = vmul.f32 %v438, %v435
      %v441 = vadd.f32 %v425, %v440
      %s442 = scalar_lea.vmem %s2, 328
      %v443 = vld [vmem:[%s442] sm:$0xff]
      %444 = vset.pattern.permute.xlu0 9
      %445 = vperm.xlu0 %444, %v289
      %v446 = vpop.permute.xlu0 %445
      %v448 = vmul.f32 %v446, %v443
      %v449 = vadd.f32 %v433, %v448
      %s450 = scalar_lea.vmem %s2, 80
      %v451 = vld [vmem:[%s450] sm:$0xff]
      %452 = vset.pattern.permute.xlu0 10
      %453 = vperm.xlu0 %452, %v286
      %v454 = vpop.permute.xlu0 %453
      %v456 = vmul.f32 %v454, %v451
      %v457 = vadd.f32 %v441, %v456
      %s458 = scalar_lea.vmem %s2, 336
      %v459 = vld [vmem:[%s458] sm:$0xff]
      %460 = vset.pattern.permute.xlu0 10
      %461 = vperm.xlu0 %460, %v289
      %v462 = vpop.permute.xlu0 %461
      %v464 = vmul.f32 %v462, %v459
      %v465 = vadd.f32 %v449, %v464
      %s466 = scalar_lea.vmem %s2, 88
      %v467 = vld [vmem:[%s466] sm:$0xff]
      %468 = vset.pattern.permute.xlu0 11
      %469 = vperm.xlu0 %468, %v286
      %v470 = vpop.permute.xlu0 %469
      %v472 = vmul.f32 %v470, %v467
      %v473 = vadd.f32 %v457, %v472
      %s474 = scalar_lea.vmem %s2, 344
      %v475 = vld [vmem:[%s474] sm:$0xff]
      %476 = vset.pattern.permute.xlu0 11
      %477 = vperm.xlu0 %476, %v289
      %v478 = vpop.permute.xlu0 %477
      %v480 = vmul.f32 %v478, %v475
      %v481 = vadd.f32 %v465, %v480
      %s482 = scalar_lea.vmem %s2, 96
      %v483 = vld [vmem:[%s482] sm:$0xff]
      %484 = vset.pattern.permute.xlu0 12
      %485 = vperm.xlu0 %484, %v286
      %v486 = vpop.permute.xlu0 %485
      %v488 = vmul.f32 %v486, %v483
      %v489 = vadd.f32 %v473, %v488
      %s490 = scalar_lea.vmem %s2, 352
      %v491 = vld [vmem:[%s490] sm:$0xff]
      %492 = vset.pattern.permute.xlu0 12
      %493 = vperm.xlu0 %492, %v289
      %v494 = vpop.permute.xlu0 %493
      %v496 = vmul.f32 %v494, %v491
      %v497 = vadd.f32 %v481, %v496
      %s498 = scalar_lea.vmem %s2, 104
      %v499 = vld [vmem:[%s498] sm:$0xff]
      %500 = vset.pattern.permute.xlu0 13
      %501 = vperm.xlu0 %500, %v286
      %v502 = vpop.permute.xlu0 %501
      %v504 = vmul.f32 %v502, %v499
      %v505 = vadd.f32 %v489, %v504
      %s506 = scalar_lea.vmem %s2, 360
      %v507 = vld [vmem:[%s506] sm:$0xff]
      %508 = vset.pattern.permute.xlu0 13
      %509 = vperm.xlu0 %508, %v289
      %v510 = vpop.permute.xlu0 %509
      %v512 = vmul.f32 %v510, %v507
      %v513 = vadd.f32 %v497, %v512
      %s514 = scalar_lea.vmem %s2, 112
      %v515 = vld [vmem:[%s514] sm:$0xff]
      %516 = vset.pattern.permute.xlu0 14
      %517 = vperm.xlu0 %516, %v286
      %v518 = vpop.permute.xlu0 %517
      %v520 = vmul.f32 %v518, %v515
      %v521 = vadd.f32 %v505, %v520
      %s522 = scalar_lea.vmem %s2, 368
      %v523 = vld [vmem:[%s522] sm:$0xff]
      %524 = vset.pattern.permute.xlu0 14
      %525 = vperm.xlu0 %524, %v289
      %v526 = vpop.permute.xlu0 %525
      %v528 = vmul.f32 %v526, %v523
      %v529 = vadd.f32 %v513, %v528
      %s530 = scalar_lea.vmem %s2, 120
      %v531 = vld [vmem:[%s530] sm:$0xff]
      %532 = vset.pattern.permute.xlu0 15
      %533 = vperm.xlu0 %532, %v286
      %v534 = vpop.permute.xlu0 %533
      %v536 = vmul.f32 %v534, %v531
      %v537 = vadd.f32 %v521, %v536
      %s538 = scalar_lea.vmem %s2, 376
      %v539 = vld [vmem:[%s538] sm:$0xff]
      %540 = vset.pattern.permute.xlu0 15
      %541 = vperm.xlu0 %540, %v289
      %v542 = vpop.permute.xlu0 %541
      %v544 = vmul.f32 %v542, %v539
      %v545 = vadd.f32 %v529, %v544
      %s546 = scalar_lea.vmem %s2, 128
      %v547 = vld [vmem:[%s546] sm:$0xff]
      %548 = vset.pattern.permute.xlu0 16
      %549 = vperm.xlu0 %548, %v286
      %v550 = vpop.permute.xlu0 %549
      %v552 = vmul.f32 %v550, %v547
      %v553 = vadd.f32 %v537, %v552
      %s554 = scalar_lea.vmem %s2, 384
      %v555 = vld [vmem:[%s554] sm:$0xff]
      %556 = vset.pattern.permute.xlu0 16
      %557 = vperm.xlu0 %556, %v289
      %v558 = vpop.permute.xlu0 %557
      %v560 = vmul.f32 %v558, %v555
      %v561 = vadd.f32 %v545, %v560
      %s562 = scalar_lea.vmem %s2, 136
      %v563 = vld [vmem:[%s562] sm:$0xff]
      %564 = vset.pattern.permute.xlu0 17
      %565 = vperm.xlu0 %564, %v286
      %v566 = vpop.permute.xlu0 %565
      %v568 = vmul.f32 %v566, %v563
      %v569 = vadd.f32 %v553, %v568
      %s570 = scalar_lea.vmem %s2, 392
      %v571 = vld [vmem:[%s570] sm:$0xff]
      %572 = vset.pattern.permute.xlu0 17
      %573 = vperm.xlu0 %572, %v289
      %v574 = vpop.permute.xlu0 %573
      %v576 = vmul.f32 %v574, %v571
      %v577 = vadd.f32 %v561, %v576
      %s578 = scalar_lea.vmem %s2, 144
      %v579 = vld [vmem:[%s578] sm:$0xff]
      %580 = vset.pattern.permute.xlu0 18
      %581 = vperm.xlu0 %580, %v286
      %v582 = vpop.permute.xlu0 %581
      %v584 = vmul.f32 %v582, %v579
      %v585 = vadd.f32 %v569, %v584
      %s586 = scalar_lea.vmem %s2, 400
      %v587 = vld [vmem:[%s586] sm:$0xff]
      %588 = vset.pattern.permute.xlu0 18
      %589 = vperm.xlu0 %588, %v289
      %v590 = vpop.permute.xlu0 %589
      %v592 = vmul.f32 %v590, %v587
      %v593 = vadd.f32 %v577, %v592
      %s594 = scalar_lea.vmem %s2, 152
      %v595 = vld [vmem:[%s594] sm:$0xff]
      %596 = vset.pattern.permute.xlu0 19
      %597 = vperm.xlu0 %596, %v286
      %v598 = vpop.permute.xlu0 %597
      %v600 = vmul.f32 %v598, %v595
      %v601 = vadd.f32 %v585, %v600
      %s602 = scalar_lea.vmem %s2, 408
      %v603 = vld [vmem:[%s602] sm:$0xff]
      %604 = vset.pattern.permute.xlu0 19
      %605 = vperm.xlu0 %604, %v289
      %v606 = vpop.permute.xlu0 %605
      %v608 = vmul.f32 %v606, %v603
      %v609 = vadd.f32 %v593, %v608
      %s610 = scalar_lea.vmem %s2, 160
      %v611 = vld [vmem:[%s610] sm:$0xff]
      %612 = vset.pattern.permute.xlu0 20
      %613 = vperm.xlu0 %612, %v286
      %v614 = vpop.permute.xlu0 %613
      %v616 = vmul.f32 %v614, %v611
      %v617 = vadd.f32 %v601, %v616
      %s618 = scalar_lea.vmem %s2, 416
      %v619 = vld [vmem:[%s618] sm:$0xff]
      %620 = vset.pattern.permute.xlu0 20
      %621 = vperm.xlu0 %620, %v289
      %v622 = vpop.permute.xlu0 %621
      %v624 = vmul.f32 %v622, %v619
      %v625 = vadd.f32 %v609, %v624
      %s626 = scalar_lea.vmem %s2, 168
      %v627 = vld [vmem:[%s626] sm:$0xff]
      %628 = vset.pattern.permute.xlu0 21
      %629 = vperm.xlu0 %628, %v286
      %v630 = vpop.permute.xlu0 %629
      %v632 = vmul.f32 %v630, %v627
      %v633 = vadd.f32 %v617, %v632
      %s634 = scalar_lea.vmem %s2, 424
      %v635 = vld [vmem:[%s634] sm:$0xff]
      %636 = vset.pattern.permute.xlu0 21
      %637 = vperm.xlu0 %636, %v289
      %v638 = vpop.permute.xlu0 %637
      %v640 = vmul.f32 %v638, %v635
      %v641 = vadd.f32 %v625, %v640
      %s642 = scalar_lea.vmem %s2, 176
      %v643 = vld [vmem:[%s642] sm:$0xff]
      %644 = vset.pattern.permute.xlu0 22
      %645 = vperm.xlu0 %644, %v286
      %v646 = vpop.permute.xlu0 %645
      %v648 = vmul.f32 %v646, %v643
      %v649 = vadd.f32 %v633, %v648
      %s650 = scalar_lea.vmem %s2, 432
      %v651 = vld [vmem:[%s650] sm:$0xff]
      %652 = vset.pattern.permute.xlu0 22
      %653 = vperm.xlu0 %652, %v289
      %v654 = vpop.permute.xlu0 %653
      %v656 = vmul.f32 %v654, %v651
      %v657 = vadd.f32 %v641, %v656
      %s658 = scalar_lea.vmem %s2, 184
      %v659 = vld [vmem:[%s658] sm:$0xff]
      %660 = vset.pattern.permute.xlu0 23
      %661 = vperm.xlu0 %660, %v286
      %v662 = vpop.permute.xlu0 %661
      %v664 = vmul.f32 %v662, %v659
      %v665 = vadd.f32 %v649, %v664
      %s666 = scalar_lea.vmem %s2, 440
      %v667 = vld [vmem:[%s666] sm:$0xff]
      %668 = vset.pattern.permute.xlu0 23
      %669 = vperm.xlu0 %668, %v289
      %v670 = vpop.permute.xlu0 %669
      %v672 = vmul.f32 %v670, %v667
      %v673 = vadd.f32 %v657, %v672
      %s674 = scalar_lea.vmem %s2, 192
      %v675 = vld [vmem:[%s674] sm:$0xff]
      %676 = vset.pattern.permute.xlu0 24
      %677 = vperm.xlu0 %676, %v286
      %v678 = vpop.permute.xlu0 %677
      %v680 = vmul.f32 %v678, %v675
      %v681 = vadd.f32 %v665, %v680
      %s682 = scalar_lea.vmem %s2, 448
      %v683 = vld [vmem:[%s682] sm:$0xff]
      %684 = vset.pattern.permute.xlu0 24
      %685 = vperm.xlu0 %684, %v289
      %v686 = vpop.permute.xlu0 %685
      %v688 = vmul.f32 %v686, %v683
      %v689 = vadd.f32 %v673, %v688
      %s690 = scalar_lea.vmem %s2, 200
      %v691 = vld [vmem:[%s690] sm:$0xff]
      %692 = vset.pattern.permute.xlu0 25
      %693 = vperm.xlu0 %692, %v286
      %v694 = vpop.permute.xlu0 %693
      %v696 = vmul.f32 %v694, %v691
      %v697 = vadd.f32 %v681, %v696
      %s698 = scalar_lea.vmem %s2, 456
      %v699 = vld [vmem:[%s698] sm:$0xff]
      %700 = vset.pattern.permute.xlu0 25
      %701 = vperm.xlu0 %700, %v289
      %v702 = vpop.permute.xlu0 %701
      %v704 = vmul.f32 %v702, %v699
      %v705 = vadd.f32 %v689, %v704
      %s706 = scalar_lea.vmem %s2, 208
      %v707 = vld [vmem:[%s706] sm:$0xff]
      %708 = vset.pattern.permute.xlu0 26
      %709 = vperm.xlu0 %708, %v286
      %v710 = vpop.permute.xlu0 %709
      %v712 = vmul.f32 %v710, %v707
      %v713 = vadd.f32 %v697, %v712
      %s714 = scalar_lea.vmem %s2, 464
      %v715 = vld [vmem:[%s714] sm:$0xff]
      %716 = vset.pattern.permute.xlu0 26
      %717 = vperm.xlu0 %716, %v289
      %v718 = vpop.permute.xlu0 %717
      %v720 = vmul.f32 %v718, %v715
      %v721 = vadd.f32 %v705, %v720
      %s722 = scalar_lea.vmem %s2, 216
      %v723 = vld [vmem:[%s722] sm:$0xff]
      %724 = vset.pattern.permute.xlu0 27
      %725 = vperm.xlu0 %724, %v286
      %v726 = vpop.permute.xlu0 %725
      %v728 = vmul.f32 %v726, %v723
      %v729 = vadd.f32 %v713, %v728
      %s730 = scalar_lea.vmem %s2, 472
      %v731 = vld [vmem:[%s730] sm:$0xff]
      %732 = vset.pattern.permute.xlu0 27
      %733 = vperm.xlu0 %732, %v289
      %v734 = vpop.permute.xlu0 %733
      %v736 = vmul.f32 %v734, %v731
      %v737 = vadd.f32 %v721, %v736
      %s738 = scalar_lea.vmem %s2, 224
      %v739 = vld [vmem:[%s738] sm:$0xff]
      %740 = vset.pattern.permute.xlu0 28
      %741 = vperm.xlu0 %740, %v286
      %v742 = vpop.permute.xlu0 %741
      %v744 = vmul.f32 %v742, %v739
      %v745 = vadd.f32 %v729, %v744
      %s746 = scalar_lea.vmem %s2, 480
      %v747 = vld [vmem:[%s746] sm:$0xff]
      %748 = vset.pattern.permute.xlu0 28
      %749 = vperm.xlu0 %748, %v289
      %v750 = vpop.permute.xlu0 %749
      %v752 = vmul.f32 %v750, %v747
      %v753 = vadd.f32 %v737, %v752
      %s754 = scalar_lea.vmem %s2, 232
      %v755 = vld [vmem:[%s754] sm:$0xff]
      %756 = vset.pattern.permute.xlu0 29
      %757 = vperm.xlu0 %756, %v286
      %v758 = vpop.permute.xlu0 %757
      %v760 = vmul.f32 %v758, %v755
      %v761 = vadd.f32 %v745, %v760
      %s762 = scalar_lea.vmem %s2, 488
      %v763 = vld [vmem:[%s762] sm:$0xff]
      %764 = vset.pattern.permute.xlu0 29
      %765 = vperm.xlu0 %764, %v289
      %v766 = vpop.permute.xlu0 %765
      %v768 = vmul.f32 %v766, %v763
      %v769 = vadd.f32 %v753, %v768
      %s770 = scalar_lea.vmem %s2, 240
      %v771 = vld [vmem:[%s770] sm:$0xff]
      %772 = vset.pattern.permute.xlu0 30
      %773 = vperm.xlu0 %772, %v286
      %v774 = vpop.permute.xlu0 %773
      %v776 = vmul.f32 %v774, %v771
      %v777 = vadd.f32 %v761, %v776
      %s778 = scalar_lea.vmem %s2, 496
      %v779 = vld [vmem:[%s778] sm:$0xff]
      %780 = vset.pattern.permute.xlu0 30
      %781 = vperm.xlu0 %780, %v289
      %v782 = vpop.permute.xlu0 %781
      %v784 = vmul.f32 %v782, %v779
      %v785 = vadd.f32 %v769, %v784
      %s786 = scalar_lea.vmem %s2, 248
      %v787 = vld [vmem:[%s786] sm:$0xff]
      %788 = vset.pattern.permute.xlu0 31
      %789 = vperm.xlu0 %788, %v286
      %v790 = vpop.permute.xlu0 %789
      %v792 = vmul.f32 %v790, %v787
      %v793 = vadd.f32 %v777, %v792
      %s794 = scalar_lea.vmem %s2, 504
      %v795 = vld [vmem:[%s794] sm:$0xff]
      %796 = vset.pattern.permute.xlu0 31
      %797 = vperm.xlu0 %796, %v289
      %v798 = vpop.permute.xlu0 %797
      %v800 = vmul.f32 %v798, %v795
      %v801 = vadd.f32 %v785, %v800
      %v802 = vadd.f32 %v793, %v801
      %804 = vrot.lane.b32.xlu0 %v802, 96
      %v805 = vpop.permute.xlu0 %804
      %v807 = vld [vmem:[%s3] sm:$0xff]
      %v808 = vld [vmem:[%s3 + $0x8] sm:$0xff]
      %v809 = vld [vmem:[%s3 + $0x10] sm:$0x3]
      %vm810 = vcmask 130048
      %v812 = vsel %vm810, %v807, 0
      %v815 = vsel %vm810, %v808, 0
      %v818 = vsel %vm810, %v809, 0
      %820 = vmatpush.msra.mxu0 0.0
      %821 = vmatpush.msra.mxu0 0.0
      %822 = vmatpush.msra.mxu0 0.0
      %823 = vmatpush.msra.mxu0 0.0
      %824 = vmatpush.msra.mxu0 0.0
      %825 = vmatpush.msra.mxu0 0.0
      %826 = vmatpush.msra.mxu0 0.0
      %827 = vmatpush.msra.mxu0 0.0
      %828 = vmatpush.msra.mxu0 0.0
      %829 = vmatpush.msra.mxu0 0.0
      %830 = vmatpush.msra.mxu0 0.0
      %831 = vmatpush.msra.mxu0 0.0
      %832 = vmatpush.msra.mxu0 0.0
      %833 = vmatpush.msra.mxu0 0.0
      %834 = vmatpush.msra.mxu0 %v805
      %835 = vmatpush.msra.mxu0 %v802
      %836 = vmatmul.f32.gmra.mxu0 %v812
      %v837 = vpop.f32.mrf.mxu0
      %v838 = vadd.f32 0.0, %v837
      %839 = vmatmul.f32.gmra.mxu0 %v815
      %v840 = vpop.f32.mrf.mxu0
      %v841 = vadd.f32 0.0, %v840
      %842 = vmatmul.f32.gmra.mxu0 %v818
      %v843 = vpop.f32.mrf.mxu0
      %v844 = vadd.f32 0.0, %v843
      %845 = vdwg.mxu0
      %v846 = vld [vmem:[%s4] sm:$0xff]
      %v847 = vld [vmem:[%s4 + $0x8] sm:$0xff]
      %v848 = vld [vmem:[%s4 + $0x10] sm:$0xff]
      %v849 = vld [vmem:[%s4 + $0x18] sm:$0xff]
      %v850 = vld [vmem:[%s5] sm:$0x1]
      %v852 = vperm.slane %v850, 0
      %vm854 = vcmask 261120
      %v856 = vsel %vm854, %v252, 0
      %v859 = vsel %vm854, %v253, 0
      %v861 = vsel %vm854, %v254, 0
      %863 = vmatpush.msra.mxu0 0.0
      %864 = vmatpush.msra.mxu0 0.0
      %865 = vmatpush.msra.mxu0 0.0
      %866 = vmatpush.msra.mxu0 0.0
      %867 = vmatpush.msra.mxu0 0.0
      %868 = vmatpush.msra.mxu0 0.0
      %869 = vmatpush.msra.mxu0 0.0
      %870 = vmatpush.msra.mxu0 0.0
      %871 = vmatpush.msra.mxu0 0.0
      %872 = vmatpush.msra.mxu0 0.0
      %873 = vmatpush.msra.mxu0 0.0
      %874 = vmatpush.msra.mxu0 0.0
      %875 = vmatpush.msra.mxu0 %v849
      %876 = vmatpush.msra.mxu0 %v848
      %877 = vmatpush.msra.mxu0 %v847
      %878 = vmatpush.msra.mxu0 %v846
      %879 = vmatmul.f32.gmra.mxu0 %v856
      %v880 = vpop.f32.mrf.mxu0
      %v881 = vadd.f32 %v852, %v880
      %882 = vmatmul.f32.gmra.mxu0 %v859
      %v883 = vpop.f32.mrf.mxu0
      %v884 = vadd.f32 %v852, %v883
      %885 = vmatmul.f32.gmra.mxu0 %v861
      %v886 = vpop.f32.mrf.mxu0
      %v887 = vadd.f32 %v852, %v886
      %888 = vdwg.mxu0
      %v889 = vadd.f32 %v881, %v838
      %v890 = vadd.f32 %v884, %v841
      %v891 = vadd.f32 %v887, %v844
      %v892 = vmax.f32 %v889, 0.0
      %v893 = vmax.f32 %v890, 0.0
      %v894 = vmax.f32 %v891, 0.0
      %895 = vst.msk [vmem:[%s251] sm:$0xff] %vm854, %v892
      %896 = vst.msk [vmem:[%s251 + $0x8] sm:$0xff] %vm854, %v893
      %vm897 = vcmask 254976
      %898 = vst.msk [vmem:[%s251 + $0x10] sm:$0x3] %vm897, %v894
      %p899 = scmp.lt.s32.totalorder %s17, 1
      %s900 = scalar_select %p899, %s17, 1
      %s901 = smul.addr %s900, 3
      %s902 = smul.addr %s901, 8
      %s903 = scalar_lea.vmem %s6, %s902
      // Predicated region
      $region45: #{fno1d_forward.6} parent=43 // pred_check
        %p904 = pneg %p166
      $region46: #{fno1d_forward.6} parent=43 // pred_check_branch
        %906 = sbr.rel (%p904) target = $region48
      $region47: #{fno1d_forward.6} parent=43 // pred_region
        _
      $region48: #{fno1d_forward.6} parent=43 // pred_fallthru
        _
    $region44: #{fno1d_forward.6} parent=5 // pred_fallthru
      _
    %p907 = scmp.le.s32.totalorder 2, %s12
    // Predicated region
    $region49: #{fno1d_forward.6} parent=5 // pred_check
      %p908 = pneg %p907
    $region50: #{fno1d_forward.6} parent=5 // pred_check_branch
      %910 = sbr.rel (%p908) target = $region52
    $region51: #{fno1d_forward.6} parent=5 // pred_region
      %s911 = ssub.s32 %s12, 2
      // Predicated region
      $region53: #{fno1d_forward.6} parent=51 // pred_check
        %p912 = pneg %p172
      $region54: #{fno1d_forward.6} parent=51 // pred_check_branch
        %914 = sbr.rel (%p912) target = $region56
      $region55: #{fno1d_forward.6} parent=51 // pred_region
        %p915 = scmp.lt.s32.totalorder %s18, 1
        %s916 = scalar_select %p915, %s18, 1
        %s917 = smul.addr %s916, 3
        %s918 = smul.addr %s917, 8
        %s919 = scalar_lea.vmem %s6, %s918
      $region56: #{fno1d_forward.6} parent=51 // pred_fallthru
        _
    $region52: #{fno1d_forward.6} parent=5 // pred_fallthru
      _
  $region6: #{fno1d_forward.6} parent=0 // loop_footer
    %s16 = sadd.s32 1, %s12
  $region7: #{fno1d_forward.6} parent=0 // loop_footer_branch
    %11 = sbr.rel target = $region3
  $region8: #{fno1d_forward.6} parent=0 // loop_exit
    _

// kernel: fno1d_forward.8
$region0: #{fno1d_forward.8}
  #allocation0 [shape = 'u32[]', space=smem, size = 0x4, offset = 0x4, fixed_abs, tag = 'smem constant byte address 0x4 - core index']
  #allocation1 [shape = 'u32[72,128]{1,0:T(1,128)}', space=vmem, size = 0x9000, scoped, tag = 'internal scratch']
  %s0 = inlined_call_operand.vmem [shape: f32[2,18,32], index: 0, kind: input, shape index: {}]
  %s1 = inlined_call_operand.vmem [shape: f32[16,18], index: 1, kind: input, shape index: {}]
  %s2 = inlined_call_operand.vmem [shape: f32[64,8,64], index: 2, kind: input, shape index: {}]
  %s3 = inlined_call_operand.vmem [shape: f32[18,16], index: 3, kind: input, shape index: {}]
  %s4 = inlined_call_operand.vmem [shape: f32[32,32], index: 4, kind: input, shape index: {}]
  %s5 = inlined_call_operand.vmem [shape: f32[1,32], index: 5, kind: input, shape index: {}]
  %s6 = inlined_call_operand.vmem [shape: f32[2,18,32], index: 6, kind: output, shape index: {}]
  %s7 = sld [smem:[#allocation0]]
  $region57: #{fno1d_forward.8} parent=0
    _
  %s9 = ssub.s32 1, %s7
  %s10 = scalar_select 0, %s9, %s7
  loop: start=0, step=1, limit=4
  $region2: #{fno1d_forward.8} parent=0 // loop_pre_header
    _
  $region3: #{fno1d_forward.8} parent=0 // loop_header
    %s12 = sphi 0, %s16
    %p13 = scmp.ge.s32.totalorder %s12, 4
    %s22 = sphi 0, %s24
    %s25 = sphi 0, %s22
    %s26 = sphi 0, %s25
    %s42 = sphi 0, %s26
    %s46 = sphi 0, %s46
    %s48 = sphi 0, %s46
    %s49 = sphi 0, %s48
    %s63 = sphi 0, %s49
    %s67 = sphi 0, %s67
    %s69 = sphi 0, %s67
    %s70 = sphi 0, %s69
    %s84 = sphi 0, %s70
    %s88 = sphi 0, %s88
    %s90 = sphi 0, %s88
    %s91 = sphi 0, %s90
    %s105 = sphi 0, %s91
    %s109 = sphi 0, %s109
    %s111 = sphi 0, %s109
    %s112 = sphi 0, %s111
    %s126 = sphi 0, %s112
    %s130 = sphi 0, %s130
    %s132 = sphi 0, %s130
    %s133 = sphi 0, %s132
    %s147 = sphi 0, %s133
    %s153 = sphi 0, %s155
    %s156 = sphi 0, %s153
    %s157 = sphi 0, %s156
    %s173 = sphi 0, %s157
  $region4: #{fno1d_forward.8} parent=0 // loop_header_branch
    %15 = sbr.rel (%p13) target = $region8
  $region5: #{fno1d_forward.8} parent=0 // loop_body
    %s17 = ssub.s32 %s12, 1
    %s18 = ssub.s32 %s12, 2
    %s19 = sadd.s32 %s12, 1
    %s20 = ssub.s32 %s12, %s19
    %p21 = scmp.eq.s32.totalorder %s20, 0
    %s23 = sadd.s32 %s22, 1
    %s24 = scalar_select %p21, %s22, %s23
    %p27 = pneg %p21
    %p28 = scmp.eq.s32.totalorder %s12, 1
    %p29 = por %p27, %p28
    %p30 = scmp.ne.s32.totalorder %s22, %s25
    %p31 = scmp.eq.s32.totalorder %s12, 0
    %p32 = por %p30, %p31
    %p33 = scmp.ne.s32.totalorder %s22, %s25
    %p34 = scmp.eq.s32.totalorder %s17, 1
    %p35 = por %p33, %p34
    %p36 = scmp.ne.s32.totalorder %s25, %s26
    %p37 = scmp.eq.s32.totalorder %s17, 0
    %p38 = por %p36, %p37
    %p39 = scmp.ne.s32.totalorder %s25, %s26
    %p40 = scmp.eq.s32.totalorder %s18, 1
    %p41 = por %p39, %p40
    %p43 = scmp.ne.s32.totalorder %s26, %s42
    %p44 = scmp.eq.s32.totalorder %s18, 0
    %p45 = por %p43, %p44
    %s47 = sadd.s32 %s46, 1
    %p50 = scmp.eq.s32.totalorder %s12, 1
    %p51 = scmp.ne.s32.totalorder %s46, %s48
    %p52 = scmp.eq.s32.totalorder %s12, 0
    %p53 = por %p51, %p52
    %p54 = scmp.ne.s32.totalorder %s46, %s48
    %p55 = scmp.eq.s32.totalorder %s17, 1
    %p56 = por %p54, %p55
    %p57 = scmp.ne.s32.totalorder %s48, %s49
    %p58 = scmp.eq.s32.totalorder %s17, 0
    %p59 = por %p57, %p58
    %p60 = scmp.ne.s32.totalorder %s48, %s49
    %p61 = scmp.eq.s32.totalorder %s18, 1
    %p62 = por %p60, %p61
    %p64 = scmp.ne.s32.totalorder %s49, %s63
    %p65 = scmp.eq.s32.totalorder %s18, 0
    %p66 = por %p64, %p65
    %s68 = sadd.s32 %s67, 1
    %p71 = scmp.eq.s32.totalorder %s12, 1
    %p72 = scmp.ne.s32.totalorder %s67, %s69
    %p73 = scmp.eq.s32.totalorder %s12, 0
    %p74 = por %p72, %p73
    %p75 = scmp.ne.s32.totalorder %s67, %s69
    %p76 = scmp.eq.s32.totalorder %s17, 1
    %p77 = por %p75, %p76
    %p78 = scmp.ne.s32.totalorder %s69, %s70
    %p79 = scmp.eq.s32.totalorder %s17, 0
    %p80 = por %p78, %p79
    %p81 = scmp.ne.s32.totalorder %s69, %s70
    %p82 = scmp.eq.s32.totalorder %s18, 1
    %p83 = por %p81, %p82
    %p85 = scmp.ne.s32.totalorder %s70, %s84
    %p86 = scmp.eq.s32.totalorder %s18, 0
    %p87 = por %p85, %p86
    %s89 = sadd.s32 %s88, 1
    %p92 = scmp.eq.s32.totalorder %s12, 1
    %p93 = scmp.ne.s32.totalorder %s88, %s90
    %p94 = scmp.eq.s32.totalorder %s12, 0
    %p95 = por %p93, %p94
    %p96 = scmp.ne.s32.totalorder %s88, %s90
    %p97 = scmp.eq.s32.totalorder %s17, 1
    %p98 = por %p96, %p97
    %p99 = scmp.ne.s32.totalorder %s90, %s91
    %p100 = scmp.eq.s32.totalorder %s17, 0
    %p101 = por %p99, %p100
    %p102 = scmp.ne.s32.totalorder %s90, %s91
    %p103 = scmp.eq.s32.totalorder %s18, 1
    %p104 = por %p102, %p103
    %p106 = scmp.ne.s32.totalorder %s91, %s105
    %p107 = scmp.eq.s32.totalorder %s18, 0
    %p108 = por %p106, %p107
    %s110 = sadd.s32 %s109, 1
    %p113 = scmp.eq.s32.totalorder %s12, 1
    %p114 = scmp.ne.s32.totalorder %s109, %s111
    %p115 = scmp.eq.s32.totalorder %s12, 0
    %p116 = por %p114, %p115
    %p117 = scmp.ne.s32.totalorder %s109, %s111
    %p118 = scmp.eq.s32.totalorder %s17, 1
    %p119 = por %p117, %p118
    %p120 = scmp.ne.s32.totalorder %s111, %s112
    %p121 = scmp.eq.s32.totalorder %s17, 0
    %p122 = por %p120, %p121
    %p123 = scmp.ne.s32.totalorder %s111, %s112
    %p124 = scmp.eq.s32.totalorder %s18, 1
    %p125 = por %p123, %p124
    %p127 = scmp.ne.s32.totalorder %s112, %s126
    %p128 = scmp.eq.s32.totalorder %s18, 0
    %p129 = por %p127, %p128
    %s131 = sadd.s32 %s130, 1
    %p134 = scmp.eq.s32.totalorder %s12, 1
    %p135 = scmp.ne.s32.totalorder %s130, %s132
    %p136 = scmp.eq.s32.totalorder %s12, 0
    %p137 = por %p135, %p136
    %p138 = scmp.ne.s32.totalorder %s130, %s132
    %p139 = scmp.eq.s32.totalorder %s17, 1
    %p140 = por %p138, %p139
    %p141 = scmp.ne.s32.totalorder %s132, %s133
    %p142 = scmp.eq.s32.totalorder %s17, 0
    %p143 = por %p141, %p142
    %p144 = scmp.ne.s32.totalorder %s132, %s133
    %p145 = scmp.eq.s32.totalorder %s18, 1
    %p146 = por %p144, %p145
    %p148 = scmp.ne.s32.totalorder %s133, %s147
    %p149 = scmp.eq.s32.totalorder %s18, 0
    %p150 = por %p148, %p149
    %s151 = ssub.s32 %s12, %s19
    %p152 = scmp.eq.s32.totalorder %s151, 0
    %s154 = sadd.s32 %s153, 1
    %s155 = scalar_select %p152, %s153, %s154
    %p158 = pneg %p152
    %p159 = scmp.eq.s32.totalorder %s12, 1
    %p160 = por %p158, %p159
    %p161 = scmp.ne.s32.totalorder %s153, %s156
    %p162 = scmp.eq.s32.totalorder %s12, 0
    %p163 = por %p161, %p162
    %p164 = scmp.ne.s32.totalorder %s153, %s156
    %p165 = scmp.eq.s32.totalorder %s17, 1
    %p166 = por %p164, %p165
    %p167 = scmp.ne.s32.totalorder %s156, %s157
    %p168 = scmp.eq.s32.totalorder %s17, 0
    %p169 = por %p167, %p168
    %p170 = scmp.ne.s32.totalorder %s156, %s157
    %p171 = scmp.eq.s32.totalorder %s18, 1
    %p172 = por %p170, %p171
    %p174 = scmp.ne.s32.totalorder %s157, %s173
    %p175 = scmp.eq.s32.totalorder %s18, 0
    %p176 = por %p174, %p175
    %p177 = scmp.le.s32.totalorder 1, %s12
    %p178 = scmp.lt.s32.totalorder %s12, 3
    %p179 = pnand %p177, %p178
    %p180 = pneg %p179
    // Predicated region
    $region9: #{fno1d_forward.8} parent=5 // pred_check
      _
    $region10: #{fno1d_forward.8} parent=5 // pred_check_branch
      %182 = sbr.rel (%p179) target = $region12
    $region11: #{fno1d_forward.8} parent=5 // pred_region
      %s183 = ssub.s32 %s12, 1
      // Predicated region
      $region13: #{fno1d_forward.8} parent=11 // pred_check
        %p184 = pneg %p59
      $region14: #{fno1d_forward.8} parent=11 // pred_check_branch
        %186 = sbr.rel (%p184) target = $region16
      $region15: #{fno1d_forward.8} parent=11 // pred_region
        _
      $region16: #{fno1d_forward.8} parent=11 // pred_fallthru
        _
      // Predicated region
      $region17: #{fno1d_forward.8} parent=11 // pred_check
        %p187 = pneg %p80
      $region18: #{fno1d_forward.8} parent=11 // pred_check_branch
        %189 = sbr.rel (%p187) target = $region20
      $region19: #{fno1d_forward.8} parent=11 // pred_region
        _
      $region20: #{fno1d_forward.8} parent=11 // pred_fallthru
        _
      // Predicated region
      $region21: #{fno1d_forward.8} parent=11 // pred_check
        %p190 = pneg %p101
      $region22: #{fno1d_forward.8} parent=11 // pred_check_branch
        %192 = sbr.rel (%p190) target = $region24
      $region23: #{fno1d_forward.8} parent=11 // pred_region
        _
      $region24: #{fno1d_forward.8} parent=11 // pred_fallthru
        _
      // Predicated region
      $region25: #{fno1d_forward.8} parent=11 // pred_check
        %p193 = pneg %p122
      $region26: #{fno1d_forward.8} parent=11 // pred_check_branch
        %195 = sbr.rel (%p193) target = $region28
      $region27: #{fno1d_forward.8} parent=11 // pred_region
        _
      $region28: #{fno1d_forward.8} parent=11 // pred_fallthru
        _
      // Predicated region
      $region29: #{fno1d_forward.8} parent=11 // pred_check
        %p196 = pneg %p143
      $region30: #{fno1d_forward.8} parent=11 // pred_check_branch
        %198 = sbr.rel (%p196) target = $region32
      $region31: #{fno1d_forward.8} parent=11 // pred_region
        _
      $region32: #{fno1d_forward.8} parent=11 // pred_fallthru
        _
    $region12: #{fno1d_forward.8} parent=5 // pred_fallthru
      _
    %p199 = scmp.lt.s32.totalorder %s12, 2
    // Predicated region
    $region33: #{fno1d_forward.8} parent=5 // pred_check
      %p200 = pneg %p199
    $region34: #{fno1d_forward.8} parent=5 // pred_check_branch
      %202 = sbr.rel (%p200) target = $region36
    $region35: #{fno1d_forward.8} parent=5 // pred_region
      // Predicated region
      $region37: #{fno1d_forward.8} parent=35 // pred_check
        %p203 = pneg %p32
      $region38: #{fno1d_forward.8} parent=35 // pred_check_branch
        %205 = sbr.rel (%p203) target = $region40
      $region39: #{fno1d_forward.8} parent=35 // pred_region
        %p206 = scmp.lt.s32.totalorder %s12, 1
        %s207 = scalar_select %p206, %s12, 1
        %s208 = smul.addr %s207, 3
        %s209 = smul.addr %s208, 8
        %s210 = scalar_lea.vmem %s0, %s209
      $region40: #{fno1d_forward.8} parent=35 // pred_fallthru
        _
    $region36: #{fno1d_forward.8} parent=5 // pred_fallthru
      _
    %p211 = scmp.le.s32.totalorder 1, %s12
    %p212 = scmp.lt.s32.totalorder %s12, 3
    %p213 = pnand %p211, %p212
    %p214 = pneg %p213
    // Predicated region
    $region41: #{fno1d_forward.8} parent=5 // pred_check
      _
    $region42: #{fno1d_forward.8} parent=5 // pred_check_branch
      %216 = sbr.rel (%p213) target = $region44
    $region43: #{fno1d_forward.8} parent=5 // pred_region
      %s217 = ssub.s32 %s12, 1
      %p218 = scmp.lt.s32.totalorder %s17, 1
      %s219 = scalar_select %p218, %s17, 1
      %s220 = smul.addr %s219, 3
      %s221 = smul.addr %s220, 8
      %s222 = scalar_lea.vmem %s0, %s221
      %p223 = pneg %p38
      %p224 = pneg %p35
      %p225 = pneg %p59
      %p226 = pneg %p56
      %p227 = pneg %p80
      %p228 = pneg %p77
      %p229 = pneg %p101
      %p230 = pneg %p98
      %p231 = pneg %p122
      %p232 = pneg %p119
      %p233 = pneg %p143
      %p234 = pneg %p140
      %p235 = pneg %p169
      %p236 = pneg %p166
      %p237 = scmp.lt.s32.totalorder %s17, 1
      %s238 = scalar_select %p237, %s17, 1
      %s239 = smul.addr %s238, 3
      %s240 = smul.addr %s239, 8
      %s241 = scalar_lea.vmem %s6, %s240
      %p242 = scmp.lt.s32.totalorder %s17, 1
      %s243 = scalar_select %p242, %s17, 1
      %s244 = smul.addr %s243, 3
      %s245 = smul.addr %s244, 8
      %s246 = scalar_lea.vmem %s0, %s245
      %p247 = scmp.lt.s32.totalorder %s17, 1
      %s248 = scalar_select %p247, %s17, 1
      %s249 = smul.addr %s248, 3
      %s250 = smul.addr %s249, 8
      %s251 = scalar_lea.vmem %s6, %s250
      %v252 = vld [vmem:[%s246] sm:$0xff]
      %v253 = vld [vmem:[%s246 + $0x8] sm:$0xff]
      %v254 = vld [vmem:[%s246 + $0x10] sm:$0x3]
      %v255 = vld [vmem:[%s1] sm:$0xff]
      %v256 = vld [vmem:[%s1 + $0x8] sm:$0xff]
      %vm257 = vcmask 146432
      %v259 = vsel %vm257, %v255, 0
      %v262 = vsel %vm257, %v256, 0
      %vm264 = vcmask 1041408
      %v266 = vsel %vm264, %v254, 0
      %268 = vmatpush.msra.mxu0 0.0
      %269 = vmatpush.msra.mxu0 0.0
      %270 = vmatpush.msra.mxu0 0.0
      %271 = vmatpush.msra.mxu0 0.0
      %272 = vmatpush.msra.mxu0 0.0
      %273 = vmatpush.msra.mxu0 0.0
      %274 = vmatpush.msra.mxu0 0.0
      %275 = vmatpush.msra.mxu0 0.0
      %276 = vmatpush.msra.mxu0 0.0
      %277 = vmatpush.msra.mxu0 0.0
      %278 = vmatpush.msra.mxu0 0.0
      %279 = vmatpush.msra.mxu0 0.0
      %280 = vmatpush.msra.mxu0 0.0
      %281 = vmatpush.msra.mxu0 %v266
      %282 = vmatpush.msra.mxu0 %v253
      %283 = vmatpush.msra.mxu0 %v252
      %284 = vmatmul.f32.gmra.mxu0 %v259
      %v285 = vpop.f32.mrf.mxu0
      %v286 = vadd.f32 0.0, %v285
      %287 = vmatmul.f32.gmra.mxu0 %v262
      %v288 = vpop.f32.mrf.mxu0
      %v289 = vadd.f32 0.0, %v288
      %290 = vdwg.mxu0
      %v291 = vld [vmem:[%s2] sm:$0xff]
      %293 = vset.pattern.permute.xlu0 0
      %294 = vperm.xlu0 %293, %v286
      %v295 = vpop.permute.xlu0 %294
      %v297 = vmul.f32 %v295, %v291
      %s298 = scalar_lea.vmem %s2, 256
      %v299 = vld [vmem:[%s298] sm:$0xff]
      %301 = vset.pattern.permute.xlu0 0
      %302 = vperm.xlu0 %301, %v289
      %v303 = vpop.permute.xlu0 %302
      %v305 = vmul.f32 %v303, %v299
      %s306 = scalar_lea.vmem %s2, 8
      %v307 = vld [vmem:[%s306] sm:$0xff]
      %308 = vset.pattern.permute.xlu0 1
      %309 = vperm.xlu0 %308, %v286
      %v310 = vpop.permute.xlu0 %309
      %v312 = vmul.f32 %v310, %v307
      %v313 = vadd.f32 %v297, %v312
      %s314 = scalar_lea.vmem %s2, 264
      %v315 = vld [vmem:[%s314] sm:$0xff]
      %316 = vset.pattern.permute.xlu0 1
      %317 = vperm.xlu0 %316, %v289
      %v318 = vpop.permute.xlu0 %317
      %v320 = vmul.f32 %v318, %v315
      %v321 = vadd.f32 %v305, %v320
      %s322 = scalar_lea.vmem %s2, 16
      %v323 = vld [vmem:[%s322] sm:$0xff]
      %324 = vset.pattern.permute.xlu0 2
      %325 = vperm.xlu0 %324, %v286
      %v326 = vpop.permute.xlu0 %325
      %v328 = vmul.f32 %v326, %v323
      %v329 = vadd.f32 %v313, %v328
      %s330 = scalar_lea.vmem %s2, 272
      %v331 = vld [vmem:[%s330] sm:$0xff]
      %332 = vset.pattern.permute.xlu0 2
      %333 = vperm.xlu0 %332, %v289
      %v334 = vpop.permute.xlu0 %333
      %v336 = vmul.f32 %v334, %v331
      %v337 = vadd.f32 %v321, %v336
      %s338 = scalar_lea.vmem %s2, 24
      %v339 = vld [vmem:[%s338] sm:$0xff]
      %340 = vset.pattern.permute.xlu0 3
      %341 = vperm.xlu0 %340, %v286
      %v342 = vpop.permute.xlu0 %341
      %v344 = vmul.f32 %v342, %v339
      %v345 = vadd.f32 %v329, %v344
      %s346 = scalar_lea.vmem %s2, 280
      %v347 = vld [vmem:[%s346] sm:$0xff]
      %348 = vset.pattern.permute.xlu0 3
      %349 = vperm.xlu0 %348, %v289
      %v350 = vpop.permute.xlu0 %349
      %v352 = vmul.f32 %v350, %v347
      %v353 = vadd.f32 %v337, %v352
      %s354 = scalar_lea.vmem %s2, 32
      %v355 = vld [vmem:[%s354] sm:$0xff]
      %356 = vset.pattern.permute.xlu0 4
      %357 = vperm.xlu0 %356, %v286
      %v358 = vpop.permute.xlu0 %357
      %v360 = vmul.f32 %v358, %v355
      %v361 = vadd.f32 %v345, %v360
      %s362 = scalar_lea.vmem %s2, 288
      %v363 = vld [vmem:[%s362] sm:$0xff]
      %364 = vset.pattern.permute.xlu0 4
      %365 = vperm.xlu0 %364, %v289
      %v366 = vpop.permute.xlu0 %365
      %v368 = vmul.f32 %v366, %v363
      %v369 = vadd.f32 %v353, %v368
      %s370 = scalar_lea.vmem %s2, 40
      %v371 = vld [vmem:[%s370] sm:$0xff]
      %372 = vset.pattern.permute.xlu0 5
      %373 = vperm.xlu0 %372, %v286
      %v374 = vpop.permute.xlu0 %373
      %v376 = vmul.f32 %v374, %v371
      %v377 = vadd.f32 %v361, %v376
      %s378 = scalar_lea.vmem %s2, 296
      %v379 = vld [vmem:[%s378] sm:$0xff]
      %380 = vset.pattern.permute.xlu0 5
      %381 = vperm.xlu0 %380, %v289
      %v382 = vpop.permute.xlu0 %381
      %v384 = vmul.f32 %v382, %v379
      %v385 = vadd.f32 %v369, %v384
      %s386 = scalar_lea.vmem %s2, 48
      %v387 = vld [vmem:[%s386] sm:$0xff]
      %388 = vset.pattern.permute.xlu0 6
      %389 = vperm.xlu0 %388, %v286
      %v390 = vpop.permute.xlu0 %389
      %v392 = vmul.f32 %v390, %v387
      %v393 = vadd.f32 %v377, %v392
      %s394 = scalar_lea.vmem %s2, 304
      %v395 = vld [vmem:[%s394] sm:$0xff]
      %396 = vset.pattern.permute.xlu0 6
      %397 = vperm.xlu0 %396, %v289
      %v398 = vpop.permute.xlu0 %397
      %v400 = vmul.f32 %v398, %v395
      %v401 = vadd.f32 %v385, %v400
      %s402 = scalar_lea.vmem %s2, 56
      %v403 = vld [vmem:[%s402] sm:$0xff]
      %404 = vset.pattern.permute.xlu0 7
      %405 = vperm.xlu0 %404, %v286
      %v406 = vpop.permute.xlu0 %405
      %v408 = vmul.f32 %v406, %v403
      %v409 = vadd.f32 %v393, %v408
      %s410 = scalar_lea.vmem %s2, 312
      %v411 = vld [vmem:[%s410] sm:$0xff]
      %412 = vset.pattern.permute.xlu0 7
      %413 = vperm.xlu0 %412, %v289
      %v414 = vpop.permute.xlu0 %413
      %v416 = vmul.f32 %v414, %v411
      %v417 = vadd.f32 %v401, %v416
      %s418 = scalar_lea.vmem %s2, 64
      %v419 = vld [vmem:[%s418] sm:$0xff]
      %420 = vset.pattern.permute.xlu0 8
      %421 = vperm.xlu0 %420, %v286
      %v422 = vpop.permute.xlu0 %421
      %v424 = vmul.f32 %v422, %v419
      %v425 = vadd.f32 %v409, %v424
      %s426 = scalar_lea.vmem %s2, 320
      %v427 = vld [vmem:[%s426] sm:$0xff]
      %428 = vset.pattern.permute.xlu0 8
      %429 = vperm.xlu0 %428, %v289
      %v430 = vpop.permute.xlu0 %429
      %v432 = vmul.f32 %v430, %v427
      %v433 = vadd.f32 %v417, %v432
      %s434 = scalar_lea.vmem %s2, 72
      %v435 = vld [vmem:[%s434] sm:$0xff]
      %436 = vset.pattern.permute.xlu0 9
      %437 = vperm.xlu0 %436, %v286
      %v438 = vpop.permute.xlu0 %437
      %v440 = vmul.f32 %v438, %v435
      %v441 = vadd.f32 %v425, %v440
      %s442 = scalar_lea.vmem %s2, 328
      %v443 = vld [vmem:[%s442] sm:$0xff]
      %444 = vset.pattern.permute.xlu0 9
      %445 = vperm.xlu0 %444, %v289
      %v446 = vpop.permute.xlu0 %445
      %v448 = vmul.f32 %v446, %v443
      %v449 = vadd.f32 %v433, %v448
      %s450 = scalar_lea.vmem %s2, 80
      %v451 = vld [vmem:[%s450] sm:$0xff]
      %452 = vset.pattern.permute.xlu0 10
      %453 = vperm.xlu0 %452, %v286
      %v454 = vpop.permute.xlu0 %453
      %v456 = vmul.f32 %v454, %v451
      %v457 = vadd.f32 %v441, %v456
      %s458 = scalar_lea.vmem %s2, 336
      %v459 = vld [vmem:[%s458] sm:$0xff]
      %460 = vset.pattern.permute.xlu0 10
      %461 = vperm.xlu0 %460, %v289
      %v462 = vpop.permute.xlu0 %461
      %v464 = vmul.f32 %v462, %v459
      %v465 = vadd.f32 %v449, %v464
      %s466 = scalar_lea.vmem %s2, 88
      %v467 = vld [vmem:[%s466] sm:$0xff]
      %468 = vset.pattern.permute.xlu0 11
      %469 = vperm.xlu0 %468, %v286
      %v470 = vpop.permute.xlu0 %469
      %v472 = vmul.f32 %v470, %v467
      %v473 = vadd.f32 %v457, %v472
      %s474 = scalar_lea.vmem %s2, 344
      %v475 = vld [vmem:[%s474] sm:$0xff]
      %476 = vset.pattern.permute.xlu0 11
      %477 = vperm.xlu0 %476, %v289
      %v478 = vpop.permute.xlu0 %477
      %v480 = vmul.f32 %v478, %v475
      %v481 = vadd.f32 %v465, %v480
      %s482 = scalar_lea.vmem %s2, 96
      %v483 = vld [vmem:[%s482] sm:$0xff]
      %484 = vset.pattern.permute.xlu0 12
      %485 = vperm.xlu0 %484, %v286
      %v486 = vpop.permute.xlu0 %485
      %v488 = vmul.f32 %v486, %v483
      %v489 = vadd.f32 %v473, %v488
      %s490 = scalar_lea.vmem %s2, 352
      %v491 = vld [vmem:[%s490] sm:$0xff]
      %492 = vset.pattern.permute.xlu0 12
      %493 = vperm.xlu0 %492, %v289
      %v494 = vpop.permute.xlu0 %493
      %v496 = vmul.f32 %v494, %v491
      %v497 = vadd.f32 %v481, %v496
      %s498 = scalar_lea.vmem %s2, 104
      %v499 = vld [vmem:[%s498] sm:$0xff]
      %500 = vset.pattern.permute.xlu0 13
      %501 = vperm.xlu0 %500, %v286
      %v502 = vpop.permute.xlu0 %501
      %v504 = vmul.f32 %v502, %v499
      %v505 = vadd.f32 %v489, %v504
      %s506 = scalar_lea.vmem %s2, 360
      %v507 = vld [vmem:[%s506] sm:$0xff]
      %508 = vset.pattern.permute.xlu0 13
      %509 = vperm.xlu0 %508, %v289
      %v510 = vpop.permute.xlu0 %509
      %v512 = vmul.f32 %v510, %v507
      %v513 = vadd.f32 %v497, %v512
      %s514 = scalar_lea.vmem %s2, 112
      %v515 = vld [vmem:[%s514] sm:$0xff]
      %516 = vset.pattern.permute.xlu0 14
      %517 = vperm.xlu0 %516, %v286
      %v518 = vpop.permute.xlu0 %517
      %v520 = vmul.f32 %v518, %v515
      %v521 = vadd.f32 %v505, %v520
      %s522 = scalar_lea.vmem %s2, 368
      %v523 = vld [vmem:[%s522] sm:$0xff]
      %524 = vset.pattern.permute.xlu0 14
      %525 = vperm.xlu0 %524, %v289
      %v526 = vpop.permute.xlu0 %525
      %v528 = vmul.f32 %v526, %v523
      %v529 = vadd.f32 %v513, %v528
      %s530 = scalar_lea.vmem %s2, 120
      %v531 = vld [vmem:[%s530] sm:$0xff]
      %532 = vset.pattern.permute.xlu0 15
      %533 = vperm.xlu0 %532, %v286
      %v534 = vpop.permute.xlu0 %533
      %v536 = vmul.f32 %v534, %v531
      %v537 = vadd.f32 %v521, %v536
      %s538 = scalar_lea.vmem %s2, 376
      %v539 = vld [vmem:[%s538] sm:$0xff]
      %540 = vset.pattern.permute.xlu0 15
      %541 = vperm.xlu0 %540, %v289
      %v542 = vpop.permute.xlu0 %541
      %v544 = vmul.f32 %v542, %v539
      %v545 = vadd.f32 %v529, %v544
      %s546 = scalar_lea.vmem %s2, 128
      %v547 = vld [vmem:[%s546] sm:$0xff]
      %548 = vset.pattern.permute.xlu0 16
      %549 = vperm.xlu0 %548, %v286
      %v550 = vpop.permute.xlu0 %549
      %v552 = vmul.f32 %v550, %v547
      %v553 = vadd.f32 %v537, %v552
      %s554 = scalar_lea.vmem %s2, 384
      %v555 = vld [vmem:[%s554] sm:$0xff]
      %556 = vset.pattern.permute.xlu0 16
      %557 = vperm.xlu0 %556, %v289
      %v558 = vpop.permute.xlu0 %557
      %v560 = vmul.f32 %v558, %v555
      %v561 = vadd.f32 %v545, %v560
      %s562 = scalar_lea.vmem %s2, 136
      %v563 = vld [vmem:[%s562] sm:$0xff]
      %564 = vset.pattern.permute.xlu0 17
      %565 = vperm.xlu0 %564, %v286
      %v566 = vpop.permute.xlu0 %565
      %v568 = vmul.f32 %v566, %v563
      %v569 = vadd.f32 %v553, %v568
      %s570 = scalar_lea.vmem %s2, 392
      %v571 = vld [vmem:[%s570] sm:$0xff]
      %572 = vset.pattern.permute.xlu0 17
      %573 = vperm.xlu0 %572, %v289
      %v574 = vpop.permute.xlu0 %573
      %v576 = vmul.f32 %v574, %v571
      %v577 = vadd.f32 %v561, %v576
      %s578 = scalar_lea.vmem %s2, 144
      %v579 = vld [vmem:[%s578] sm:$0xff]
      %580 = vset.pattern.permute.xlu0 18
      %581 = vperm.xlu0 %580, %v286
      %v582 = vpop.permute.xlu0 %581
      %v584 = vmul.f32 %v582, %v579
      %v585 = vadd.f32 %v569, %v584
      %s586 = scalar_lea.vmem %s2, 400
      %v587 = vld [vmem:[%s586] sm:$0xff]
      %588 = vset.pattern.permute.xlu0 18
      %589 = vperm.xlu0 %588, %v289
      %v590 = vpop.permute.xlu0 %589
      %v592 = vmul.f32 %v590, %v587
      %v593 = vadd.f32 %v577, %v592
      %s594 = scalar_lea.vmem %s2, 152
      %v595 = vld [vmem:[%s594] sm:$0xff]
      %596 = vset.pattern.permute.xlu0 19
      %597 = vperm.xlu0 %596, %v286
      %v598 = vpop.permute.xlu0 %597
      %v600 = vmul.f32 %v598, %v595
      %v601 = vadd.f32 %v585, %v600
      %s602 = scalar_lea.vmem %s2, 408
      %v603 = vld [vmem:[%s602] sm:$0xff]
      %604 = vset.pattern.permute.xlu0 19
      %605 = vperm.xlu0 %604, %v289
      %v606 = vpop.permute.xlu0 %605
      %v608 = vmul.f32 %v606, %v603
      %v609 = vadd.f32 %v593, %v608
      %s610 = scalar_lea.vmem %s2, 160
      %v611 = vld [vmem:[%s610] sm:$0xff]
      %612 = vset.pattern.permute.xlu0 20
      %613 = vperm.xlu0 %612, %v286
      %v614 = vpop.permute.xlu0 %613
      %v616 = vmul.f32 %v614, %v611
      %v617 = vadd.f32 %v601, %v616
      %s618 = scalar_lea.vmem %s2, 416
      %v619 = vld [vmem:[%s618] sm:$0xff]
      %620 = vset.pattern.permute.xlu0 20
      %621 = vperm.xlu0 %620, %v289
      %v622 = vpop.permute.xlu0 %621
      %v624 = vmul.f32 %v622, %v619
      %v625 = vadd.f32 %v609, %v624
      %s626 = scalar_lea.vmem %s2, 168
      %v627 = vld [vmem:[%s626] sm:$0xff]
      %628 = vset.pattern.permute.xlu0 21
      %629 = vperm.xlu0 %628, %v286
      %v630 = vpop.permute.xlu0 %629
      %v632 = vmul.f32 %v630, %v627
      %v633 = vadd.f32 %v617, %v632
      %s634 = scalar_lea.vmem %s2, 424
      %v635 = vld [vmem:[%s634] sm:$0xff]
      %636 = vset.pattern.permute.xlu0 21
      %637 = vperm.xlu0 %636, %v289
      %v638 = vpop.permute.xlu0 %637
      %v640 = vmul.f32 %v638, %v635
      %v641 = vadd.f32 %v625, %v640
      %s642 = scalar_lea.vmem %s2, 176
      %v643 = vld [vmem:[%s642] sm:$0xff]
      %644 = vset.pattern.permute.xlu0 22
      %645 = vperm.xlu0 %644, %v286
      %v646 = vpop.permute.xlu0 %645
      %v648 = vmul.f32 %v646, %v643
      %v649 = vadd.f32 %v633, %v648
      %s650 = scalar_lea.vmem %s2, 432
      %v651 = vld [vmem:[%s650] sm:$0xff]
      %652 = vset.pattern.permute.xlu0 22
      %653 = vperm.xlu0 %652, %v289
      %v654 = vpop.permute.xlu0 %653
      %v656 = vmul.f32 %v654, %v651
      %v657 = vadd.f32 %v641, %v656
      %s658 = scalar_lea.vmem %s2, 184
      %v659 = vld [vmem:[%s658] sm:$0xff]
      %660 = vset.pattern.permute.xlu0 23
      %661 = vperm.xlu0 %660, %v286
      %v662 = vpop.permute.xlu0 %661
      %v664 = vmul.f32 %v662, %v659
      %v665 = vadd.f32 %v649, %v664
      %s666 = scalar_lea.vmem %s2, 440
      %v667 = vld [vmem:[%s666] sm:$0xff]
      %668 = vset.pattern.permute.xlu0 23
      %669 = vperm.xlu0 %668, %v289
      %v670 = vpop.permute.xlu0 %669
      %v672 = vmul.f32 %v670, %v667
      %v673 = vadd.f32 %v657, %v672
      %s674 = scalar_lea.vmem %s2, 192
      %v675 = vld [vmem:[%s674] sm:$0xff]
      %676 = vset.pattern.permute.xlu0 24
      %677 = vperm.xlu0 %676, %v286
      %v678 = vpop.permute.xlu0 %677
      %v680 = vmul.f32 %v678, %v675
      %v681 = vadd.f32 %v665, %v680
      %s682 = scalar_lea.vmem %s2, 448
      %v683 = vld [vmem:[%s682] sm:$0xff]
      %684 = vset.pattern.permute.xlu0 24
      %685 = vperm.xlu0 %684, %v289
      %v686 = vpop.permute.xlu0 %685
      %v688 = vmul.f32 %v686, %v683
      %v689 = vadd.f32 %v673, %v688
      %s690 = scalar_lea.vmem %s2, 200
      %v691 = vld [vmem:[%s690] sm:$0xff]
      %692 = vset.pattern.permute.xlu0 25
      %693 = vperm.xlu0 %692, %v286
      %v694 = vpop.permute.xlu0 %693
      %v696 = vmul.f32 %v694, %v691
      %v697 = vadd.f32 %v681, %v696
      %s698 = scalar_lea.vmem %s2, 456
      %v699 = vld [vmem:[%s698] sm:$0xff]
      %700 = vset.pattern.permute.xlu0 25
      %701 = vperm.xlu0 %700, %v289
      %v702 = vpop.permute.xlu0 %701
      %v704 = vmul.f32 %v702, %v699
      %v705 = vadd.f32 %v689, %v704
      %s706 = scalar_lea.vmem %s2, 208
      %v707 = vld [vmem:[%s706] sm:$0xff]
      %708 = vset.pattern.permute.xlu0 26
      %709 = vperm.xlu0 %708, %v286
      %v710 = vpop.permute.xlu0 %709
      %v712 = vmul.f32 %v710, %v707
      %v713 = vadd.f32 %v697, %v712
      %s714 = scalar_lea.vmem %s2, 464
      %v715 = vld [vmem:[%s714] sm:$0xff]
      %716 = vset.pattern.permute.xlu0 26
      %717 = vperm.xlu0 %716, %v289
      %v718 = vpop.permute.xlu0 %717
      %v720 = vmul.f32 %v718, %v715
      %v721 = vadd.f32 %v705, %v720
      %s722 = scalar_lea.vmem %s2, 216
      %v723 = vld [vmem:[%s722] sm:$0xff]
      %724 = vset.pattern.permute.xlu0 27
      %725 = vperm.xlu0 %724, %v286
      %v726 = vpop.permute.xlu0 %725
      %v728 = vmul.f32 %v726, %v723
      %v729 = vadd.f32 %v713, %v728
      %s730 = scalar_lea.vmem %s2, 472
      %v731 = vld [vmem:[%s730] sm:$0xff]
      %732 = vset.pattern.permute.xlu0 27
      %733 = vperm.xlu0 %732, %v289
      %v734 = vpop.permute.xlu0 %733
      %v736 = vmul.f32 %v734, %v731
      %v737 = vadd.f32 %v721, %v736
      %s738 = scalar_lea.vmem %s2, 224
      %v739 = vld [vmem:[%s738] sm:$0xff]
      %740 = vset.pattern.permute.xlu0 28
      %741 = vperm.xlu0 %740, %v286
      %v742 = vpop.permute.xlu0 %741
      %v744 = vmul.f32 %v742, %v739
      %v745 = vadd.f32 %v729, %v744
      %s746 = scalar_lea.vmem %s2, 480
      %v747 = vld [vmem:[%s746] sm:$0xff]
      %748 = vset.pattern.permute.xlu0 28
      %749 = vperm.xlu0 %748, %v289
      %v750 = vpop.permute.xlu0 %749
      %v752 = vmul.f32 %v750, %v747
      %v753 = vadd.f32 %v737, %v752
      %s754 = scalar_lea.vmem %s2, 232
      %v755 = vld [vmem:[%s754] sm:$0xff]
      %756 = vset.pattern.permute.xlu0 29
      %757 = vperm.xlu0 %756, %v286
      %v758 = vpop.permute.xlu0 %757
      %v760 = vmul.f32 %v758, %v755
      %v761 = vadd.f32 %v745, %v760
      %s762 = scalar_lea.vmem %s2, 488
      %v763 = vld [vmem:[%s762] sm:$0xff]
      %764 = vset.pattern.permute.xlu0 29
      %765 = vperm.xlu0 %764, %v289
      %v766 = vpop.permute.xlu0 %765
      %v768 = vmul.f32 %v766, %v763
      %v769 = vadd.f32 %v753, %v768
      %s770 = scalar_lea.vmem %s2, 240
      %v771 = vld [vmem:[%s770] sm:$0xff]
      %772 = vset.pattern.permute.xlu0 30
      %773 = vperm.xlu0 %772, %v286
      %v774 = vpop.permute.xlu0 %773
      %v776 = vmul.f32 %v774, %v771
      %v777 = vadd.f32 %v761, %v776
      %s778 = scalar_lea.vmem %s2, 496
      %v779 = vld [vmem:[%s778] sm:$0xff]
      %780 = vset.pattern.permute.xlu0 30
      %781 = vperm.xlu0 %780, %v289
      %v782 = vpop.permute.xlu0 %781
      %v784 = vmul.f32 %v782, %v779
      %v785 = vadd.f32 %v769, %v784
      %s786 = scalar_lea.vmem %s2, 248
      %v787 = vld [vmem:[%s786] sm:$0xff]
      %788 = vset.pattern.permute.xlu0 31
      %789 = vperm.xlu0 %788, %v286
      %v790 = vpop.permute.xlu0 %789
      %v792 = vmul.f32 %v790, %v787
      %v793 = vadd.f32 %v777, %v792
      %s794 = scalar_lea.vmem %s2, 504
      %v795 = vld [vmem:[%s794] sm:$0xff]
      %796 = vset.pattern.permute.xlu0 31
      %797 = vperm.xlu0 %796, %v289
      %v798 = vpop.permute.xlu0 %797
      %v800 = vmul.f32 %v798, %v795
      %v801 = vadd.f32 %v785, %v800
      %v802 = vadd.f32 %v793, %v801
      %804 = vrot.lane.b32.xlu0 %v802, 96
      %v805 = vpop.permute.xlu0 %804
      %v807 = vld [vmem:[%s3] sm:$0xff]
      %v808 = vld [vmem:[%s3 + $0x8] sm:$0xff]
      %v809 = vld [vmem:[%s3 + $0x10] sm:$0x3]
      %vm810 = vcmask 130048
      %v812 = vsel %vm810, %v807, 0
      %v815 = vsel %vm810, %v808, 0
      %v818 = vsel %vm810, %v809, 0
      %820 = vmatpush.msra.mxu0 0.0
      %821 = vmatpush.msra.mxu0 0.0
      %822 = vmatpush.msra.mxu0 0.0
      %823 = vmatpush.msra.mxu0 0.0
      %824 = vmatpush.msra.mxu0 0.0
      %825 = vmatpush.msra.mxu0 0.0
      %826 = vmatpush.msra.mxu0 0.0
      %827 = vmatpush.msra.mxu0 0.0
      %828 = vmatpush.msra.mxu0 0.0
      %829 = vmatpush.msra.mxu0 0.0
      %830 = vmatpush.msra.mxu0 0.0
      %831 = vmatpush.msra.mxu0 0.0
      %832 = vmatpush.msra.mxu0 0.0
      %833 = vmatpush.msra.mxu0 0.0
      %834 = vmatpush.msra.mxu0 %v805
      %835 = vmatpush.msra.mxu0 %v802
      %836 = vmatmul.f32.gmra.mxu0 %v812
      %v837 = vpop.f32.mrf.mxu0
      %v838 = vadd.f32 0.0, %v837
      %839 = vmatmul.f32.gmra.mxu0 %v815
      %v840 = vpop.f32.mrf.mxu0
      %v841 = vadd.f32 0.0, %v840
      %842 = vmatmul.f32.gmra.mxu0 %v818
      %v843 = vpop.f32.mrf.mxu0
      %v844 = vadd.f32 0.0, %v843
      %845 = vdwg.mxu0
      %v846 = vld [vmem:[%s4] sm:$0xff]
      %v847 = vld [vmem:[%s4 + $0x8] sm:$0xff]
      %v848 = vld [vmem:[%s4 + $0x10] sm:$0xff]
      %v849 = vld [vmem:[%s4 + $0x18] sm:$0xff]
      %v850 = vld [vmem:[%s5] sm:$0x1]
      %v852 = vperm.slane %v850, 0
      %vm854 = vcmask 261120
      %v856 = vsel %vm854, %v252, 0
      %v859 = vsel %vm854, %v253, 0
      %v861 = vsel %vm854, %v254, 0
      %863 = vmatpush.msra.mxu0 0.0
      %864 = vmatpush.msra.mxu0 0.0
      %865 = vmatpush.msra.mxu0 0.0
      %866 = vmatpush.msra.mxu0 0.0
      %867 = vmatpush.msra.mxu0 0.0
      %868 = vmatpush.msra.mxu0 0.0
      %869 = vmatpush.msra.mxu0 0.0
      %870 = vmatpush.msra.mxu0 0.0
      %871 = vmatpush.msra.mxu0 0.0
      %872 = vmatpush.msra.mxu0 0.0
      %873 = vmatpush.msra.mxu0 0.0
      %874 = vmatpush.msra.mxu0 0.0
      %875 = vmatpush.msra.mxu0 %v849
      %876 = vmatpush.msra.mxu0 %v848
      %877 = vmatpush.msra.mxu0 %v847
      %878 = vmatpush.msra.mxu0 %v846
      %879 = vmatmul.f32.gmra.mxu0 %v856
      %v880 = vpop.f32.mrf.mxu0
      %v881 = vadd.f32 %v852, %v880
      %882 = vmatmul.f32.gmra.mxu0 %v859
      %v883 = vpop.f32.mrf.mxu0
      %v884 = vadd.f32 %v852, %v883
      %885 = vmatmul.f32.gmra.mxu0 %v861
      %v886 = vpop.f32.mrf.mxu0
      %v887 = vadd.f32 %v852, %v886
      %888 = vdwg.mxu0
      %v889 = vadd.f32 %v881, %v838
      %v890 = vadd.f32 %v884, %v841
      %v891 = vadd.f32 %v887, %v844
      %892 = vst.msk [vmem:[%s251] sm:$0xff] %vm854, %v889
      %893 = vst.msk [vmem:[%s251 + $0x8] sm:$0xff] %vm854, %v890
      %vm894 = vcmask 254976
      %895 = vst.msk [vmem:[%s251 + $0x10] sm:$0x3] %vm894, %v891
      %p896 = scmp.lt.s32.totalorder %s17, 1
      %s897 = scalar_select %p896, %s17, 1
      %s898 = smul.addr %s897, 3
      %s899 = smul.addr %s898, 8
      %s900 = scalar_lea.vmem %s6, %s899
      // Predicated region
      $region45: #{fno1d_forward.8} parent=43 // pred_check
        %p901 = pneg %p166
      $region46: #{fno1d_forward.8} parent=43 // pred_check_branch
        %903 = sbr.rel (%p901) target = $region48
      $region47: #{fno1d_forward.8} parent=43 // pred_region
        _
      $region48: #{fno1d_forward.8} parent=43 // pred_fallthru
        _
    $region44: #{fno1d_forward.8} parent=5 // pred_fallthru
      _
    %p904 = scmp.le.s32.totalorder 2, %s12
    // Predicated region
    $region49: #{fno1d_forward.8} parent=5 // pred_check
      %p905 = pneg %p904
    $region50: #{fno1d_forward.8} parent=5 // pred_check_branch
      %907 = sbr.rel (%p905) target = $region52
    $region51: #{fno1d_forward.8} parent=5 // pred_region
      %s908 = ssub.s32 %s12, 2
      // Predicated region
      $region53: #{fno1d_forward.8} parent=51 // pred_check
        %p909 = pneg %p172
      $region54: #{fno1d_forward.8} parent=51 // pred_check_branch
        %911 = sbr.rel (%p909) target = $region56
      $region55: #{fno1d_forward.8} parent=51 // pred_region
        %p912 = scmp.lt.s32.totalorder %s18, 1
        %s913 = scalar_select %p912, %s18, 1
        %s914 = smul.addr %s913, 3
        %s915 = smul.addr %s914, 8
        %s916 = scalar_lea.vmem %s6, %s915
      $region56: #{fno1d_forward.8} parent=51 // pred_fallthru
        _
    $region52: #{fno1d_forward.8} parent=5 // pred_fallthru
      _
  $region6: #{fno1d_forward.8} parent=0 // loop_footer
    %s16 = sadd.s32 1, %s12
  $region7: #{fno1d_forward.8} parent=0 // loop_footer_branch
    %11 = sbr.rel target = $region3
  $region8: #{fno1d_forward.8} parent=0 // loop_exit
    _

</llo_original>
